<compile_context>
chip_gen: v7x
topology: tpu7x:2x2x1
jax: 0.10.0
libtpu: 0.0.40
codegen_flags: <defaults>
</compile_context>

<pallas_src>
import functools
import math

import jax
import jax.numpy as jnp
from jax import lax
from jax.experimental import pallas as pl
from jax.experimental.pallas import tpu as pltpu

AE_ALL_DIM = 8  # stand-in for the external AE_ALL_DIM constant of the original code

PARAM_ORDER = [
    "w_emb", "b_emb", "wq", "wk", "wv", "w_h", "b_h", "w_xout", "b_xout",
    "w_ae1", "b_ae1", "w_ae2", "b_ae2", "w_s1", "b_s1", "w_s2", "b_s2",
]

FUSED_ORDER = [
    "w_x_emb", "w_m_emb", "w_t_emb", "w_time_emb", "w_b_emb", "b_emb",
    "w_h", "b_h", "w1_h", "w1_x", "w1_b", "b1", "w_fin_h", "w_fin_hh", "b_fin",
]


def _round_up(x, m):
    return ((x + m - 1) // m) * m


def init_params(key, *, temporal_input_size, treatment_size, baseline_size,
                hidden_dim, include_baseline, include_last):
    """Deterministic synthetic parameter init (frozen model + emission heads)."""
    din_frozen = 2 * temporal_input_size + treatment_size + 1 + baseline_size
    din_emis = hidden_dim
    if include_baseline:
        din_emis += baseline_size
    if include_last:
        din_emis += temporal_input_size
    shapes = {
        "w_emb": (din_frozen, hidden_dim), "b_emb": (1, hidden_dim),
        "wq": (hidden_dim, hidden_dim), "wk": (hidden_dim, hidden_dim),
        "wv": (hidden_dim, hidden_dim),
        "w_h": (hidden_dim, hidden_dim), "b_h": (1, hidden_dim),
        "w_xout": (hidden_dim, temporal_input_size), "b_xout": (1, temporal_input_size),
        "w_ae1": (din_emis, hidden_dim), "b_ae1": (1, hidden_dim),
        "w_ae2": (hidden_dim, AE_ALL_DIM), "b_ae2": (1, AE_ALL_DIM),
        "w_s1": (din_emis, hidden_dim), "b_s1": (1, hidden_dim),
        "w_s2": (hidden_dim, 1), "b_s2": (1, 1),
    }
    keys = jax.random.split(key, len(PARAM_ORDER))
    params = {}
    for name, k in zip(PARAM_ORDER, keys):
        shape = shapes[name]
        scale = 1.0 / math.sqrt(max(shape[0], 1))
        params[name] = scale * jax.random.normal(k, shape, dtype=jnp.float32)
    return params


# -----------------------------------------------------------------------------
# Host-side weight fusion (done once, outside the kernel)
# -----------------------------------------------------------------------------
def _fuse_weights(params, *, temporal_input_size, treatment_size, baseline_size,
                  hidden_dim, hidden_pad, include_baseline, include_last,
                  out_pad, compute_dtype):
    Dx, Dt, Dbase = temporal_input_size, treatment_size, baseline_size
    H, Hp = hidden_dim, hidden_pad
    f32 = jnp.float32
    cd = compute_dtype

    w_emb, b_emb = params["w_emb"], params["b_emb"]
    din = w_emb.shape[0]

    # Fold W_{q,k,v} into the embedding matmul (f32 products, cast to MXU dtype
    # afterwards) and fold the 1/sqrt(H) attention scale into the Q columns.
    wq_s = params["wq"] * (1.0 / math.sqrt(H))
    w_big = jnp.zeros((din, 4 * Hp), f32)
    b_big = jnp.zeros((1, 4 * Hp), f32)
    for idx, (wblk, bblk) in enumerate((
            (w_emb, b_emb),
            (w_emb @ wq_s, b_emb @ wq_s),
            (w_emb @ params["wk"], b_emb @ params["wk"]),
            (w_emb @ params["wv"], b_emb @ params["wv"]))):
        col = idx * Hp
        w_big = w_big.at[:, col:col + H].set(wblk)
        b_big = b_big.at[:, col:col + H].set(bblk)

    # Row-split the fused embedding weight by input stream, so the wrapper never
    # materializes a packed `feat` tensor (nor the baseline broadcast) in HBM.
    # Frozen-model input row order: [X | M | T | times | baseline].
    r0 = 0
    w_x_emb = w_big[r0:r0 + Dx]; r0 += Dx
    w_m_emb = w_big[r0:r0 + Dx]; r0 += Dx
    w_t_emb = w_big[r0:r0 + Dt]; r0 += Dt
    w_time_emb = w_big[r0:r0 + 1]; r0 += 1          # (1, 4Hp): VPU outer product, f32
    w_b_emb = w_big[r0:r0 + Dbase]

    w_h_pad = jnp.zeros((Hp, Hp), f32).at[:H, :H].set(params["w_h"])
    b_h_pad = jnp.zeros((1, Hp), f32).at[:, :H].set(params["b_h"])

    # Fused emission first layer.  Column layout [surv-hidden (0:Hp) | ae-hidden
    # (Hp:2Hp)]; rows of the original packed input [h | bl? | X?] split per stream.
    w1_h = jnp.zeros((Hp, 2 * Hp), f32)
    w1_h = w1_h.at[:H, 0:H].set(params["w_s1"][:H])
    w1_h = w1_h.at[:H, Hp:Hp + H].set(params["w_ae1"][:H])
    r = H
    w1_b = jnp.zeros((Dbase, 2 * Hp), f32)
    if include_baseline:
        w1_b = w1_b.at[:, 0:H].set(params["w_s1"][r:r + Dbase])
        w1_b = w1_b.at[:, Hp:Hp + H].set(params["w_ae1"][r:r + Dbase])
        r += Dbase
    w1_x = jnp.zeros((Dx, 2 * Hp), f32)
    if include_last:
        w1_x = w1_x.at[:, 0:H].set(params["w_s1"][r:r + Dx])
        w1_x = w1_x.at[:, Hp:Hp + H].set(params["w_ae1"][r:r + Dx])
    b1 = jnp.zeros((1, 2 * Hp), f32)
    b1 = b1.at[:, 0:H].set(params["b_s1"]).at[:, Hp:Hp + H].set(params["b_ae1"])

    # Final fused projection into one lane-dense, 128-padded output slab:
    #   out[:, :Dx]          = x_out   (from h  @ w_xout)
    #   out[:, Dx]           = y_surv
    #   out[:, Dx+1:Dx+1+AE] = y_ae
    out_w = Dx + 1 + AE_ALL_DIM
    w_fin_h = jnp.zeros((Hp, out_pad), f32).at[:H, :Dx].set(params["w_xout"])
    w_fin_hh = jnp.zeros((2 * Hp, out_pad), f32)
    w_fin_hh = w_fin_hh.at[0:H, Dx:Dx + 1].set(params["w_s2"])
    w_fin_hh = w_fin_hh.at[Hp:Hp + H, Dx + 1:out_w].set(params["w_ae2"])
    b_fin = jnp.zeros((1, out_pad), f32)
    b_fin = b_fin.at[:, :Dx].set(params["b_xout"])
    b_fin = b_fin.at[:, Dx:Dx + 1].set(params["b_s2"])
    b_fin = b_fin.at[:, Dx + 1:out_w].set(params["b_ae2"])

    return {
        "w_x_emb": w_x_emb.astype(cd), "w_m_emb": w_m_emb.astype(cd),
        "w_t_emb": w_t_emb.astype(cd), "w_time_emb": w_time_emb,
        "w_b_emb": w_b_emb.astype(cd), "b_emb": b_big,
        "w_h": w_h_pad.astype(cd), "b_h": b_h_pad,
        "w1_h": w1_h.astype(cd), "w1_x": w1_x.astype(cd), "w1_b": w1_b.astype(cd),
        "b1": b1,
        "w_fin_h": w_fin_h.astype(cd), "w_fin_hh": w_fin_hh.astype(cd),
        "b_fin": b_fin,
    }


# -----------------------------------------------------------------------------
# Kernel: one grid step processes a (batch_tile, S_pad) block of rows in VMEM
# -----------------------------------------------------------------------------
def _frozen_treatformer_kernel(compute_dtype, seq_valid,
                               x_ref, m_ref, t_ref, times_ref, b_ref,
                               w_x_ref, w_m_ref, w_t_ref, w_time_ref, w_b_ref,
                               b_emb_ref, w_h_ref, b_h_ref,
                               w1_h_ref, w1_x_ref, w1_b_ref, b1_ref,
                               w_fin_h_ref, w_fin_hh_ref, b_fin_ref,
                               out_ref):
    bt, s, dx = x_ref.shape
    dt = t_ref.shape[-1]
    hp = w_h_ref.shape[0]        # hidden dim padded to a multiple of 128
    rows = bt * s
    cd = compute_dtype
    f32 = jnp.float32

    # Flatten (Bt, S, .) -> (Bt*S, .) for all row-wise matmuls (fills the MXU M dim);
    # S is padded to a multiple of 8 host-side so these reshapes are free merges.
    x2 = x_ref[...].reshape(rows, dx)
    x_c = x2.astype(cd)
    m_c = m_ref[...].reshape(rows, dx).astype(cd)
    t_c = t_ref[...].reshape(rows, dt).astype(cd)
    times2 = times_ref[...].reshape(rows, 1)               # f32
    b_c = b_ref[...].reshape(bt, -1).astype(cd)            # (bt, Dbase)

    # ---- frozen Treatformer stand-in: fused [emb | q | k | v] projection -------
    acc = (jnp.dot(x_c, w_x_ref[...], preferred_element_type=f32)
           + jnp.dot(m_c, w_m_ref[...], preferred_element_type=f32)
           + jnp.dot(t_c, w_t_ref[...], preferred_element_type=f32)
           + times2 * w_time_ref[...])                      # (rows, 4Hp) f32
    # Per-batch part (baseline stream + fused biases), broadcast over timesteps.
    per_batch = (jnp.dot(b_c, w_b_ref[...], preferred_element_type=f32)
                 + b_emb_ref[...])                          # (bt, 4Hp) f32
    embqkv = acc.reshape(bt, s, 4 * hp) + per_batch[:, None, :]

    emb3 = embqkv[..., 0 * hp:1 * hp]                       # residual input, f32
    q3 = embqkv[..., 1 * hp:2 * hp].astype(cd)              # 1/sqrt(H) folded in weights
    k3 = embqkv[..., 2 * hp:3 * hp].astype(cd)
    v3 = embqkv[..., 3 * hp:4 * hp].astype(cd)

    # Batched (S, S) attention: contract the feature axis directly (no k transpose).
    scores = lax.dot_general(q3, k3, (((2,), (2,)), ((0,), (0,))),
                             preferred_element_type=f32)    # (bt, s, s)
    if seq_valid < s:                                       # mask zero-padded keys
        key_idx = lax.broadcasted_iota(jnp.int32, (1, s, s), 2)
        scores = jnp.where(key_idx < seq_valid, scores, -1e30)
    scores = scores - jnp.max(scores, axis=-1, keepdims=True)
    p = jnp.exp(scores)
    attn = p * pl.reciprocal(jnp.sum(p, axis=-1, keepdims=True), approx=True)
    a3 = lax.dot_general(attn.astype(cd), v3, (((2,), (1,)), ((0,), (0,))),
                         preferred_element_type=f32)        # (bt, s, Hp)

    h2 = jnp.tanh(
        jnp.dot((emb3 + a3).reshape(rows, hp).astype(cd), w_h_ref[...],
                preferred_element_type=f32) + b_h_ref[...])  # h_out (rows, Hp) f32
    h_c = h2.astype(cd)

    # ---- fused emission heads (emission_window == 1) ---------------------------
    # hh = relu([h | bl | X] @ [w_s1 | w_ae1]) computed without any lane concat:
    # bl / last-X contributions come from their own streams (weights are zero when
    # include_baseline / include_last is off).
    hh_rows = (jnp.dot(h_c, w1_h_ref[...], preferred_element_type=f32)
               + jnp.dot(x_c, w1_x_ref[...], preferred_element_type=f32))
    hh_b = (jnp.dot(b_c, w1_b_ref[...], preferred_element_type=f32)
            + b1_ref[...])                                   # (bt, 2Hp)
    hh = jnp.maximum(hh_rows.reshape(bt, s, 2 * hp) + hh_b[:, None, :], 0.0)
    hh_c = hh.reshape(rows, 2 * hp).astype(cd)

    # Single lane-dense output slab: [x_out | y_surv | y_ae | 0-pad to 128 lanes].
    out2 = (jnp.dot(h_c, w_fin_h_ref[...], preferred_element_type=f32)
            + jnp.dot(hh_c, w_fin_hh_ref[...], preferred_element_type=f32)
            + b_fin_ref[...])
    out_ref[...] = out2.reshape(bt, s, out_ref.shape[-1]).astype(out_ref.dtype)


# -----------------------------------------------------------------------------
# Wrapper
# -----------------------------------------------------------------------------
def frozen_treatformer_forward(params, B, X, M, T, times,
                               times_forward=None, T_forward=None, Y=None, E=None,
                               *, include_baseline=True, include_last=True,
                               compute_dtype=jnp.bfloat16, out_dtype=jnp.float32,
                               rows_per_step=None):
    # times_forward / T_forward / Y / E only feed the forecasting (`sample`) path of
    # the frozen model; the direct forward (emission_window == 1) does not use them.
    del times_forward, T_forward, Y, E
    bsz, S, Dx = X.shape
    Dt = T.shape[-1]
    Dbase = B.shape[-1]
    H = params["w_emb"].shape[1]
    Hp = _round_up(H, 128)                     # lane-aligned q/k/v slices
    out_w = Dx + 1 + AE_ALL_DIM
    out_pad = _round_up(max(out_w, 128), 128)
    S_pad = _round_up(S, 8)                    # free sublane merge for (Bt,S,.)->(rows,.)

    # Rows-per-grid-step target (>=512; v7x has half the VMEM of v5e/v6e).
    if rows_per_step is None:
        kind = ""
        try:
            kind = jax.devices()[0].device_kind.lower()
        except Exception:
            pass
        rows_per_step = 512 if "v7" in kind else 1024
    batch_tile = max(1, min(bsz, rows_per_step // S_pad))
    if bsz >= 2:   # keep >= 2 grid steps so both v7x TensorCores get work
        batch_tile = min(batch_tile, pl.cdiv(bsz, 2))

    fused = _fuse_weights(
        params, temporal_input_size=Dx, treatment_size=Dt, baseline_size=Dbase,
        hidden_dim=H, hidden_pad=Hp, include_baseline=include_baseline,
        include_last=include_last, out_pad=out_pad, compute_dtype=compute_dtype)
    weights = [fused[n] for n in FUSED_ORDER]
    weight_bytes = sum(int(w.size) * w.dtype.itemsize for w in weights)
    cd_bytes = jnp.dtype(compute_dtype).itemsize

    def est_vmem(bt):
        rows = bt * S_pad
        io = 2 * 4 * bt * (S_pad * (2 * Dx + Dt + 1) + Dbase)      # dbl-buffered inputs
        io += 2 * jnp.dtype(out_dtype).itemsize * bt * S_pad * out_pad
        inter = rows * (4 * Hp * (4 + cd_bytes)      # fused emb/qkv + q,k,v casts
                        + 2 * S_pad * 4              # scores + attn
                        + 3 * Hp * (4 + cd_bytes)    # h, hh
                        + out_pad * 4)
        return io + 2 * weight_bytes + 2 * inter     # headroom / possible dbl-buffered wts

    VMEM_BUDGET = 36 * 1024 * 1024
    while batch_tile > 1 and est_vmem(batch_tile) > VMEM_BUDGET:
        batch_tile = max(1, batch_tile // 2)
    vmem_limit = int(min(48 * 1024 * 1024,
                         max(16 * 1024 * 1024, est_vmem(batch_tile) + (4 << 20))))

    n_blocks = pl.cdiv(bsz, batch_tile)
    bsz_pad = n_blocks * batch_tile

    f32 = jnp.float32

    def pad_bs(a):  # zero-pad batch and sequence axes
        return jnp.pad(a.astype(f32),
                       ((0, bsz_pad - bsz), (0, S_pad - S)) + ((0, 0),) * (a.ndim - 2))

    Xp = pad_bs(X)
    Mp = pad_bs(M)
    Tp = pad_bs(T)
    timesp = pad_bs(times.astype(f32)[..., None])                       # (bsz_pad, S_pad, 1)
    Bp = jnp.pad(B.astype(f32), ((0, bsz_pad - bsz), (0, 0)))[:, None, :]  # (bsz_pad, 1, Dbase)

    data_specs = [
        pl.BlockSpec((batch_tile, S_pad, Dx), lambda i: (i, 0, 0)),
        pl.BlockSpec((batch_tile, S_pad, Dx), lambda i: (i, 0, 0)),
        pl.BlockSpec((batch_tile, S_pad, Dt), lambda i: (i, 0, 0)),
        pl.BlockSpec((batch_tile, S_pad, 1), lambda i: (i, 0, 0)),
        pl.BlockSpec((batch_tile, 1, Dbase), lambda i: (i, 0, 0)),
    ]
    out_specs = pl.BlockSpec((batch_tile, S_pad, out_pad), lambda i: (i, 0, 0))
    out_shape = jax.ShapeDtypeStruct((bsz_pad, S_pad, out_pad), out_dtype)
    kernel = functools.partial(_frozen_treatformer_kernel, compute_dtype, S)

    def call(single_buffer_weights):
        def wspec(w):
            nd = w.ndim
            idx_map = lambda i, nd=nd: (0,) * nd
            if single_buffer_weights:
                # Constant index_map -> double buffering is pure VMEM waste.
                return pl.BlockSpec(w.shape, idx_map, pipeline_mode=pl.Buffered(1))
            return pl.BlockSpec(w.shape, idx_map)

        return pl.pallas_call(
            kernel,
            grid=(n_blocks,),
            in_specs=data_specs + [wspec(w) for w in weights],
            out_specs=out_specs,
            out_shape=out_shape,
            compiler_params=pltpu.CompilerParams(
                dimension_semantics=("parallel",),
                vmem_limit_bytes=vmem_limit),
        )(Xp, Mp, Tp, timesp, Bp, *weights)

    try:
        out = call(True)
    except Exception:
        # Fallback if single-buffer pipeline_mode is unsupported in this jax build.
        out = call(False)

    out = out[:bsz, :S]
    x_out = out[..., :Dx]
    y_proba = out[..., Dx:out_w]
    return x_out, y_proba


# -----------------------------------------------------------------------------
# Pure-JAX reference (uses the raw, unfused parameters)
# -----------------------------------------------------------------------------
def reference_forward(params, B, X, M, T, times, include_baseline, include_last):
    bsz, S, _ = X.shape
    bl_rep = jnp.broadcast_to(B[:, None, :], (bsz, S, B.shape[-1]))
    feat = jnp.concatenate([X, M, T, times[..., None], bl_rep], axis=-1)
    emb = feat @ params["w_emb"] + params["b_emb"]
    q, k, v = emb @ params["wq"], emb @ params["wk"], emb @ params["wv"]
    scores = jnp.einsum("bqh,bkh->bqk", q, k) / jnp.sqrt(jnp.float32(q.shape[-1]))
    attn = jax.nn.softmax(scores, axis=-1)
    a = jnp.einsum("bqk,bkh->bqh", attn, v)
    h = jnp.tanh((emb + a) @ params["w_h"] + params["b_h"])
    x_out = h @ params["w_xout"] + params["b_xout"]
    inp = h
    if include_baseline:
        inp = jnp.concatenate([inp, bl_rep], axis=-1)
    if include_last:
        inp = jnp.concatenate([inp, X], axis=-1)
    y_ae = jax.nn.relu(inp @ params["w_ae1"] + params["b_ae1"]) @ params["w_ae2"] + params["b_ae2"]
    y_surv = jax.nn.relu(inp @ params["w_s1"] + params["b_s1"]) @ params["w_s2"] + params["b_s2"]
    return x_out, jnp.concatenate([y_surv, y_ae], axis=-1)


if __name__ == "__main__":
    key = jax.random.PRNGKey(0)
    bsz, S = 2, 8
    Dx, Dt, Dbase, H = 6, 3, 5, 32
    fw = 4  # forecast window (unused by the emission_window==1 forward path)

    kp, kb, kx, km, kt, ky, ke, ktf = jax.random.split(key, 8)
    params = init_params(kp, temporal_input_size=Dx, treatment_size=Dt,
                         baseline_size=Dbase, hidden_dim=H,
                         include_baseline=True, include_last=True)

    B = jax.random.normal(kb, (bsz, Dbase), dtype=jnp.float32)
    X = jax.random.normal(kx, (bsz, S, Dx), dtype=jnp.float32)
    M = (jax.random.uniform(km, (bsz, S, Dx)) > 0.3).astype(jnp.float32)
    T = jax.random.normal(kt, (bsz, S, Dt), dtype=jnp.float32)
    times = jnp.broadcast_to(jnp.arange(S, dtype=jnp.float32)[None, :], (bsz, S))
    times_forward = S + jnp.broadcast_to(jnp.arange(fw, dtype=jnp.float32)[None, :], (bsz, fw))
    T_forward = jax.random.normal(ktf, (bsz, fw, Dt), dtype=jnp.float32)
    Y = jax.random.uniform(ky, (bsz,), dtype=jnp.float32)
    E = (jax.random.uniform(ke, (bsz,)) > 0.5).astype(jnp.float32)

    x_ref_, y_ref_ = reference_forward(params, B, X, M, T, times, True, True)

    # Default path: bf16 MXU operands (f32 accumulation / nonlinearities).
    x_bf, y_bf = frozen_treatformer_forward(
        params, B, X, M, T, times, times_forward, T_forward, Y, E,
        include_baseline=True, include_last=True)
    jax.block_until_ready((x_bf, y_bf))
    assert x_bf.shape == (bsz, S, Dx)
    assert y_bf.shape == (bsz, S, 1 + AE_ALL_DIM)
    assert bool(jnp.all(jnp.isfinite(x_bf))) and bool(jnp.all(jnp.isfinite(y_bf)))
    # Per-output mixed abs/rel check against the f32 reference for the bf16 path.
    assert bool(jnp.all(jnp.abs(x_bf - x_ref_) <= 0.1 + 0.1 * jnp.abs(x_ref_)))
    assert bool(jnp.all(jnp.abs(y_bf - y_ref_) <= 0.1 + 0.1 * jnp.abs(y_ref_)))

    # f32 MXU-operand path: tight correctness check against the pure-JAX reference.
    x_out, y_proba = frozen_treatformer_forward(
        params, B, X, M, T, times, times_forward, T_forward, Y, E,
        include_baseline=True, include_last=True, compute_dtype=jnp.float32)
    jax.block_until_ready((x_out, y_proba))
    assert x_out.shape == (bsz, S, Dx)
    assert y_proba.shape == (bsz, S, 1 + AE_ALL_DIM)
    assert bool(jnp.all(jnp.isfinite(x_out))) and bool(jnp.all(jnp.isfinite(y_proba)))
    assert jnp.allclose(x_out, x_ref_, atol=1e-2, rtol=1e-2)
    assert jnp.allclose(y_proba, y_ref_, atol=1e-2, rtol=1e-2)

    print("KERNEL_OK")
</pallas_src>

<mosaic_0001>
module attributes {stable_mosaic.version = 11 : i64} {
  func.func @_frozen_treatformer_kernel(%arg0: i32, %arg1: memref<1x8x6xf32, #tpu.memory_space<vmem>>, %arg2: memref<1x8x6xf32, #tpu.memory_space<vmem>>, %arg3: memref<1x8x3xf32, #tpu.memory_space<vmem>>, %arg4: memref<1x8x1xf32, #tpu.memory_space<vmem>>, %arg5: memref<1x1x5xf32, #tpu.memory_space<vmem>>, %arg6: memref<6x512xbf16, #tpu.memory_space<vmem>>, %arg7: memref<6x512xbf16, #tpu.memory_space<vmem>>, %arg8: memref<3x512xbf16, #tpu.memory_space<vmem>>, %arg9: memref<1x512xf32, #tpu.memory_space<vmem>>, %arg10: memref<5x512xbf16, #tpu.memory_space<vmem>>, %arg11: memref<1x512xf32, #tpu.memory_space<vmem>>, %arg12: memref<128x128xbf16, #tpu.memory_space<vmem>>, %arg13: memref<1x128xf32, #tpu.memory_space<vmem>>, %arg14: memref<128x256xbf16, #tpu.memory_space<vmem>>, %arg15: memref<6x256xbf16, #tpu.memory_space<vmem>>, %arg16: memref<5x256xbf16, #tpu.memory_space<vmem>>, %arg17: memref<1x256xf32, #tpu.memory_space<vmem>>, %arg18: memref<128x128xbf16, #tpu.memory_space<vmem>>, %arg19: memref<256x128xbf16, #tpu.memory_space<vmem>>, %arg20: memref<1x128xf32, #tpu.memory_space<vmem>>, %arg21: memref<1x8x128xf32, #tpu.memory_space<vmem>>) attributes {dimension_semantics = [#tpu.dimension_semantics<parallel>], iteration_bounds = array<i64: 2>, scalar_prefetch = 0 : i64, scratch_operands = 0 : i64, tpu.core_type = #tpu.core_type<tc>, window_params = [{transform_indices = @transform_0, window_bounds = array<i64: 1, 8, 6>}, {transform_indices = @transform_1, window_bounds = array<i64: 1, 8, 6>}, {transform_indices = @transform_2, window_bounds = array<i64: 1, 8, 3>}, {transform_indices = @transform_3, window_bounds = array<i64: 1, 8, 1>}, {transform_indices = @transform_4, window_bounds = array<i64: 1, 1, 5>}, {pipeline_mode = #tpu.pipeline_mode<synchronous>, transform_indices = @transform_5, window_bounds = array<i64: 6, 512>}, {pipeline_mode = #tpu.pipeline_mode<synchronous>, transform_indices = @transform_6, window_bounds = array<i64: 6, 512>}, {pipeline_mode = #tpu.pipeline_mode<synchronous>, transform_indices = @transform_7, window_bounds = array<i64: 3, 512>}, {pipeline_mode = #tpu.pipeline_mode<synchronous>, transform_indices = @transform_8, window_bounds = array<i64: 1, 512>}, {pipeline_mode = #tpu.pipeline_mode<synchronous>, transform_indices = @transform_9, window_bounds = array<i64: 5, 512>}, {pipeline_mode = #tpu.pipeline_mode<synchronous>, transform_indices = @transform_10, window_bounds = array<i64: 1, 512>}, {pipeline_mode = #tpu.pipeline_mode<synchronous>, transform_indices = @transform_11, window_bounds = array<i64: 128, 128>}, {pipeline_mode = #tpu.pipeline_mode<synchronous>, transform_indices = @transform_12, window_bounds = array<i64: 1, 128>}, {pipeline_mode = #tpu.pipeline_mode<synchronous>, transform_indices = @transform_13, window_bounds = array<i64: 128, 256>}, {pipeline_mode = #tpu.pipeline_mode<synchronous>, transform_indices = @transform_14, window_bounds = array<i64: 6, 256>}, {pipeline_mode = #tpu.pipeline_mode<synchronous>, transform_indices = @transform_15, window_bounds = array<i64: 5, 256>}, {pipeline_mode = #tpu.pipeline_mode<synchronous>, transform_indices = @transform_16, window_bounds = array<i64: 1, 256>}, {pipeline_mode = #tpu.pipeline_mode<synchronous>, transform_indices = @transform_17, window_bounds = array<i64: 128, 128>}, {pipeline_mode = #tpu.pipeline_mode<synchronous>, transform_indices = @transform_18, window_bounds = array<i64: 256, 128>}, {pipeline_mode = #tpu.pipeline_mode<synchronous>, transform_indices = @transform_19, window_bounds = array<i64: 1, 128>}, {transform_indices = @transform_20, window_bounds = array<i64: 1, 8, 128>}]} {
    %c0 = arith.constant 0 : index
    %c0_0 = arith.constant 0 : index
    %c0_1 = arith.constant 0 : index
    %0 = vector.load %arg1[%c0, %c0_0, %c0_1] : memref<1x8x6xf32, #tpu.memory_space<vmem>>, vector<1x8x6xf32>
    %1 = vector.shape_cast %0 : vector<1x8x6xf32> to vector<8x6xf32>
    %2 = arith.truncf %1 : vector<8x6xf32> to vector<8x6xbf16>
    %c0_2 = arith.constant 0 : index
    %c0_3 = arith.constant 0 : index
    %c0_4 = arith.constant 0 : index
    %3 = vector.load %arg2[%c0_2, %c0_3, %c0_4] : memref<1x8x6xf32, #tpu.memory_space<vmem>>, vector<1x8x6xf32>
    %4 = vector.shape_cast %3 : vector<1x8x6xf32> to vector<8x6xf32>
    %5 = arith.truncf %4 : vector<8x6xf32> to vector<8x6xbf16>
    %c0_5 = arith.constant 0 : index
    %c0_6 = arith.constant 0 : index
    %c0_7 = arith.constant 0 : index
    %6 = vector.load %arg3[%c0_5, %c0_6, %c0_7] : memref<1x8x3xf32, #tpu.memory_space<vmem>>, vector<1x8x3xf32>
    %7 = vector.shape_cast %6 : vector<1x8x3xf32> to vector<8x3xf32>
    %8 = arith.truncf %7 : vector<8x3xf32> to vector<8x3xbf16>
    %c0_8 = arith.constant 0 : index
    %c0_9 = arith.constant 0 : index
    %c0_10 = arith.constant 0 : index
    %9 = vector.load %arg4[%c0_8, %c0_9, %c0_10] : memref<1x8x1xf32, #tpu.memory_space<vmem>>, vector<1x8x1xf32>
    %10 = vector.shape_cast %9 : vector<1x8x1xf32> to vector<8x1xf32>
    %c0_11 = arith.constant 0 : index
    %c0_12 = arith.constant 0 : index
    %c0_13 = arith.constant 0 : index
    %11 = vector.load %arg5[%c0_11, %c0_12, %c0_13] : memref<1x1x5xf32, #tpu.memory_space<vmem>>, vector<1x1x5xf32>
    %12 = vector.shape_cast %11 : vector<1x1x5xf32> to vector<1x5xf32>
    %13 = arith.truncf %12 : vector<1x5xf32> to vector<1x5xbf16>
    %c0_14 = arith.constant 0 : index
    %c0_15 = arith.constant 0 : index
    %14 = vector.load %arg6[%c0_14, %c0_15] : memref<6x512xbf16, #tpu.memory_space<vmem>>, vector<6x512xbf16>
    %cst = arith.constant dense<0.000000e+00> : vector<8x512xf32>
    %15 = tpu.matmul %2, %14, %cst {dimension_numbers = #tpu.dot_dimension_numbers<[1], [0], [0], [1], [0, 0, 1, 1], [], []>} : vector<8x6xbf16>, vector<6x512xbf16>, vector<8x512xf32> -> vector<8x512xf32>
    %c0_16 = arith.constant 0 : index
    %c0_17 = arith.constant 0 : index
    %16 = vector.load %arg7[%c0_16, %c0_17] : memref<6x512xbf16, #tpu.memory_space<vmem>>, vector<6x512xbf16>
    %cst_18 = arith.constant dense<0.000000e+00> : vector<8x512xf32>
    %17 = tpu.matmul %5, %16, %cst_18 {dimension_numbers = #tpu.dot_dimension_numbers<[1], [0], [0], [1], [0, 0, 1, 1], [], []>} : vector<8x6xbf16>, vector<6x512xbf16>, vector<8x512xf32> -> vector<8x512xf32>
    %18 = arith.addf %15, %17 : vector<8x512xf32>
    %c0_19 = arith.constant 0 : index
    %c0_20 = arith.constant 0 : index
    %19 = vector.load %arg8[%c0_19, %c0_20] : memref<3x512xbf16, #tpu.memory_space<vmem>>, vector<3x512xbf16>
    %cst_21 = arith.constant dense<0.000000e+00> : vector<8x512xf32>
    %20 = tpu.matmul %8, %19, %cst_21 {dimension_numbers = #tpu.dot_dimension_numbers<[1], [0], [0], [1], [0, 0, 1, 1], [], []>} : vector<8x3xbf16>, vector<3x512xbf16>, vector<8x512xf32> -> vector<8x512xf32>
    %21 = arith.addf %18, %20 : vector<8x512xf32>
    %c0_22 = arith.constant 0 : index
    %c0_23 = arith.constant 0 : index
    %22 = vector.load %arg9[%c0_22, %c0_23] : memref<1x512xf32, #tpu.memory_space<vmem>>, vector<1x512xf32>
    %23 = vector.broadcast %10 : vector<8x1xf32> to vector<8x512xf32>
    %24 = vector.broadcast %22 : vector<1x512xf32> to vector<8x512xf32>
    %25 = arith.mulf %23, %24 : vector<8x512xf32>
    %26 = arith.addf %21, %25 : vector<8x512xf32>
    %c0_24 = arith.constant 0 : index
    %c0_25 = arith.constant 0 : index
    %27 = vector.load %arg10[%c0_24, %c0_25] : memref<5x512xbf16, #tpu.memory_space<vmem>>, vector<5x512xbf16>
    %cst_26 = arith.constant dense<0.000000e+00> : vector<1x512xf32>
    %28 = tpu.matmul %13, %27, %cst_26 {dimension_numbers = #tpu.dot_dimension_numbers<[1], [0], [0], [1], [0, 0, 1, 1], [], []>} : vector<1x5xbf16>, vector<5x512xbf16>, vector<1x512xf32> -> vector<1x512xf32>
    %c0_27 = arith.constant 0 : index
    %c0_28 = arith.constant 0 : index
    %29 = vector.load %arg11[%c0_27, %c0_28] : memref<1x512xf32, #tpu.memory_space<vmem>>, vector<1x512xf32>
    %30 = arith.addf %28, %29 : vector<1x512xf32>
    %31 = vector.shape_cast %26 : vector<8x512xf32> to vector<1x8x512xf32>
    %32 = vector.shape_cast %30 : vector<1x512xf32> to vector<1x1x512xf32>
    %33 = vector.broadcast %32 : vector<1x1x512xf32> to vector<1x8x512xf32>
    %34 = arith.addf %31, %33 : vector<1x8x512xf32>
    %35 = vector.extract_strided_slice %34 {offsets = [0, 0, 0], sizes = [1, 8, 128], strides = [1, 1, 1]} : vector<1x8x512xf32> to vector<1x8x128xf32>
    %36 = vector.extract_strided_slice %34 {offsets = [0, 0, 128], sizes = [1, 8, 128], strides = [1, 1, 1]} : vector<1x8x512xf32> to vector<1x8x128xf32>
    %37 = arith.truncf %36 : vector<1x8x128xf32> to vector<1x8x128xbf16>
    %38 = vector.extract_strided_slice %34 {offsets = [0, 0, 256], sizes = [1, 8, 128], strides = [1, 1, 1]} : vector<1x8x512xf32> to vector<1x8x128xf32>
    %39 = arith.truncf %38 : vector<1x8x128xf32> to vector<1x8x128xbf16>
    %40 = vector.extract_strided_slice %34 {offsets = [0, 0, 384], sizes = [1, 8, 128], strides = [1, 1, 1]} : vector<1x8x512xf32> to vector<1x8x128xf32>
    %41 = arith.truncf %40 : vector<1x8x128xf32> to vector<1x8x128xbf16>
    %cst_29 = arith.constant dense<0.000000e+00> : vector<1x8x8xf32>
    %42 = tpu.matmul %37, %39, %cst_29 {dimension_numbers = #tpu.dot_dimension_numbers<[2], [2], [1], [1], [0, 0, 0, 1, 1, 1], [0], [0]>} : vector<1x8x128xbf16>, vector<1x8x128xbf16>, vector<1x8x8xf32> -> vector<1x8x8xf32>
    %cst_30 = arith.constant dense<0xFF800000> : vector<1x8xf32>
    %43 = vector.multi_reduction <maximumf>, %42, %cst_30 [2] : vector<1x8x8xf32> to vector<1x8xf32>
    %44 = vector.shape_cast %43 : vector<1x8xf32> to vector<1x8x1xf32>
    %45 = vector.broadcast %44 : vector<1x8x1xf32> to vector<1x8x8xf32>
    %46 = arith.subf %42, %45 : vector<1x8x8xf32>
    %47 = math.exp %46 : vector<1x8x8xf32>
    %cst_31 = arith.constant dense<0.000000e+00> : vector<1x8xf32>
    %48 = vector.multi_reduction <add>, %47, %cst_31 [2] : vector<1x8x8xf32> to vector<1x8xf32>
    %49 = vector.shape_cast %48 : vector<1x8xf32> to vector<1x8x1xf32>
    %50 = tpu.reciprocal %49 {approx = true} : vector<1x8x1xf32> -> vector<1x8x1xf32>
    %51 = vector.broadcast %50 : vector<1x8x1xf32> to vector<1x8x8xf32>
    %52 = arith.mulf %47, %51 : vector<1x8x8xf32>
    %53 = arith.truncf %52 : vector<1x8x8xf32> to vector<1x8x8xbf16>
    %cst_32 = arith.constant dense<0.000000e+00> : vector<1x8x128xf32>
    %54 = tpu.matmul %53, %41, %cst_32 {dimension_numbers = #tpu.dot_dimension_numbers<[2], [1], [1], [2], [0, 0, 0, 1, 1, 2], [0], [0]>} : vector<1x8x8xbf16>, vector<1x8x128xbf16>, vector<1x8x128xf32> -> vector<1x8x128xf32>
    %55 = arith.addf %35, %54 : vector<1x8x128xf32>
    %56 = vector.shape_cast %55 : vector<1x8x128xf32> to vector<8x128xf32>
    %57 = arith.truncf %56 : vector<8x128xf32> to vector<8x128xbf16>
    %c0_33 = arith.constant 0 : index
    %c0_34 = arith.constant 0 : index
    %58 = vector.load %arg12[%c0_33, %c0_34] : memref<128x128xbf16, #tpu.memory_space<vmem>>, vector<128x128xbf16>
    %cst_35 = arith.constant dense<0.000000e+00> : vector<8x128xf32>
    %59 = tpu.matmul %57, %58, %cst_35 {dimension_numbers = #tpu.dot_dimension_numbers<[1], [0], [0], [1], [0, 0, 1, 1], [], []>} : vector<8x128xbf16>, vector<128x128xbf16>, vector<8x128xf32> -> vector<8x128xf32>
    %c0_36 = arith.constant 0 : index
    %c0_37 = arith.constant 0 : index
    %60 = vector.load %arg13[%c0_36, %c0_37] : memref<1x128xf32, #tpu.memory_space<vmem>>, vector<1x128xf32>
    %61 = vector.broadcast %60 : vector<1x128xf32> to vector<8x128xf32>
    %62 = arith.addf %59, %61 : vector<8x128xf32>
    %63 = math.tanh %62 : vector<8x128xf32>
    %64 = arith.truncf %63 : vector<8x128xf32> to vector<8x128xbf16>
    %c0_38 = arith.constant 0 : index
    %c0_39 = arith.constant 0 : index
    %65 = vector.load %arg14[%c0_38, %c0_39] : memref<128x256xbf16, #tpu.memory_space<vmem>>, vector<128x256xbf16>
    %cst_40 = arith.constant dense<0.000000e+00> : vector<8x256xf32>
    %66 = tpu.matmul %64, %65, %cst_40 {dimension_numbers = #tpu.dot_dimension_numbers<[1], [0], [0], [1], [0, 0, 1, 1], [], []>} : vector<8x128xbf16>, vector<128x256xbf16>, vector<8x256xf32> -> vector<8x256xf32>
    %c0_41 = arith.constant 0 : index
    %c0_42 = arith.constant 0 : index
    %67 = vector.load %arg15[%c0_41, %c0_42] : memref<6x256xbf16, #tpu.memory_space<vmem>>, vector<6x256xbf16>
    %cst_43 = arith.constant dense<0.000000e+00> : vector<8x256xf32>
    %68 = tpu.matmul %2, %67, %cst_43 {dimension_numbers = #tpu.dot_dimension_numbers<[1], [0], [0], [1], [0, 0, 1, 1], [], []>} : vector<8x6xbf16>, vector<6x256xbf16>, vector<8x256xf32> -> vector<8x256xf32>
    %69 = arith.addf %66, %68 : vector<8x256xf32>
    %c0_44 = arith.constant 0 : index
    %c0_45 = arith.constant 0 : index
    %70 = vector.load %arg16[%c0_44, %c0_45] : memref<5x256xbf16, #tpu.memory_space<vmem>>, vector<5x256xbf16>
    %cst_46 = arith.constant dense<0.000000e+00> : vector<1x256xf32>
    %71 = tpu.matmul %13, %70, %cst_46 {dimension_numbers = #tpu.dot_dimension_numbers<[1], [0], [0], [1], [0, 0, 1, 1], [], []>} : vector<1x5xbf16>, vector<5x256xbf16>, vector<1x256xf32> -> vector<1x256xf32>
    %c0_47 = arith.constant 0 : index
    %c0_48 = arith.constant 0 : index
    %72 = vector.load %arg17[%c0_47, %c0_48] : memref<1x256xf32, #tpu.memory_space<vmem>>, vector<1x256xf32>
    %73 = arith.addf %71, %72 : vector<1x256xf32>
    %74 = vector.shape_cast %69 : vector<8x256xf32> to vector<1x8x256xf32>
    %75 = vector.shape_cast %73 : vector<1x256xf32> to vector<1x1x256xf32>
    %76 = vector.broadcast %75 : vector<1x1x256xf32> to vector<1x8x256xf32>
    %77 = arith.addf %74, %76 : vector<1x8x256xf32>
    %cst_49 = arith.constant 0.000000e+00 : f32
    %78 = vector.broadcast %cst_49 : f32 to vector<1x8x256xf32>
    %79 = arith.maximumf %77, %78 : vector<1x8x256xf32>
    %80 = vector.shape_cast %79 : vector<1x8x256xf32> to vector<8x256xf32>
    %81 = arith.truncf %80 : vector<8x256xf32> to vector<8x256xbf16>
    %c0_50 = arith.constant 0 : index
    %c0_51 = arith.constant 0 : index
    %82 = vector.load %arg18[%c0_50, %c0_51] : memref<128x128xbf16, #tpu.memory_space<vmem>>, vector<128x128xbf16>
    %cst_52 = arith.constant dense<0.000000e+00> : vector<8x128xf32>
    %83 = tpu.matmul %64, %82, %cst_52 {dimension_numbers = #tpu.dot_dimension_numbers<[1], [0], [0], [1], [0, 0, 1, 1], [], []>} : vector<8x128xbf16>, vector<128x128xbf16>, vector<8x128xf32> -> vector<8x128xf32>
    %c0_53 = arith.constant 0 : index
    %c0_54 = arith.constant 0 : index
    %84 = vector.load %arg19[%c0_53, %c0_54] : memref<256x128xbf16, #tpu.memory_space<vmem>>, vector<256x128xbf16>
    %cst_55 = arith.constant dense<0.000000e+00> : vector<8x128xf32>
    %85 = tpu.matmul %81, %84, %cst_55 {dimension_numbers = #tpu.dot_dimension_numbers<[1], [0], [0], [1], [0, 0, 1, 1], [], []>} : vector<8x256xbf16>, vector<256x128xbf16>, vector<8x128xf32> -> vector<8x128xf32>
    %86 = arith.addf %83, %85 : vector<8x128xf32>
    %c0_56 = arith.constant 0 : index
    %c0_57 = arith.constant 0 : index
    %87 = vector.load %arg20[%c0_56, %c0_57] : memref<1x128xf32, #tpu.memory_space<vmem>>, vector<1x128xf32>
    %88 = vector.broadcast %87 : vector<1x128xf32> to vector<8x128xf32>
    %89 = arith.addf %86, %88 : vector<8x128xf32>
    %90 = vector.shape_cast %89 : vector<8x128xf32> to vector<1x8x128xf32>
    %c0_58 = arith.constant 0 : index
    %c0_59 = arith.constant 0 : index
    %c0_60 = arith.constant 0 : index
    %91 = vector.load %arg21[%c0_58, %c0_59, %c0_60] : memref<1x8x128xf32, #tpu.memory_space<vmem>>, vector<1x8x128xf32>
    tpu.vector_store %arg21[%c0_58, %c0_59, %c0_60], %90 {strides = array<i32>} : memref<1x8x128xf32, #tpu.memory_space<vmem>>, vector<1x8x128xf32>,
    return
  }
  func.func @transform_0(%arg0: i32) -> (i32, i32, i32) {
    %c0_i32 = arith.constant 0 : i32
    %c0_i32_0 = arith.constant 0 : i32
    %c0_i32_1 = arith.constant 0 : i32
    return %arg0, %c0_i32, %c0_i32_0 : i32, i32, i32
  }
  func.func @transform_1(%arg0: i32) -> (i32, i32, i32) {
    %c0_i32 = arith.constant 0 : i32
    %c0_i32_0 = arith.constant 0 : i32
    %c0_i32_1 = arith.constant 0 : i32
    return %arg0, %c0_i32, %c0_i32_0 : i32, i32, i32
  }
  func.func @transform_2(%arg0: i32) -> (i32, i32, i32) {
    %c0_i32 = arith.constant 0 : i32
    %c0_i32_0 = arith.constant 0 : i32
    %c0_i32_1 = arith.constant 0 : i32
    return %arg0, %c0_i32, %c0_i32_0 : i32, i32, i32
  }
  func.func @transform_3(%arg0: i32) -> (i32, i32, i32) {
    %c0_i32 = arith.constant 0 : i32
    %c0_i32_0 = arith.constant 0 : i32
    %c0_i32_1 = arith.constant 0 : i32
    return %arg0, %c0_i32, %c0_i32_0 : i32, i32, i32
  }
  func.func @transform_4(%arg0: i32) -> (i32, i32, i32) {
    %c0_i32 = arith.constant 0 : i32
    %c0_i32_0 = arith.constant 0 : i32
    %c0_i32_1 = arith.constant 0 : i32
    return %arg0, %c0_i32, %c0_i32_0 : i32, i32, i32
  }
  func.func @transform_5(%arg0: i32) -> (i32, i32) {
    %c0_i32 = arith.constant 0 : i32
    %c0_i32_0 = arith.constant 0 : i32
    %c0_i32_1 = arith.constant 0 : i32
    return %c0_i32, %c0_i32_0 : i32, i32
  }
  func.func @transform_6(%arg0: i32) -> (i32, i32) {
    %c0_i32 = arith.constant 0 : i32
    %c0_i32_0 = arith.constant 0 : i32
    %c0_i32_1 = arith.constant 0 : i32
    return %c0_i32, %c0_i32_0 : i32, i32
  }
  func.func @transform_7(%arg0: i32) -> (i32, i32) {
    %c0_i32 = arith.constant 0 : i32
    %c0_i32_0 = arith.constant 0 : i32
    %c0_i32_1 = arith.constant 0 : i32
    return %c0_i32, %c0_i32_0 : i32, i32
  }
  func.func @transform_8(%arg0: i32) -> (i32, i32) {
    %c0_i32 = arith.constant 0 : i32
    %c0_i32_0 = arith.constant 0 : i32
    %c0_i32_1 = arith.constant 0 : i32
    return %c0_i32, %c0_i32_0 : i32, i32
  }
  func.func @transform_9(%arg0: i32) -> (i32, i32) {
    %c0_i32 = arith.constant 0 : i32
    %c0_i32_0 = arith.constant 0 : i32
    %c0_i32_1 = arith.constant 0 : i32
    return %c0_i32, %c0_i32_0 : i32, i32
  }
  func.func @transform_10(%arg0: i32) -> (i32, i32) {
    %c0_i32 = arith.constant 0 : i32
    %c0_i32_0 = arith.constant 0 : i32
    %c0_i32_1 = arith.constant 0 : i32
    return %c0_i32, %c0_i32_0 : i32, i32
  }
  func.func @transform_11(%arg0: i32) -> (i32, i32) {
    %c0_i32 = arith.constant 0 : i32
    %c0_i32_0 = arith.constant 0 : i32
    %c0_i32_1 = arith.constant 0 : i32
    return %c0_i32, %c0_i32_0 : i32, i32
  }
  func.func @transform_12(%arg0: i32) -> (i32, i32) {
    %c0_i32 = arith.constant 0 : i32
    %c0_i32_0 = arith.constant 0 : i32
    %c0_i32_1 = arith.constant 0 : i32
    return %c0_i32, %c0_i32_0 : i32, i32
  }
  func.func @transform_13(%arg0: i32) -> (i32, i32) {
    %c0_i32 = arith.constant 0 : i32
    %c0_i32_0 = arith.constant 0 : i32
    %c0_i32_1 = arith.constant 0 : i32
    return %c0_i32, %c0_i32_0 : i32, i32
  }
  func.func @transform_14(%arg0: i32) -> (i32, i32) {
    %c0_i32 = arith.constant 0 : i32
    %c0_i32_0 = arith.constant 0 : i32
    %c0_i32_1 = arith.constant 0 : i32
    return %c0_i32, %c0_i32_0 : i32, i32
  }
  func.func @transform_15(%arg0: i32) -> (i32, i32) {
    %c0_i32 = arith.constant 0 : i32
    %c0_i32_0 = arith.constant 0 : i32
    %c0_i32_1 = arith.constant 0 : i32
    return %c0_i32, %c0_i32_0 : i32, i32
  }
  func.func @transform_16(%arg0: i32) -> (i32, i32) {
    %c0_i32 = arith.constant 0 : i32
    %c0_i32_0 = arith.constant 0 : i32
    %c0_i32_1 = arith.constant 0 : i32
    return %c0_i32, %c0_i32_0 : i32, i32
  }
  func.func @transform_17(%arg0: i32) -> (i32, i32) {
    %c0_i32 = arith.constant 0 : i32
    %c0_i32_0 = arith.constant 0 : i32
    %c0_i32_1 = arith.constant 0 : i32
    return %c0_i32, %c0_i32_0 : i32, i32
  }
  func.func @transform_18(%arg0: i32) -> (i32, i32) {
    %c0_i32 = arith.constant 0 : i32
    %c0_i32_0 = arith.constant 0 : i32
    %c0_i32_1 = arith.constant 0 : i32
    return %c0_i32, %c0_i32_0 : i32, i32
  }
  func.func @transform_19(%arg0: i32) -> (i32, i32) {
    %c0_i32 = arith.constant 0 : i32
    %c0_i32_0 = arith.constant 0 : i32
    %c0_i32_1 = arith.constant 0 : i32
    return %c0_i32, %c0_i32_0 : i32, i32
  }
  func.func @transform_20(%arg0: i32) -> (i32, i32, i32) {
    %c0_i32 = arith.constant 0 : i32
    %c0_i32_0 = arith.constant 0 : i32
    %c0_i32_1 = arith.constant 0 : i32
    return %arg0, %c0_i32, %c0_i32_0 : i32, i32, i32
  }
}

module attributes {stable_mosaic.version = 11 : i64} {
  func.func @_frozen_treatformer_kernel(%arg0: i32, %arg1: memref<1x8x6xf32, #tpu.memory_space<vmem>>, %arg2: memref<1x8x6xf32, #tpu.memory_space<vmem>>, %arg3: memref<1x8x3xf32, #tpu.memory_space<vmem>>, %arg4: memref<1x8x1xf32, #tpu.memory_space<vmem>>, %arg5: memref<1x1x5xf32, #tpu.memory_space<vmem>>, %arg6: memref<6x512xbf16, #tpu.memory_space<vmem>>, %arg7: memref<6x512xbf16, #tpu.memory_space<vmem>>, %arg8: memref<3x512xbf16, #tpu.memory_space<vmem>>, %arg9: memref<1x512xf32, #tpu.memory_space<vmem>>, %arg10: memref<5x512xbf16, #tpu.memory_space<vmem>>, %arg11: memref<1x512xf32, #tpu.memory_space<vmem>>, %arg12: memref<128x128xbf16, #tpu.memory_space<vmem>>, %arg13: memref<1x128xf32, #tpu.memory_space<vmem>>, %arg14: memref<128x256xbf16, #tpu.memory_space<vmem>>, %arg15: memref<6x256xbf16, #tpu.memory_space<vmem>>, %arg16: memref<5x256xbf16, #tpu.memory_space<vmem>>, %arg17: memref<1x256xf32, #tpu.memory_space<vmem>>, %arg18: memref<128x128xbf16, #tpu.memory_space<vmem>>, %arg19: memref<256x128xbf16, #tpu.memory_space<vmem>>, %arg20: memref<1x128xf32, #tpu.memory_space<vmem>>, %arg21: memref<1x8x128xf32, #tpu.memory_space<vmem>>) attributes {dimension_semantics = [#tpu.dimension_semantics<parallel>], iteration_bounds = array<i64: 2>, scalar_prefetch = 0 : i64, scratch_operands = 0 : i64, tpu.core_type = #tpu.core_type<tc>, window_params = [{transform_indices = @transform_0, window_bounds = array<i64: 1, 8, 6>}, {transform_indices = @transform_1, window_bounds = array<i64: 1, 8, 6>}, {transform_indices = @transform_2, window_bounds = array<i64: 1, 8, 3>}, {transform_indices = @transform_3, window_bounds = array<i64: 1, 8, 1>}, {transform_indices = @transform_4, window_bounds = array<i64: 1, 1, 5>}, {pipeline_mode = #tpu.pipeline_mode<synchronous>, transform_indices = @transform_5, window_bounds = array<i64: 6, 512>}, {pipeline_mode = #tpu.pipeline_mode<synchronous>, transform_indices = @transform_6, window_bounds = array<i64: 6, 512>}, {pipeline_mode = #tpu.pipeline_mode<synchronous>, transform_indices = @transform_7, window_bounds = array<i64: 3, 512>}, {pipeline_mode = #tpu.pipeline_mode<synchronous>, transform_indices = @transform_8, window_bounds = array<i64: 1, 512>}, {pipeline_mode = #tpu.pipeline_mode<synchronous>, transform_indices = @transform_9, window_bounds = array<i64: 5, 512>}, {pipeline_mode = #tpu.pipeline_mode<synchronous>, transform_indices = @transform_10, window_bounds = array<i64: 1, 512>}, {pipeline_mode = #tpu.pipeline_mode<synchronous>, transform_indices = @transform_11, window_bounds = array<i64: 128, 128>}, {pipeline_mode = #tpu.pipeline_mode<synchronous>, transform_indices = @transform_12, window_bounds = array<i64: 1, 128>}, {pipeline_mode = #tpu.pipeline_mode<synchronous>, transform_indices = @transform_13, window_bounds = array<i64: 128, 256>}, {pipeline_mode = #tpu.pipeline_mode<synchronous>, transform_indices = @transform_14, window_bounds = array<i64: 6, 256>}, {pipeline_mode = #tpu.pipeline_mode<synchronous>, transform_indices = @transform_15, window_bounds = array<i64: 5, 256>}, {pipeline_mode = #tpu.pipeline_mode<synchronous>, transform_indices = @transform_16, window_bounds = array<i64: 1, 256>}, {pipeline_mode = #tpu.pipeline_mode<synchronous>, transform_indices = @transform_17, window_bounds = array<i64: 128, 128>}, {pipeline_mode = #tpu.pipeline_mode<synchronous>, transform_indices = @transform_18, window_bounds = array<i64: 256, 128>}, {pipeline_mode = #tpu.pipeline_mode<synchronous>, transform_indices = @transform_19, window_bounds = array<i64: 1, 128>}, {transform_indices = @transform_20, window_bounds = array<i64: 1, 8, 128>}]} {
    %c0 = arith.constant 0 : index
    %c0_0 = arith.constant 0 : index
    %c0_1 = arith.constant 0 : index
    %0 = vector.load %arg1[%c0, %c0_0, %c0_1] : memref<1x8x6xf32, #tpu.memory_space<vmem>>, vector<1x8x6xf32>
    %1 = vector.shape_cast %0 : vector<1x8x6xf32> to vector<8x6xf32>
    %2 = arith.truncf %1 : vector<8x6xf32> to vector<8x6xbf16>
    %c0_2 = arith.constant 0 : index
    %c0_3 = arith.constant 0 : index
    %c0_4 = arith.constant 0 : index
    %3 = vector.load %arg2[%c0_2, %c0_3, %c0_4] : memref<1x8x6xf32, #tpu.memory_space<vmem>>, vector<1x8x6xf32>
    %4 = vector.shape_cast %3 : vector<1x8x6xf32> to vector<8x6xf32>
    %5 = arith.truncf %4 : vector<8x6xf32> to vector<8x6xbf16>
    %c0_5 = arith.constant 0 : index
    %c0_6 = arith.constant 0 : index
    %c0_7 = arith.constant 0 : index
    %6 = vector.load %arg3[%c0_5, %c0_6, %c0_7] : memref<1x8x3xf32, #tpu.memory_space<vmem>>, vector<1x8x3xf32>
    %7 = vector.shape_cast %6 : vector<1x8x3xf32> to vector<8x3xf32>
    %8 = arith.truncf %7 : vector<8x3xf32> to vector<8x3xbf16>
    %c0_8 = arith.constant 0 : index
    %c0_9 = arith.constant 0 : index
    %c0_10 = arith.constant 0 : index
    %9 = vector.load %arg4[%c0_8, %c0_9, %c0_10] : memref<1x8x1xf32, #tpu.memory_space<vmem>>, vector<1x8x1xf32>
    %10 = vector.shape_cast %9 : vector<1x8x1xf32> to vector<8x1xf32>
    %c0_11 = arith.constant 0 : index
    %c0_12 = arith.constant 0 : index
    %c0_13 = arith.constant 0 : index
    %11 = vector.load %arg5[%c0_11, %c0_12, %c0_13] : memref<1x1x5xf32, #tpu.memory_space<vmem>>, vector<1x1x5xf32>
    %12 = vector.shape_cast %11 : vector<1x1x5xf32> to vector<1x5xf32>
    %13 = arith.truncf %12 : vector<1x5xf32> to vector<1x5xbf16>
    %c0_14 = arith.constant 0 : index
    %c0_15 = arith.constant 0 : index
    %14 = vector.load %arg6[%c0_14, %c0_15] : memref<6x512xbf16, #tpu.memory_space<vmem>>, vector<6x512xbf16>
    %cst = arith.constant dense<0.000000e+00> : vector<8x512xf32>
    %15 = tpu.matmul %2, %14, %cst {dimension_numbers = #tpu.dot_dimension_numbers<[1], [0], [0], [1], [0, 0, 1, 1], [], []>} : vector<8x6xbf16>, vector<6x512xbf16>, vector<8x512xf32> -> vector<8x512xf32>
    %c0_16 = arith.constant 0 : index
    %c0_17 = arith.constant 0 : index
    %16 = vector.load %arg7[%c0_16, %c0_17] : memref<6x512xbf16, #tpu.memory_space<vmem>>, vector<6x512xbf16>
    %cst_18 = arith.constant dense<0.000000e+00> : vector<8x512xf32>
    %17 = tpu.matmul %5, %16, %cst_18 {dimension_numbers = #tpu.dot_dimension_numbers<[1], [0], [0], [1], [0, 0, 1, 1], [], []>} : vector<8x6xbf16>, vector<6x512xbf16>, vector<8x512xf32> -> vector<8x512xf32>
    %18 = arith.addf %15, %17 : vector<8x512xf32>
    %c0_19 = arith.constant 0 : index
    %c0_20 = arith.constant 0 : index
    %19 = vector.load %arg8[%c0_19, %c0_20] : memref<3x512xbf16, #tpu.memory_space<vmem>>, vector<3x512xbf16>
    %cst_21 = arith.constant dense<0.000000e+00> : vector<8x512xf32>
    %20 = tpu.matmul %8, %19, %cst_21 {dimension_numbers = #tpu.dot_dimension_numbers<[1], [0], [0], [1], [0, 0, 1, 1], [], []>} : vector<8x3xbf16>, vector<3x512xbf16>, vector<8x512xf32> -> vector<8x512xf32>
    %21 = arith.addf %18, %20 : vector<8x512xf32>
    %c0_22 = arith.constant 0 : index
    %c0_23 = arith.constant 0 : index
    %22 = vector.load %arg9[%c0_22, %c0_23] : memref<1x512xf32, #tpu.memory_space<vmem>>, vector<1x512xf32>
    %23 = vector.broadcast %10 : vector<8x1xf32> to vector<8x512xf32>
    %24 = vector.broadcast %22 : vector<1x512xf32> to vector<8x512xf32>
    %25 = arith.mulf %23, %24 : vector<8x512xf32>
    %26 = arith.addf %21, %25 : vector<8x512xf32>
    %c0_24 = arith.constant 0 : index
    %c0_25 = arith.constant 0 : index
    %27 = vector.load %arg10[%c0_24, %c0_25] : memref<5x512xbf16, #tpu.memory_space<vmem>>, vector<5x512xbf16>
    %cst_26 = arith.constant dense<0.000000e+00> : vector<1x512xf32>
    %28 = tpu.matmul %13, %27, %cst_26 {dimension_numbers = #tpu.dot_dimension_numbers<[1], [0], [0], [1], [0, 0, 1, 1], [], []>} : vector<1x5xbf16>, vector<5x512xbf16>, vector<1x512xf32> -> vector<1x512xf32>
    %c0_27 = arith.constant 0 : index
    %c0_28 = arith.constant 0 : index
    %29 = vector.load %arg11[%c0_27, %c0_28] : memref<1x512xf32, #tpu.memory_space<vmem>>, vector<1x512xf32>
    %30 = arith.addf %28, %29 : vector<1x512xf32>
    %31 = vector.shape_cast %26 : vector<8x512xf32> to vector<1x8x512xf32>
    %32 = vector.shape_cast %30 : vector<1x512xf32> to vector<1x1x512xf32>
    %33 = vector.broadcast %32 : vector<1x1x512xf32> to vector<1x8x512xf32>
    %34 = arith.addf %31, %33 : vector<1x8x512xf32>
    %35 = vector.extract_strided_slice %34 {offsets = [0, 0, 0], sizes = [1, 8, 128], strides = [1, 1, 1]} : vector<1x8x512xf32> to vector<1x8x128xf32>
    %36 = vector.extract_strided_slice %34 {offsets = [0, 0, 128], sizes = [1, 8, 128], strides = [1, 1, 1]} : vector<1x8x512xf32> to vector<1x8x128xf32>
    %37 = arith.truncf %36 : vector<1x8x128xf32> to vector<1x8x128xbf16>
    %38 = vector.extract_strided_slice %34 {offsets = [0, 0, 256], sizes = [1, 8, 128], strides = [1, 1, 1]} : vector<1x8x512xf32> to vector<1x8x128xf32>
    %39 = arith.truncf %38 : vector<1x8x128xf32> to vector<1x8x128xbf16>
    %40 = vector.extract_strided_slice %34 {offsets = [0, 0, 384], sizes = [1, 8, 128], strides = [1, 1, 1]} : vector<1x8x512xf32> to vector<1x8x128xf32>
    %41 = arith.truncf %40 : vector<1x8x128xf32> to vector<1x8x128xbf16>
    %cst_29 = arith.constant dense<0.000000e+00> : vector<1x8x8xf32>
    %42 = tpu.matmul %37, %39, %cst_29 {dimension_numbers = #tpu.dot_dimension_numbers<[2], [2], [1], [1], [0, 0, 0, 1, 1, 1], [0], [0]>} : vector<1x8x128xbf16>, vector<1x8x128xbf16>, vector<1x8x8xf32> -> vector<1x8x8xf32>
    %cst_30 = arith.constant dense<0xFF800000> : vector<1x8xf32>
    %43 = vector.multi_reduction <maximumf>, %42, %cst_30 [2] : vector<1x8x8xf32> to vector<1x8xf32>
    %44 = vector.shape_cast %43 : vector<1x8xf32> to vector<1x8x1xf32>
    %45 = vector.broadcast %44 : vector<1x8x1xf32> to vector<1x8x8xf32>
    %46 = arith.subf %42, %45 : vector<1x8x8xf32>
    %47 = math.exp %46 : vector<1x8x8xf32>
    %cst_31 = arith.constant dense<0.000000e+00> : vector<1x8xf32>
    %48 = vector.multi_reduction <add>, %47, %cst_31 [2] : vector<1x8x8xf32> to vector<1x8xf32>
    %49 = vector.shape_cast %48 : vector<1x8xf32> to vector<1x8x1xf32>
    %50 = tpu.reciprocal %49 {approx = true} : vector<1x8x1xf32> -> vector<1x8x1xf32>
    %51 = vector.broadcast %50 : vector<1x8x1xf32> to vector<1x8x8xf32>
    %52 = arith.mulf %47, %51 : vector<1x8x8xf32>
    %53 = arith.truncf %52 : vector<1x8x8xf32> to vector<1x8x8xbf16>
    %cst_32 = arith.constant dense<0.000000e+00> : vector<1x8x128xf32>
    %54 = tpu.matmul %53, %41, %cst_32 {dimension_numbers = #tpu.dot_dimension_numbers<[2], [1], [1], [2], [0, 0, 0, 1, 1, 2], [0], [0]>} : vector<1x8x8xbf16>, vector<1x8x128xbf16>, vector<1x8x128xf32> -> vector<1x8x128xf32>
    %55 = arith.addf %35, %54 : vector<1x8x128xf32>
    %56 = vector.shape_cast %55 : vector<1x8x128xf32> to vector<8x128xf32>
    %57 = arith.truncf %56 : vector<8x128xf32> to vector<8x128xbf16>
    %c0_33 = arith.constant 0 : index
    %c0_34 = arith.constant 0 : index
    %58 = vector.load %arg12[%c0_33, %c0_34] : memref<128x128xbf16, #tpu.memory_space<vmem>>, vector<128x128xbf16>
    %cst_35 = arith.constant dense<0.000000e+00> : vector<8x128xf32>
    %59 = tpu.matmul %57, %58, %cst_35 {dimension_numbers = #tpu.dot_dimension_numbers<[1], [0], [0], [1], [0, 0, 1, 1], [], []>} : vector<8x128xbf16>, vector<128x128xbf16>, vector<8x128xf32> -> vector<8x128xf32>
    %c0_36 = arith.constant 0 : index
    %c0_37 = arith.constant 0 : index
    %60 = vector.load %arg13[%c0_36, %c0_37] : memref<1x128xf32, #tpu.memory_space<vmem>>, vector<1x128xf32>
    %61 = vector.broadcast %60 : vector<1x128xf32> to vector<8x128xf32>
    %62 = arith.addf %59, %61 : vector<8x128xf32>
    %63 = math.tanh %62 : vector<8x128xf32>
    %64 = arith.truncf %63 : vector<8x128xf32> to vector<8x128xbf16>
    %c0_38 = arith.constant 0 : index
    %c0_39 = arith.constant 0 : index
    %65 = vector.load %arg14[%c0_38, %c0_39] : memref<128x256xbf16, #tpu.memory_space<vmem>>, vector<128x256xbf16>
    %cst_40 = arith.constant dense<0.000000e+00> : vector<8x256xf32>
    %66 = tpu.matmul %64, %65, %cst_40 {dimension_numbers = #tpu.dot_dimension_numbers<[1], [0], [0], [1], [0, 0, 1, 1], [], []>} : vector<8x128xbf16>, vector<128x256xbf16>, vector<8x256xf32> -> vector<8x256xf32>
    %c0_41 = arith.constant 0 : index
    %c0_42 = arith.constant 0 : index
    %67 = vector.load %arg15[%c0_41, %c0_42] : memref<6x256xbf16, #tpu.memory_space<vmem>>, vector<6x256xbf16>
    %cst_43 = arith.constant dense<0.000000e+00> : vector<8x256xf32>
    %68 = tpu.matmul %2, %67, %cst_43 {dimension_numbers = #tpu.dot_dimension_numbers<[1], [0], [0], [1], [0, 0, 1, 1], [], []>} : vector<8x6xbf16>, vector<6x256xbf16>, vector<8x256xf32> -> vector<8x256xf32>
    %69 = arith.addf %66, %68 : vector<8x256xf32>
    %c0_44 = arith.constant 0 : index
    %c0_45 = arith.constant 0 : index
    %70 = vector.load %arg16[%c0_44, %c0_45] : memref<5x256xbf16, #tpu.memory_space<vmem>>, vector<5x256xbf16>
    %cst_46 = arith.constant dense<0.000000e+00> : vector<1x256xf32>
    %71 = tpu.matmul %13, %70, %cst_46 {dimension_numbers = #tpu.dot_dimension_numbers<[1], [0], [0], [1], [0, 0, 1, 1], [], []>} : vector<1x5xbf16>, vector<5x256xbf16>, vector<1x256xf32> -> vector<1x256xf32>
    %c0_47 = arith.constant 0 : index
    %c0_48 = arith.constant 0 : index
    %72 = vector.load %arg17[%c0_47, %c0_48] : memref<1x256xf32, #tpu.memory_space<vmem>>, vector<1x256xf32>
    %73 = arith.addf %71, %72 : vector<1x256xf32>
    %74 = vector.shape_cast %69 : vector<8x256xf32> to vector<1x8x256xf32>
    %75 = vector.shape_cast %73 : vector<1x256xf32> to vector<1x1x256xf32>
    %76 = vector.broadcast %75 : vector<1x1x256xf32> to vector<1x8x256xf32>
    %77 = arith.addf %74, %76 : vector<1x8x256xf32>
    %cst_49 = arith.constant 0.000000e+00 : f32
    %78 = vector.broadcast %cst_49 : f32 to vector<1x8x256xf32>
    %79 = arith.maximumf %77, %78 : vector<1x8x256xf32>
    %80 = vector.shape_cast %79 : vector<1x8x256xf32> to vector<8x256xf32>
    %81 = arith.truncf %80 : vector<8x256xf32> to vector<8x256xbf16>
    %c0_50 = arith.constant 0 : index
    %c0_51 = arith.constant 0 : index
    %82 = vector.load %arg18[%c0_50, %c0_51] : memref<128x128xbf16, #tpu.memory_space<vmem>>, vector<128x128xbf16>
    %cst_52 = arith.constant dense<0.000000e+00> : vector<8x128xf32>
    %83 = tpu.matmul %64, %82, %cst_52 {dimension_numbers = #tpu.dot_dimension_numbers<[1], [0], [0], [1], [0, 0, 1, 1], [], []>} : vector<8x128xbf16>, vector<128x128xbf16>, vector<8x128xf32> -> vector<8x128xf32>
    %c0_53 = arith.constant 0 : index
    %c0_54 = arith.constant 0 : index
    %84 = vector.load %arg19[%c0_53, %c0_54] : memref<256x128xbf16, #tpu.memory_space<vmem>>, vector<256x128xbf16>
    %cst_55 = arith.constant dense<0.000000e+00> : vector<8x128xf32>
    %85 = tpu.matmul %81, %84, %cst_55 {dimension_numbers = #tpu.dot_dimension_numbers<[1], [0], [0], [1], [0, 0, 1, 1], [], []>} : vector<8x256xbf16>, vector<256x128xbf16>, vector<8x128xf32> -> vector<8x128xf32>
    %86 = arith.addf %83, %85 : vector<8x128xf32>
    %c0_56 = arith.constant 0 : index
    %c0_57 = arith.constant 0 : index
    %87 = vector.load %arg20[%c0_56, %c0_57] : memref<1x128xf32, #tpu.memory_space<vmem>>, vector<1x128xf32>
    %88 = vector.broadcast %87 : vector<1x128xf32> to vector<8x128xf32>
    %89 = arith.addf %86, %88 : vector<8x128xf32>
    %90 = vector.shape_cast %89 : vector<8x128xf32> to vector<1x8x128xf32>
    %c0_58 = arith.constant 0 : index
    %c0_59 = arith.constant 0 : index
    %c0_60 = arith.constant 0 : index
    %91 = vector.load %arg21[%c0_58, %c0_59, %c0_60] : memref<1x8x128xf32, #tpu.memory_space<vmem>>, vector<1x8x128xf32>
    tpu.vector_store %arg21[%c0_58, %c0_59, %c0_60], %90 {strides = array<i32>} : memref<1x8x128xf32, #tpu.memory_space<vmem>>, vector<1x8x128xf32>,
    return
  }
  func.func @transform_0(%arg0: i32) -> (i32, i32, i32) {
    %c0_i32 = arith.constant 0 : i32
    %c0_i32_0 = arith.constant 0 : i32
    %c0_i32_1 = arith.constant 0 : i32
    return %arg0, %c0_i32, %c0_i32_0 : i32, i32, i32
  }
  func.func @transform_1(%arg0: i32) -> (i32, i32, i32) {
    %c0_i32 = arith.constant 0 : i32
    %c0_i32_0 = arith.constant 0 : i32
    %c0_i32_1 = arith.constant 0 : i32
    return %arg0, %c0_i32, %c0_i32_0 : i32, i32, i32
  }
  func.func @transform_2(%arg0: i32) -> (i32, i32, i32) {
    %c0_i32 = arith.constant 0 : i32
    %c0_i32_0 = arith.constant 0 : i32
    %c0_i32_1 = arith.constant 0 : i32
    return %arg0, %c0_i32, %c0_i32_0 : i32, i32, i32
  }
  func.func @transform_3(%arg0: i32) -> (i32, i32, i32) {
    %c0_i32 = arith.constant 0 : i32
    %c0_i32_0 = arith.constant 0 : i32
    %c0_i32_1 = arith.constant 0 : i32
    return %arg0, %c0_i32, %c0_i32_0 : i32, i32, i32
  }
  func.func @transform_4(%arg0: i32) -> (i32, i32, i32) {
    %c0_i32 = arith.constant 0 : i32
    %c0_i32_0 = arith.constant 0 : i32
    %c0_i32_1 = arith.constant 0 : i32
    return %arg0, %c0_i32, %c0_i32_0 : i32, i32, i32
  }
  func.func @transform_5(%arg0: i32) -> (i32, i32) {
    %c0_i32 = arith.constant 0 : i32
    %c0_i32_0 = arith.constant 0 : i32
    %c0_i32_1 = arith.constant 0 : i32
    return %c0_i32, %c0_i32_0 : i32, i32
  }
  func.func @transform_6(%arg0: i32) -> (i32, i32) {
    %c0_i32 = arith.constant 0 : i32
    %c0_i32_0 = arith.constant 0 : i32
    %c0_i32_1 = arith.constant 0 : i32
    return %c0_i32, %c0_i32_0 : i32, i32
  }
  func.func @transform_7(%arg0: i32) -> (i32, i32) {
    %c0_i32 = arith.constant 0 : i32
    %c0_i32_0 = arith.constant 0 : i32
    %c0_i32_1 = arith.constant 0 : i32
    return %c0_i32, %c0_i32_0 : i32, i32
  }
  func.func @transform_8(%arg0: i32) -> (i32, i32) {
    %c0_i32 = arith.constant 0 : i32
    %c0_i32_0 = arith.constant 0 : i32
    %c0_i32_1 = arith.constant 0 : i32
    return %c0_i32, %c0_i32_0 : i32, i32
  }
  func.func @transform_9(%arg0: i32) -> (i32, i32) {
    %c0_i32 = arith.constant 0 : i32
    %c0_i32_0 = arith.constant 0 : i32
    %c0_i32_1 = arith.constant 0 : i32
    return %c0_i32, %c0_i32_0 : i32, i32
  }
  func.func @transform_10(%arg0: i32) -> (i32, i32) {
    %c0_i32 = arith.constant 0 : i32
    %c0_i32_0 = arith.constant 0 : i32
    %c0_i32_1 = arith.constant 0 : i32
    return %c0_i32, %c0_i32_0 : i32, i32
  }
  func.func @transform_11(%arg0: i32) -> (i32, i32) {
    %c0_i32 = arith.constant 0 : i32
    %c0_i32_0 = arith.constant 0 : i32
    %c0_i32_1 = arith.constant 0 : i32
    return %c0_i32, %c0_i32_0 : i32, i32
  }
  func.func @transform_12(%arg0: i32) -> (i32, i32) {
    %c0_i32 = arith.constant 0 : i32
    %c0_i32_0 = arith.constant 0 : i32
    %c0_i32_1 = arith.constant 0 : i32
    return %c0_i32, %c0_i32_0 : i32, i32
  }
  func.func @transform_13(%arg0: i32) -> (i32, i32) {
    %c0_i32 = arith.constant 0 : i32
    %c0_i32_0 = arith.constant 0 : i32
    %c0_i32_1 = arith.constant 0 : i32
    return %c0_i32, %c0_i32_0 : i32, i32
  }
  func.func @transform_14(%arg0: i32) -> (i32, i32) {
    %c0_i32 = arith.constant 0 : i32
    %c0_i32_0 = arith.constant 0 : i32
    %c0_i32_1 = arith.constant 0 : i32
    return %c0_i32, %c0_i32_0 : i32, i32
  }
  func.func @transform_15(%arg0: i32) -> (i32, i32) {
    %c0_i32 = arith.constant 0 : i32
    %c0_i32_0 = arith.constant 0 : i32
    %c0_i32_1 = arith.constant 0 : i32
    return %c0_i32, %c0_i32_0 : i32, i32
  }
  func.func @transform_16(%arg0: i32) -> (i32, i32) {
    %c0_i32 = arith.constant 0 : i32
    %c0_i32_0 = arith.constant 0 : i32
    %c0_i32_1 = arith.constant 0 : i32
    return %c0_i32, %c0_i32_0 : i32, i32
  }
  func.func @transform_17(%arg0: i32) -> (i32, i32) {
    %c0_i32 = arith.constant 0 : i32
    %c0_i32_0 = arith.constant 0 : i32
    %c0_i32_1 = arith.constant 0 : i32
    return %c0_i32, %c0_i32_0 : i32, i32
  }
  func.func @transform_18(%arg0: i32) -> (i32, i32) {
    %c0_i32 = arith.constant 0 : i32
    %c0_i32_0 = arith.constant 0 : i32
    %c0_i32_1 = arith.constant 0 : i32
    return %c0_i32, %c0_i32_0 : i32, i32
  }
  func.func @transform_19(%arg0: i32) -> (i32, i32) {
    %c0_i32 = arith.constant 0 : i32
    %c0_i32_0 = arith.constant 0 : i32
    %c0_i32_1 = arith.constant 0 : i32
    return %c0_i32, %c0_i32_0 : i32, i32
  }
  func.func @transform_20(%arg0: i32) -> (i32, i32, i32) {
    %c0_i32 = arith.constant 0 : i32
    %c0_i32_0 = arith.constant 0 : i32
    %c0_i32_1 = arith.constant 0 : i32
    return %arg0, %c0_i32, %c0_i32_0 : i32, i32, i32
  }
}

</mosaic_0001>

<llo_original>
// kernel: tpu_custom_call.1
$region0: #{tpu_custom_call.1}
  #allocation0 [shape = 'u32[]', space=smem, size = 0x4, offset = 0x4, fixed_abs, tag = 'smem constant byte address 0x4 - core index']
  #allocation1 [shape = 'u32[144,128]{1,0:T(1,128)}', space=vmem, size = 0x12000, scoped, tag = 'internal scratch']
  %s0 = inlined_call_operand.vmem [shape: f32[2,8,6], index: 0, kind: input, shape index: {}]
  %s1 = inlined_call_operand.vmem [shape: f32[2,8,6], index: 1, kind: input, shape index: {}]
  %s2 = inlined_call_operand.vmem [shape: f32[2,8,3], index: 2, kind: input, shape index: {}]
  %s3 = inlined_call_operand.vmem [shape: f32[2,8,1], index: 3, kind: input, shape index: {}]
  %s4 = inlined_call_operand.hbm [shape: f32[2,1,5], index: 4, kind: input, shape index: {}]
  %s5 = inlined_call_operand.vmem [shape: bf16[6,512], index: 5, kind: input, shape index: {}]
  %s6 = inlined_call_operand.hbm [shape: bf16[6,512], index: 6, kind: input, shape index: {}]
  %s7 = inlined_call_operand.hbm [shape: bf16[3,512], index: 7, kind: input, shape index: {}]
  %s8 = inlined_call_operand.hbm [shape: f32[1,512], index: 8, kind: input, shape index: {}]
  %s9 = inlined_call_operand.hbm [shape: bf16[5,512], index: 9, kind: input, shape index: {}]
  %s10 = inlined_call_operand.hbm [shape: f32[1,512], index: 10, kind: input, shape index: {}]
  %s11 = inlined_call_operand.hbm [shape: bf16[128,128], index: 11, kind: input, shape index: {}]
  %s12 = inlined_call_operand.hbm [shape: f32[1,128], index: 12, kind: input, shape index: {}]
  %s13 = inlined_call_operand.vmem [shape: bf16[128,256], index: 13, kind: input, shape index: {}]
  %s14 = inlined_call_operand.hbm [shape: bf16[6,256], index: 14, kind: input, shape index: {}]
  %s15 = inlined_call_operand.vmem [shape: bf16[5,256], index: 15, kind: input, shape index: {}]
  %s16 = inlined_call_operand.vmem [shape: f32[1,256], index: 16, kind: input, shape index: {}]
  %s17 = inlined_call_operand.hbm [shape: bf16[128,128], index: 17, kind: input, shape index: {}]
  %s18 = inlined_call_operand.hbm [shape: bf16[256,128], index: 18, kind: input, shape index: {}]
  %s19 = inlined_call_operand.vmem [shape: f32[1,128], index: 19, kind: input, shape index: {}]
  %s20 = inlined_call_operand.hbm [shape: f32[2,8,128], index: 20, kind: output, shape index: {}]
  %s21 = sld [smem:[#allocation0]]
  $region157: #{tpu_custom_call.1} parent=0
    _
  %s23 = ssub.s32 1, %s21
  %s24 = scalar_select 0, %s23, %s21
  $region1: #{tpu_custom_call.1} parent=0
    #allocation2 [shape = 'u8[1024]{0}', space=vmem, size = 0x400, scoped, tag = 'input window, operand 4']
    #allocation3 [shape = 's32[2]{0}', space=sflag, size = 0x8, scoped, tag = 'scoped memory for tpu_custom_call.1']
    #allocation4 [shape = 's32[2]{0}', space=sflag, size = 0x8, scoped, tag = 'scoped memory for tpu_custom_call.1']
    #allocation5 [shape = 'u8[8192]{0}', space=vmem, size = 0x2000, scoped, tag = 'input window, operand 6, single buffered']
    #allocation6 [shape = 's32[1]{0}', space=sflag, size = 0x4, scoped, tag = 'scoped memory for tpu_custom_call.1']
    #allocation7 [shape = 'u8[4096]{0}', space=vmem, size = 0x1000, scoped, tag = 'input window, operand 7, single buffered']
    #allocation8 [shape = 'u8[2048]{0}', space=vmem, size = 0x800, scoped, tag = 'input window, operand 8, single buffered']
    #allocation9 [shape = 's32[1]{0}', space=sflag, size = 0x4, scoped, tag = 'scoped memory for tpu_custom_call.1']
    #allocation10 [shape = 'u8[8192]{0}', space=vmem, size = 0x2000, scoped, tag = 'input window, operand 9, single buffered']
    #allocation11 [shape = 'u8[2048]{0}', space=vmem, size = 0x800, scoped, tag = 'input window, operand 10, single buffered']
    #allocation12 [shape = 's32[1]{0}', space=sflag, size = 0x4, scoped, tag = 'scoped memory for tpu_custom_call.1']
    #allocation13 [shape = 'u8[32768]{0}', space=vmem, size = 0x8000, scoped, tag = 'input window, operand 11, single buffered']
    #allocation14 [shape = 'u8[512]{0}', space=vmem, size = 0x400, scoped, tag = 'input window, operand 12, single buffered']
    #allocation15 [shape = 's32[1]{0}', space=sflag, size = 0x4, scoped, tag = 'scoped memory for tpu_custom_call.1']
    #allocation16 [shape = 'u8[4096]{0}', space=vmem, size = 0x1000, scoped, tag = 'input window, operand 14, single buffered']
    #allocation17 [shape = 'u8[32768]{0}', space=vmem, size = 0x8000, scoped, tag = 'input window, operand 17, single buffered']
    #allocation18 [shape = 's32[1]{0}', space=sflag, size = 0x4, scoped, tag = 'scoped memory for tpu_custom_call.1']
    #allocation19 [shape = 'u8[65536]{0}', space=vmem, size = 0x10000, scoped, tag = 'input window, operand 18, single buffered']
    #allocation20 [shape = 'u8[8192]{0}', space=vmem, size = 0x2000, scoped, tag = 'output window, operand 0']
    %25 = vsyncpa [#allocation3], 0
    %s26 = scalar_lea.sflag [#allocation3], 1
    %27 = vsyncpa %s26, 0
    %28 = vsyncpa [#allocation6], 0
    %29 = vsyncpa [#allocation9], 0
    %30 = vsyncpa [#allocation12], 0
    %31 = vsyncpa [#allocation15], 0
    %32 = vsyncpa [#allocation18], 0
    %33 = vsyncpa [#allocation4], 0
    %s34 = scalar_lea.sflag [#allocation4], 1
    %35 = vsyncpa %s34, 0
    loop: start=0, step=1, limit=4
    $region2: #{tpu_custom_call.1} parent=1 // loop_pre_header
      _
    $region3: #{tpu_custom_call.1} parent=1 // loop_header
      %s37 = sphi 0, %s41
      %p38 = scmp.ge.s32.totalorder %s37, 4
      %s47 = sphi 0, %s49
      %s50 = sphi 0, %s47
      %s51 = sphi 0, %s50
      %s67 = sphi 0, %s51
      %s73 = sphi 0, %s75
      %s76 = sphi 0, %s73
      %s77 = sphi 0, %s76
      %s93 = sphi 0, %s77
      %s99 = sphi 0, %s101
      %s102 = sphi 0, %s99
      %s103 = sphi 0, %s102
      %s119 = sphi 0, %s103
      %s125 = sphi 0, %s127
      %s128 = sphi 0, %s125
      %s129 = sphi 0, %s128
      %s145 = sphi 0, %s129
      %s151 = sphi 0, %s153
      %s154 = sphi 0, %s151
      %s155 = sphi 0, %s154
      %s171 = sphi 0, %s155
      %s175 = sphi 0, %s175
      %s177 = sphi 0, %s175
      %s178 = sphi 0, %s177
      %s192 = sphi 0, %s178
      %s196 = sphi 0, %s196
      %s198 = sphi 0, %s196
      %s199 = sphi 0, %s198
      %s213 = sphi 0, %s199
      %s217 = sphi 0, %s217
      %s219 = sphi 0, %s217
      %s220 = sphi 0, %s219
      %s234 = sphi 0, %s220
      %s238 = sphi 0, %s238
      %s240 = sphi 0, %s238
      %s241 = sphi 0, %s240
      %s255 = sphi 0, %s241
      %s259 = sphi 0, %s259
      %s261 = sphi 0, %s259
      %s262 = sphi 0, %s261
      %s276 = sphi 0, %s262
      %s280 = sphi 0, %s280
      %s282 = sphi 0, %s280
      %s283 = sphi 0, %s282
      %s297 = sphi 0, %s283
      %s301 = sphi 0, %s301
      %s303 = sphi 0, %s301
      %s304 = sphi 0, %s303
      %s318 = sphi 0, %s304
      %s322 = sphi 0, %s322
      %s324 = sphi 0, %s322
      %s325 = sphi 0, %s324
      %s339 = sphi 0, %s325
      %s343 = sphi 0, %s343
      %s345 = sphi 0, %s343
      %s346 = sphi 0, %s345
      %s360 = sphi 0, %s346
      %s364 = sphi 0, %s364
      %s366 = sphi 0, %s364
      %s367 = sphi 0, %s366
      %s381 = sphi 0, %s367
      %s385 = sphi 0, %s385
      %s387 = sphi 0, %s385
      %s388 = sphi 0, %s387
      %s402 = sphi 0, %s388
      %s406 = sphi 0, %s406
      %s408 = sphi 0, %s406
      %s409 = sphi 0, %s408
      %s423 = sphi 0, %s409
      %s427 = sphi 0, %s427
      %s429 = sphi 0, %s427
      %s430 = sphi 0, %s429
      %s444 = sphi 0, %s430
      %s448 = sphi 0, %s448
      %s450 = sphi 0, %s448
      %s451 = sphi 0, %s450
      %s465 = sphi 0, %s451
      %s469 = sphi 0, %s469
      %s471 = sphi 0, %s469
      %s472 = sphi 0, %s471
      %s486 = sphi 0, %s472
      %s492 = sphi 0, %s494
      %s495 = sphi 0, %s492
      %s496 = sphi 0, %s495
      %s512 = sphi 0, %s496
    $region4: #{tpu_custom_call.1} parent=1 // loop_header_branch
      %40 = sbr.rel (%p38) target = $region8
    $region5: #{tpu_custom_call.1} parent=1 // loop_body
      %s42 = ssub.s32 %s37, 1
      %s43 = ssub.s32 %s37, 2
      %s44 = sadd.s32 %s37, 1
      %s45 = ssub.s32 %s37, %s44
      %p46 = scmp.eq.s32.totalorder %s45, 0
      %s48 = sadd.s32 %s47, 1
      %s49 = scalar_select %p46, %s47, %s48
      %p52 = pneg %p46
      %p53 = scmp.eq.s32.totalorder %s37, 1
      %p54 = por %p52, %p53
      %p55 = scmp.ne.s32.totalorder %s47, %s50
      %p56 = scmp.eq.s32.totalorder %s37, 0
      %p57 = por %p55, %p56
      %p58 = scmp.ne.s32.totalorder %s47, %s50
      %p59 = scmp.eq.s32.totalorder %s42, 1
      %p60 = por %p58, %p59
      %p61 = scmp.ne.s32.totalorder %s50, %s51
      %p62 = scmp.eq.s32.totalorder %s42, 0
      %p63 = por %p61, %p62
      %p64 = scmp.ne.s32.totalorder %s50, %s51
      %p65 = scmp.eq.s32.totalorder %s43, 1
      %p66 = por %p64, %p65
      %p68 = scmp.ne.s32.totalorder %s51, %s67
      %p69 = scmp.eq.s32.totalorder %s43, 0
      %p70 = por %p68, %p69
      %s71 = ssub.s32 %s37, %s44
      %p72 = scmp.eq.s32.totalorder %s71, 0
      %s74 = sadd.s32 %s73, 1
      %s75 = scalar_select %p72, %s73, %s74
      %p78 = pneg %p72
      %p79 = scmp.eq.s32.totalorder %s37, 1
      %p80 = por %p78, %p79
      %p81 = scmp.ne.s32.totalorder %s73, %s76
      %p82 = scmp.eq.s32.totalorder %s37, 0
      %p83 = por %p81, %p82
      %p84 = scmp.ne.s32.totalorder %s73, %s76
      %p85 = scmp.eq.s32.totalorder %s42, 1
      %p86 = por %p84, %p85
      %p87 = scmp.ne.s32.totalorder %s76, %s77
      %p88 = scmp.eq.s32.totalorder %s42, 0
      %p89 = por %p87, %p88
      %p90 = scmp.ne.s32.totalorder %s76, %s77
      %p91 = scmp.eq.s32.totalorder %s43, 1
      %p92 = por %p90, %p91
      %p94 = scmp.ne.s32.totalorder %s77, %s93
      %p95 = scmp.eq.s32.totalorder %s43, 0
      %p96 = por %p94, %p95
      %s97 = ssub.s32 %s37, %s44
      %p98 = scmp.eq.s32.totalorder %s97, 0
      %s100 = sadd.s32 %s99, 1
      %s101 = scalar_select %p98, %s99, %s100
      %p104 = pneg %p98
      %p105 = scmp.eq.s32.totalorder %s37, 1
      %p106 = por %p104, %p105
      %p107 = scmp.ne.s32.totalorder %s99, %s102
      %p108 = scmp.eq.s32.totalorder %s37, 0
      %p109 = por %p107, %p108
      %p110 = scmp.ne.s32.totalorder %s99, %s102
      %p111 = scmp.eq.s32.totalorder %s42, 1
      %p112 = por %p110, %p111
      %p113 = scmp.ne.s32.totalorder %s102, %s103
      %p114 = scmp.eq.s32.totalorder %s42, 0
      %p115 = por %p113, %p114
      %p116 = scmp.ne.s32.totalorder %s102, %s103
      %p117 = scmp.eq.s32.totalorder %s43, 1
      %p118 = por %p116, %p117
      %p120 = scmp.ne.s32.totalorder %s103, %s119
      %p121 = scmp.eq.s32.totalorder %s43, 0
      %p122 = por %p120, %p121
      %s123 = ssub.s32 %s37, %s44
      %p124 = scmp.eq.s32.totalorder %s123, 0
      %s126 = sadd.s32 %s125, 1
      %s127 = scalar_select %p124, %s125, %s126
      %p130 = pneg %p124
      %p131 = scmp.eq.s32.totalorder %s37, 1
      %p132 = por %p130, %p131
      %p133 = scmp.ne.s32.totalorder %s125, %s128
      %p134 = scmp.eq.s32.totalorder %s37, 0
      %p135 = por %p133, %p134
      %p136 = scmp.ne.s32.totalorder %s125, %s128
      %p137 = scmp.eq.s32.totalorder %s42, 1
      %p138 = por %p136, %p137
      %p139 = scmp.ne.s32.totalorder %s128, %s129
      %p140 = scmp.eq.s32.totalorder %s42, 0
      %p141 = por %p139, %p140
      %p142 = scmp.ne.s32.totalorder %s128, %s129
      %p143 = scmp.eq.s32.totalorder %s43, 1
      %p144 = por %p142, %p143
      %p146 = scmp.ne.s32.totalorder %s129, %s145
      %p147 = scmp.eq.s32.totalorder %s43, 0
      %p148 = por %p146, %p147
      %s149 = ssub.s32 %s37, %s44
      %p150 = scmp.eq.s32.totalorder %s149, 0
      %s152 = sadd.s32 %s151, 1
      %s153 = scalar_select %p150, %s151, %s152
      %p156 = pneg %p150
      %p157 = scmp.eq.s32.totalorder %s37, 1
      %p158 = por %p156, %p157
      %p159 = scmp.ne.s32.totalorder %s151, %s154
      %p160 = scmp.eq.s32.totalorder %s37, 0
      %p161 = por %p159, %p160
      %p162 = scmp.ne.s32.totalorder %s151, %s154
      %p163 = scmp.eq.s32.totalorder %s42, 1
      %p164 = por %p162, %p163
      %p165 = scmp.ne.s32.totalorder %s154, %s155
      %p166 = scmp.eq.s32.totalorder %s42, 0
      %p167 = por %p165, %p166
      %p168 = scmp.ne.s32.totalorder %s154, %s155
      %p169 = scmp.eq.s32.totalorder %s43, 1
      %p170 = por %p168, %p169
      %p172 = scmp.ne.s32.totalorder %s155, %s171
      %p173 = scmp.eq.s32.totalorder %s43, 0
      %p174 = por %p172, %p173
      %s176 = sadd.s32 %s175, 1
      %p179 = scmp.eq.s32.totalorder %s37, 1
      %p180 = scmp.ne.s32.totalorder %s175, %s177
      %p181 = scmp.eq.s32.totalorder %s37, 0
      %p182 = por %p180, %p181
      %p183 = scmp.ne.s32.totalorder %s175, %s177
      %p184 = scmp.eq.s32.totalorder %s42, 1
      %p185 = por %p183, %p184
      %p186 = scmp.ne.s32.totalorder %s177, %s178
      %p187 = scmp.eq.s32.totalorder %s42, 0
      %p188 = por %p186, %p187
      %p189 = scmp.ne.s32.totalorder %s177, %s178
      %p190 = scmp.eq.s32.totalorder %s43, 1
      %p191 = por %p189, %p190
      %p193 = scmp.ne.s32.totalorder %s178, %s192
      %p194 = scmp.eq.s32.totalorder %s43, 0
      %p195 = por %p193, %p194
      %s197 = sadd.s32 %s196, 1
      %p200 = scmp.eq.s32.totalorder %s37, 1
      %p201 = scmp.ne.s32.totalorder %s196, %s198
      %p202 = scmp.eq.s32.totalorder %s37, 0
      %p203 = por %p201, %p202
      %p204 = scmp.ne.s32.totalorder %s196, %s198
      %p205 = scmp.eq.s32.totalorder %s42, 1
      %p206 = por %p204, %p205
      %p207 = scmp.ne.s32.totalorder %s198, %s199
      %p208 = scmp.eq.s32.totalorder %s42, 0
      %p209 = por %p207, %p208
      %p210 = scmp.ne.s32.totalorder %s198, %s199
      %p211 = scmp.eq.s32.totalorder %s43, 1
      %p212 = por %p210, %p211
      %p214 = scmp.ne.s32.totalorder %s199, %s213
      %p215 = scmp.eq.s32.totalorder %s43, 0
      %p216 = por %p214, %p215
      %s218 = sadd.s32 %s217, 1
      %p221 = scmp.eq.s32.totalorder %s37, 1
      %p222 = scmp.ne.s32.totalorder %s217, %s219
      %p223 = scmp.eq.s32.totalorder %s37, 0
      %p224 = por %p222, %p223
      %p225 = scmp.ne.s32.totalorder %s217, %s219
      %p226 = scmp.eq.s32.totalorder %s42, 1
      %p227 = por %p225, %p226
      %p228 = scmp.ne.s32.totalorder %s219, %s220
      %p229 = scmp.eq.s32.totalorder %s42, 0
      %p230 = por %p228, %p229
      %p231 = scmp.ne.s32.totalorder %s219, %s220
      %p232 = scmp.eq.s32.totalorder %s43, 1
      %p233 = por %p231, %p232
      %p235 = scmp.ne.s32.totalorder %s220, %s234
      %p236 = scmp.eq.s32.totalorder %s43, 0
      %p237 = por %p235, %p236
      %s239 = sadd.s32 %s238, 1
      %p242 = scmp.eq.s32.totalorder %s37, 1
      %p243 = scmp.ne.s32.totalorder %s238, %s240
      %p244 = scmp.eq.s32.totalorder %s37, 0
      %p245 = por %p243, %p244
      %p246 = scmp.ne.s32.totalorder %s238, %s240
      %p247 = scmp.eq.s32.totalorder %s42, 1
      %p248 = por %p246, %p247
      %p249 = scmp.ne.s32.totalorder %s240, %s241
      %p250 = scmp.eq.s32.totalorder %s42, 0
      %p251 = por %p249, %p250
      %p252 = scmp.ne.s32.totalorder %s240, %s241
      %p253 = scmp.eq.s32.totalorder %s43, 1
      %p254 = por %p252, %p253
      %p256 = scmp.ne.s32.totalorder %s241, %s255
      %p257 = scmp.eq.s32.totalorder %s43, 0
      %p258 = por %p256, %p257
      %s260 = sadd.s32 %s259, 1
      %p263 = scmp.eq.s32.totalorder %s37, 1
      %p264 = scmp.ne.s32.totalorder %s259, %s261
      %p265 = scmp.eq.s32.totalorder %s37, 0
      %p266 = por %p264, %p265
      %p267 = scmp.ne.s32.totalorder %s259, %s261
      %p268 = scmp.eq.s32.totalorder %s42, 1
      %p269 = por %p267, %p268
      %p270 = scmp.ne.s32.totalorder %s261, %s262
      %p271 = scmp.eq.s32.totalorder %s42, 0
      %p272 = por %p270, %p271
      %p273 = scmp.ne.s32.totalorder %s261, %s262
      %p274 = scmp.eq.s32.totalorder %s43, 1
      %p275 = por %p273, %p274
      %p277 = scmp.ne.s32.totalorder %s262, %s276
      %p278 = scmp.eq.s32.totalorder %s43, 0
      %p279 = por %p277, %p278
      %s281 = sadd.s32 %s280, 1
      %p284 = scmp.eq.s32.totalorder %s37, 1
      %p285 = scmp.ne.s32.totalorder %s280, %s282
      %p286 = scmp.eq.s32.totalorder %s37, 0
      %p287 = por %p285, %p286
      %p288 = scmp.ne.s32.totalorder %s280, %s282
      %p289 = scmp.eq.s32.totalorder %s42, 1
      %p290 = por %p288, %p289
      %p291 = scmp.ne.s32.totalorder %s282, %s283
      %p292 = scmp.eq.s32.totalorder %s42, 0
      %p293 = por %p291, %p292
      %p294 = scmp.ne.s32.totalorder %s282, %s283
      %p295 = scmp.eq.s32.totalorder %s43, 1
      %p296 = por %p294, %p295
      %p298 = scmp.ne.s32.totalorder %s283, %s297
      %p299 = scmp.eq.s32.totalorder %s43, 0
      %p300 = por %p298, %p299
      %s302 = sadd.s32 %s301, 1
      %p305 = scmp.eq.s32.totalorder %s37, 1
      %p306 = scmp.ne.s32.totalorder %s301, %s303
      %p307 = scmp.eq.s32.totalorder %s37, 0
      %p308 = por %p306, %p307
      %p309 = scmp.ne.s32.totalorder %s301, %s303
      %p310 = scmp.eq.s32.totalorder %s42, 1
      %p311 = por %p309, %p310
      %p312 = scmp.ne.s32.totalorder %s303, %s304
      %p313 = scmp.eq.s32.totalorder %s42, 0
      %p314 = por %p312, %p313
      %p315 = scmp.ne.s32.totalorder %s303, %s304
      %p316 = scmp.eq.s32.totalorder %s43, 1
      %p317 = por %p315, %p316
      %p319 = scmp.ne.s32.totalorder %s304, %s318
      %p320 = scmp.eq.s32.totalorder %s43, 0
      %p321 = por %p319, %p320
      %s323 = sadd.s32 %s322, 1
      %p326 = scmp.eq.s32.totalorder %s37, 1
      %p327 = scmp.ne.s32.totalorder %s322, %s324
      %p328 = scmp.eq.s32.totalorder %s37, 0
      %p329 = por %p327, %p328
      %p330 = scmp.ne.s32.totalorder %s322, %s324
      %p331 = scmp.eq.s32.totalorder %s42, 1
      %p332 = por %p330, %p331
      %p333 = scmp.ne.s32.totalorder %s324, %s325
      %p334 = scmp.eq.s32.totalorder %s42, 0
      %p335 = por %p333, %p334
      %p336 = scmp.ne.s32.totalorder %s324, %s325
      %p337 = scmp.eq.s32.totalorder %s43, 1
      %p338 = por %p336, %p337
      %p340 = scmp.ne.s32.totalorder %s325, %s339
      %p341 = scmp.eq.s32.totalorder %s43, 0
      %p342 = por %p340, %p341
      %s344 = sadd.s32 %s343, 1
      %p347 = scmp.eq.s32.totalorder %s37, 1
      %p348 = scmp.ne.s32.totalorder %s343, %s345
      %p349 = scmp.eq.s32.totalorder %s37, 0
      %p350 = por %p348, %p349
      %p351 = scmp.ne.s32.totalorder %s343, %s345
      %p352 = scmp.eq.s32.totalorder %s42, 1
      %p353 = por %p351, %p352
      %p354 = scmp.ne.s32.totalorder %s345, %s346
      %p355 = scmp.eq.s32.totalorder %s42, 0
      %p356 = por %p354, %p355
      %p357 = scmp.ne.s32.totalorder %s345, %s346
      %p358 = scmp.eq.s32.totalorder %s43, 1
      %p359 = por %p357, %p358
      %p361 = scmp.ne.s32.totalorder %s346, %s360
      %p362 = scmp.eq.s32.totalorder %s43, 0
      %p363 = por %p361, %p362
      %s365 = sadd.s32 %s364, 1
      %p368 = scmp.eq.s32.totalorder %s37, 1
      %p369 = scmp.ne.s32.totalorder %s364, %s366
      %p370 = scmp.eq.s32.totalorder %s37, 0
      %p371 = por %p369, %p370
      %p372 = scmp.ne.s32.totalorder %s364, %s366
      %p373 = scmp.eq.s32.totalorder %s42, 1
      %p374 = por %p372, %p373
      %p375 = scmp.ne.s32.totalorder %s366, %s367
      %p376 = scmp.eq.s32.totalorder %s42, 0
      %p377 = por %p375, %p376
      %p378 = scmp.ne.s32.totalorder %s366, %s367
      %p379 = scmp.eq.s32.totalorder %s43, 1
      %p380 = por %p378, %p379
      %p382 = scmp.ne.s32.totalorder %s367, %s381
      %p383 = scmp.eq.s32.totalorder %s43, 0
      %p384 = por %p382, %p383
      %s386 = sadd.s32 %s385, 1
      %p389 = scmp.eq.s32.totalorder %s37, 1
      %p390 = scmp.ne.s32.totalorder %s385, %s387
      %p391 = scmp.eq.s32.totalorder %s37, 0
      %p392 = por %p390, %p391
      %p393 = scmp.ne.s32.totalorder %s385, %s387
      %p394 = scmp.eq.s32.totalorder %s42, 1
      %p395 = por %p393, %p394
      %p396 = scmp.ne.s32.totalorder %s387, %s388
      %p397 = scmp.eq.s32.totalorder %s42, 0
      %p398 = por %p396, %p397
      %p399 = scmp.ne.s32.totalorder %s387, %s388
      %p400 = scmp.eq.s32.totalorder %s43, 1
      %p401 = por %p399, %p400
      %p403 = scmp.ne.s32.totalorder %s388, %s402
      %p404 = scmp.eq.s32.totalorder %s43, 0
      %p405 = por %p403, %p404
      %s407 = sadd.s32 %s406, 1
      %p410 = scmp.eq.s32.totalorder %s37, 1
      %p411 = scmp.ne.s32.totalorder %s406, %s408
      %p412 = scmp.eq.s32.totalorder %s37, 0
      %p413 = por %p411, %p412
      %p414 = scmp.ne.s32.totalorder %s406, %s408
      %p415 = scmp.eq.s32.totalorder %s42, 1
      %p416 = por %p414, %p415
      %p417 = scmp.ne.s32.totalorder %s408, %s409
      %p418 = scmp.eq.s32.totalorder %s42, 0
      %p419 = por %p417, %p418
      %p420 = scmp.ne.s32.totalorder %s408, %s409
      %p421 = scmp.eq.s32.totalorder %s43, 1
      %p422 = por %p420, %p421
      %p424 = scmp.ne.s32.totalorder %s409, %s423
      %p425 = scmp.eq.s32.totalorder %s43, 0
      %p426 = por %p424, %p425
      %s428 = sadd.s32 %s427, 1
      %p431 = scmp.eq.s32.totalorder %s37, 1
      %p432 = scmp.ne.s32.totalorder %s427, %s429
      %p433 = scmp.eq.s32.totalorder %s37, 0
      %p434 = por %p432, %p433
      %p435 = scmp.ne.s32.totalorder %s427, %s429
      %p436 = scmp.eq.s32.totalorder %s42, 1
      %p437 = por %p435, %p436
      %p438 = scmp.ne.s32.totalorder %s429, %s430
      %p439 = scmp.eq.s32.totalorder %s42, 0
      %p440 = por %p438, %p439
      %p441 = scmp.ne.s32.totalorder %s429, %s430
      %p442 = scmp.eq.s32.totalorder %s43, 1
      %p443 = por %p441, %p442
      %p445 = scmp.ne.s32.totalorder %s430, %s444
      %p446 = scmp.eq.s32.totalorder %s43, 0
      %p447 = por %p445, %p446
      %s449 = sadd.s32 %s448, 1
      %p452 = scmp.eq.s32.totalorder %s37, 1
      %p453 = scmp.ne.s32.totalorder %s448, %s450
      %p454 = scmp.eq.s32.totalorder %s37, 0
      %p455 = por %p453, %p454
      %p456 = scmp.ne.s32.totalorder %s448, %s450
      %p457 = scmp.eq.s32.totalorder %s42, 1
      %p458 = por %p456, %p457
      %p459 = scmp.ne.s32.totalorder %s450, %s451
      %p460 = scmp.eq.s32.totalorder %s42, 0
      %p461 = por %p459, %p460
      %p462 = scmp.ne.s32.totalorder %s450, %s451
      %p463 = scmp.eq.s32.totalorder %s43, 1
      %p464 = por %p462, %p463
      %p466 = scmp.ne.s32.totalorder %s451, %s465
      %p467 = scmp.eq.s32.totalorder %s43, 0
      %p468 = por %p466, %p467
      %s470 = sadd.s32 %s469, 1
      %p473 = scmp.eq.s32.totalorder %s37, 1
      %p474 = scmp.ne.s32.totalorder %s469, %s471
      %p475 = scmp.eq.s32.totalorder %s37, 0
      %p476 = por %p474, %p475
      %p477 = scmp.ne.s32.totalorder %s469, %s471
      %p478 = scmp.eq.s32.totalorder %s42, 1
      %p479 = por %p477, %p478
      %p480 = scmp.ne.s32.totalorder %s471, %s472
      %p481 = scmp.eq.s32.totalorder %s42, 0
      %p482 = por %p480, %p481
      %p483 = scmp.ne.s32.totalorder %s471, %s472
      %p484 = scmp.eq.s32.totalorder %s43, 1
      %p485 = por %p483, %p484
      %p487 = scmp.ne.s32.totalorder %s472, %s486
      %p488 = scmp.eq.s32.totalorder %s43, 0
      %p489 = por %p487, %p488
      %s490 = ssub.s32 %s37, %s44
      %p491 = scmp.eq.s32.totalorder %s490, 0
      %s493 = sadd.s32 %s492, 1
      %s494 = scalar_select %p491, %s492, %s493
      %p497 = pneg %p491
      %p498 = scmp.eq.s32.totalorder %s37, 1
      %p499 = por %p497, %p498
      %p500 = scmp.ne.s32.totalorder %s492, %s495
      %p501 = scmp.eq.s32.totalorder %s37, 0
      %p502 = por %p500, %p501
      %p503 = scmp.ne.s32.totalorder %s492, %s495
      %p504 = scmp.eq.s32.totalorder %s42, 1
      %p505 = por %p503, %p504
      %p506 = scmp.ne.s32.totalorder %s495, %s496
      %p507 = scmp.eq.s32.totalorder %s42, 0
      %p508 = por %p506, %p507
      %p509 = scmp.ne.s32.totalorder %s495, %s496
      %p510 = scmp.eq.s32.totalorder %s43, 1
      %p511 = por %p509, %p510
      %p513 = scmp.ne.s32.totalorder %s496, %s512
      %p514 = scmp.eq.s32.totalorder %s43, 0
      %p515 = por %p513, %p514
      %p516 = scmp.le.s32.totalorder 1, %s37
      %p517 = scmp.lt.s32.totalorder %s37, 3
      %p518 = pnand %p516, %p517
      %p519 = pneg %p518
      // Predicated region
      $region9: #{tpu_custom_call.1} parent=5 // pred_check
        _
      $region10: #{tpu_custom_call.1} parent=5 // pred_check_branch
        %521 = sbr.rel (%p518) target = $region12
      $region11: #{tpu_custom_call.1} parent=5 // pred_region
        %s522 = ssub.s32 %s37, 1
        // Predicated region
        $region13: #{tpu_custom_call.1} parent=11 // pred_check
          %p523 = pneg %p188
        $region14: #{tpu_custom_call.1} parent=11 // pred_check_branch
          %525 = sbr.rel (%p523) target = $region16
        $region15: #{tpu_custom_call.1} parent=11 // pred_region
          _
        $region16: #{tpu_custom_call.1} parent=11 // pred_fallthru
          _
        // Predicated region
        $region17: #{tpu_custom_call.1} parent=11 // pred_check
          %p526 = pneg %p209
        $region18: #{tpu_custom_call.1} parent=11 // pred_check_branch
          %528 = sbr.rel (%p526) target = $region20
        $region19: #{tpu_custom_call.1} parent=11 // pred_region
          %s530 = ssub.s32 256, 256
          %531 = vsyncadd [#allocation6], %s530
          %s533 = sshll.u32 [#allocation5], 4
          %s534 = int_to_ptr.vmem [resolvable:$true] %s533
          %536 = dma.hbm_to_vmem [thread:$0]  %s6, 256, %s534, [#allocation6]
        $region20: #{tpu_custom_call.1} parent=11 // pred_fallthru
          _
        // Predicated region
        $region21: #{tpu_custom_call.1} parent=11 // pred_check
          %p537 = pneg %p230
        $region22: #{tpu_custom_call.1} parent=11 // pred_check_branch
          %539 = sbr.rel (%p537) target = $region24
        $region23: #{tpu_custom_call.1} parent=11 // pred_region
          %s541 = ssub.s32 128, 128
          %542 = vsyncadd [#allocation6], %s541
          %s544 = sshll.u32 [#allocation7], 4
          %s545 = int_to_ptr.vmem [resolvable:$true] %s544
          %547 = dma.hbm_to_vmem [thread:$0]  %s7, 128, %s545, [#allocation6]
        $region24: #{tpu_custom_call.1} parent=11 // pred_fallthru
          _
        // Predicated region
        $region25: #{tpu_custom_call.1} parent=11 // pred_check
          %p548 = pneg %p251
        $region26: #{tpu_custom_call.1} parent=11 // pred_check_branch
          %550 = sbr.rel (%p548) target = $region28
        $region27: #{tpu_custom_call.1} parent=11 // pred_region
          %s552 = ssub.s32 64, 64
          %553 = vsyncadd [#allocation9], %s552
          %s555 = sshll.u32 [#allocation8], 4
          %s556 = int_to_ptr.vmem [resolvable:$true] %s555
          %558 = dma.hbm_to_vmem [thread:$0]  %s8, 64, %s556, [#allocation9]
        $region28: #{tpu_custom_call.1} parent=11 // pred_fallthru
          _
        // Predicated region
        $region29: #{tpu_custom_call.1} parent=11 // pred_check
          %p559 = pneg %p272
        $region30: #{tpu_custom_call.1} parent=11 // pred_check_branch
          %561 = sbr.rel (%p559) target = $region32
        $region31: #{tpu_custom_call.1} parent=11 // pred_region
          %s563 = ssub.s32 256, 256
          %564 = vsyncadd [#allocation9], %s563
          %s566 = sshll.u32 [#allocation10], 4
          %s567 = int_to_ptr.vmem [resolvable:$true] %s566
          %569 = dma.hbm_to_vmem [thread:$0]  %s9, 256, %s567, [#allocation9]
        $region32: #{tpu_custom_call.1} parent=11 // pred_fallthru
          _
        // Predicated region
        $region33: #{tpu_custom_call.1} parent=11 // pred_check
          %p570 = pneg %p293
        $region34: #{tpu_custom_call.1} parent=11 // pred_check_branch
          %572 = sbr.rel (%p570) target = $region36
        $region35: #{tpu_custom_call.1} parent=11 // pred_region
          %s574 = ssub.s32 64, 64
          %575 = vsyncadd [#allocation12], %s574
          %s577 = sshll.u32 [#allocation11], 4
          %s578 = int_to_ptr.vmem [resolvable:$true] %s577
          %580 = dma.hbm_to_vmem [thread:$0]  %s10, 64, %s578, [#allocation12]
        $region36: #{tpu_custom_call.1} parent=11 // pred_fallthru
          _
        // Predicated region
        $region37: #{tpu_custom_call.1} parent=11 // pred_check
          %p581 = pneg %p314
        $region38: #{tpu_custom_call.1} parent=11 // pred_check_branch
          %583 = sbr.rel (%p581) target = $region40
        $region39: #{tpu_custom_call.1} parent=11 // pred_region
          %s585 = ssub.s32 1024, 1024
          %586 = vsyncadd [#allocation12], %s585
          %s587 = sshll.u32 [#allocation13], 4
          %s588 = int_to_ptr.vmem [resolvable:$true] %s587
          %593 = dma.hbm_to_vmem [thread:$0]  %s11, 1024, %s588, [#allocation12], 64, 64, 4
        $region40: #{tpu_custom_call.1} parent=11 // pred_fallthru
          _
        // Predicated region
        $region41: #{tpu_custom_call.1} parent=11 // pred_check
          %p594 = pneg %p335
        $region42: #{tpu_custom_call.1} parent=11 // pred_check_branch
          %596 = sbr.rel (%p594) target = $region44
        $region43: #{tpu_custom_call.1} parent=11 // pred_region
          %s598 = ssub.s32 16, 16
          %599 = vsyncadd [#allocation15], %s598
          %s601 = sshll.u32 [#allocation14], 4
          %s602 = int_to_ptr.vmem [resolvable:$true] %s601
          %604 = dma.hbm_to_vmem [thread:$0]  %s12, 16, %s602, [#allocation15]
        $region44: #{tpu_custom_call.1} parent=11 // pred_fallthru
          _
        // Predicated region
        $region45: #{tpu_custom_call.1} parent=11 // pred_check
          %p605 = pneg %p356
        $region46: #{tpu_custom_call.1} parent=11 // pred_check_branch
          %607 = sbr.rel (%p605) target = $region48
        $region47: #{tpu_custom_call.1} parent=11 // pred_region
          _
        $region48: #{tpu_custom_call.1} parent=11 // pred_fallthru
          _
        // Predicated region
        $region49: #{tpu_custom_call.1} parent=11 // pred_check
          %p608 = pneg %p377
        $region50: #{tpu_custom_call.1} parent=11 // pred_check_branch
          %610 = sbr.rel (%p608) target = $region52
        $region51: #{tpu_custom_call.1} parent=11 // pred_region
          %s612 = ssub.s32 128, 128
          %613 = vsyncadd [#allocation15], %s612
          %s615 = sshll.u32 [#allocation16], 4
          %s616 = int_to_ptr.vmem [resolvable:$true] %s615
          %618 = dma.hbm_to_vmem [thread:$0]  %s14, 128, %s616, [#allocation15]
        $region52: #{tpu_custom_call.1} parent=11 // pred_fallthru
          _
        // Predicated region
        $region53: #{tpu_custom_call.1} parent=11 // pred_check
          %p619 = pneg %p398
        $region54: #{tpu_custom_call.1} parent=11 // pred_check_branch
          %621 = sbr.rel (%p619) target = $region56
        $region55: #{tpu_custom_call.1} parent=11 // pred_region
          _
        $region56: #{tpu_custom_call.1} parent=11 // pred_fallthru
          _
        // Predicated region
        $region57: #{tpu_custom_call.1} parent=11 // pred_check
          %p622 = pneg %p419
        $region58: #{tpu_custom_call.1} parent=11 // pred_check_branch
          %624 = sbr.rel (%p622) target = $region60
        $region59: #{tpu_custom_call.1} parent=11 // pred_region
          _
        $region60: #{tpu_custom_call.1} parent=11 // pred_fallthru
          _
        // Predicated region
        $region61: #{tpu_custom_call.1} parent=11 // pred_check
          %p625 = pneg %p440
        $region62: #{tpu_custom_call.1} parent=11 // pred_check_branch
          %627 = sbr.rel (%p625) target = $region64
        $region63: #{tpu_custom_call.1} parent=11 // pred_region
          %s629 = ssub.s32 1024, 1024
          %630 = vsyncadd [#allocation18], %s629
          %s631 = sshll.u32 [#allocation17], 4
          %s632 = int_to_ptr.vmem [resolvable:$true] %s631
          %637 = dma.hbm_to_vmem [thread:$0]  %s17, 1024, %s632, [#allocation18], 64, 64, 4
        $region64: #{tpu_custom_call.1} parent=11 // pred_fallthru
          _
        // Predicated region
        $region65: #{tpu_custom_call.1} parent=11 // pred_check
          %p638 = pneg %p461
        $region66: #{tpu_custom_call.1} parent=11 // pred_check_branch
          %640 = sbr.rel (%p638) target = $region68
        $region67: #{tpu_custom_call.1} parent=11 // pred_region
          %s642 = ssub.s32 2048, 2048
          %643 = vsyncadd [#allocation18], %s642
          %s644 = sshll.u32 [#allocation19], 4
          %s645 = int_to_ptr.vmem [resolvable:$true] %s644
          %650 = dma.hbm_to_vmem [thread:$0]  %s18, 2048, %s645, [#allocation18], 64, 64, 4
        $region68: #{tpu_custom_call.1} parent=11 // pred_fallthru
          _
        // Predicated region
        $region69: #{tpu_custom_call.1} parent=11 // pred_check
          %p651 = pneg %p482
        $region70: #{tpu_custom_call.1} parent=11 // pred_check_branch
          %653 = sbr.rel (%p651) target = $region72
        $region71: #{tpu_custom_call.1} parent=11 // pred_region
          _
        $region72: #{tpu_custom_call.1} parent=11 // pred_fallthru
          _
      $region12: #{tpu_custom_call.1} parent=5 // pred_fallthru
        _
      %p654 = scmp.lt.s32.totalorder %s37, 2
      // Predicated region
      $region73: #{tpu_custom_call.1} parent=5 // pred_check
        %p655 = pneg %p654
      $region74: #{tpu_custom_call.1} parent=5 // pred_check_branch
        %657 = sbr.rel (%p655) target = $region76
      $region75: #{tpu_custom_call.1} parent=5 // pred_region
        // Predicated region
        $region77: #{tpu_custom_call.1} parent=75 // pred_check
          %p658 = pneg %p57
        $region78: #{tpu_custom_call.1} parent=75 // pred_check_branch
          %660 = sbr.rel (%p658) target = $region80
        $region79: #{tpu_custom_call.1} parent=75 // pred_region
          %p661 = scmp.lt.s32.totalorder %s37, 1
          %s662 = scalar_select %p661, %s37, 1
          %s663 = smul.addr %s662, 8
          %s664 = scalar_lea.vmem %s0, %s663
        $region80: #{tpu_custom_call.1} parent=75 // pred_fallthru
          _
        // Predicated region
        $region81: #{tpu_custom_call.1} parent=75 // pred_check
          %p665 = pneg %p83
        $region82: #{tpu_custom_call.1} parent=75 // pred_check_branch
          %667 = sbr.rel (%p665) target = $region84
        $region83: #{tpu_custom_call.1} parent=75 // pred_region
          %p668 = scmp.lt.s32.totalorder %s37, 1
          %s669 = scalar_select %p668, %s37, 1
          %s670 = smul.addr %s669, 8
          %s671 = scalar_lea.vmem %s1, %s670
        $region84: #{tpu_custom_call.1} parent=75 // pred_fallthru
          _
        // Predicated region
        $region85: #{tpu_custom_call.1} parent=75 // pred_check
          %p672 = pneg %p109
        $region86: #{tpu_custom_call.1} parent=75 // pred_check_branch
          %674 = sbr.rel (%p672) target = $region88
        $region87: #{tpu_custom_call.1} parent=75 // pred_region
          %p675 = scmp.lt.s32.totalorder %s37, 1
          %s676 = scalar_select %p675, %s37, 1
          %s677 = smul.addr %s676, 8
          %s678 = scalar_lea.vmem %s2, %s677
        $region88: #{tpu_custom_call.1} parent=75 // pred_fallthru
          _
        // Predicated region
        $region89: #{tpu_custom_call.1} parent=75 // pred_check
          %p679 = pneg %p135
        $region90: #{tpu_custom_call.1} parent=75 // pred_check_branch
          %681 = sbr.rel (%p679) target = $region92
        $region91: #{tpu_custom_call.1} parent=75 // pred_region
          %p682 = scmp.lt.s32.totalorder %s37, 1
          %s683 = scalar_select %p682, %s37, 1
          %s684 = smul.addr %s683, 8
          %s685 = scalar_lea.vmem %s3, %s684
        $region92: #{tpu_custom_call.1} parent=75 // pred_fallthru
          _
        // Predicated region
        $region93: #{tpu_custom_call.1} parent=75 // pred_check
          %p686 = pneg %p161
        $region94: #{tpu_custom_call.1} parent=75 // pred_check_branch
          %688 = sbr.rel (%p686) target = $region96
        $region95: #{tpu_custom_call.1} parent=75 // pred_region
          %s689 = sand.u32 %s151, 1
          %s690 = scalar_lea.sflag [#allocation3], %s689
          %s691 = sand.u32 %s151, 1
          %s692 = scalar_lea.vmem [#allocation2], %s691
          %s694 = ssub.s32 16, 16
          %695 = vsyncadd %s690, %s694
          %s696 = smul.addr %s37, 16
          %s697 = scalar_lea.hbm %s4, %s696
          %s699 = sshll.u32 %s692, 4
          %s700 = int_to_ptr.vmem [resolvable:$true] %s699
          %702 = dma.hbm_to_vmem [thread:$0]  %s697, 16, %s700, %s690
        $region96: #{tpu_custom_call.1} parent=75 // pred_fallthru
          _
      $region76: #{tpu_custom_call.1} parent=5 // pred_fallthru
        _
      %p703 = scmp.le.s32.totalorder 1, %s37
      %p704 = scmp.lt.s32.totalorder %s37, 3
      %p705 = pnand %p703, %p704
      %p706 = pneg %p705
      // Predicated region
      $region97: #{tpu_custom_call.1} parent=5 // pred_check
        _
      $region98: #{tpu_custom_call.1} parent=5 // pred_check_branch
        %708 = sbr.rel (%p705) target = $region100
      $region99: #{tpu_custom_call.1} parent=5 // pred_region
        %s709 = ssub.s32 %s37, 1
        %s710 = sand.u32 %s154, 1
        %s711 = scalar_lea.sflag [#allocation3], %s710
        %s712 = sand.u32 %s154, 1
        %s713 = scalar_lea.vmem [#allocation2], %s712
        // Predicated region
        $region101: #{tpu_custom_call.1} parent=99 // pred_check
          %p714 = pneg %p167
        $region102: #{tpu_custom_call.1} parent=99 // pred_check_branch
          %716 = sbr.rel (%p714) target = $region104
        $region103: #{tpu_custom_call.1} parent=99 // pred_region
          %717 = dma.done %s711, 16
        $region104: #{tpu_custom_call.1} parent=99 // pred_fallthru
          _
        // Predicated region
        $region105: #{tpu_custom_call.1} parent=99 // pred_check
          %p718 = pneg %p209
        $region106: #{tpu_custom_call.1} parent=99 // pred_check_branch
          %720 = sbr.rel (%p718) target = $region108
        $region107: #{tpu_custom_call.1} parent=99 // pred_region
          %721 = dma.done [#allocation6], 256
        $region108: #{tpu_custom_call.1} parent=99 // pred_fallthru
          _
        // Predicated region
        $region109: #{tpu_custom_call.1} parent=99 // pred_check
          %p722 = pneg %p230
        $region110: #{tpu_custom_call.1} parent=99 // pred_check_branch
          %724 = sbr.rel (%p722) target = $region112
        $region111: #{tpu_custom_call.1} parent=99 // pred_region
          %725 = dma.done [#allocation6], 128
        $region112: #{tpu_custom_call.1} parent=99 // pred_fallthru
          _
        // Predicated region
        $region113: #{tpu_custom_call.1} parent=99 // pred_check
          %p726 = pneg %p251
        $region114: #{tpu_custom_call.1} parent=99 // pred_check_branch
          %728 = sbr.rel (%p726) target = $region116
        $region115: #{tpu_custom_call.1} parent=99 // pred_region
          %729 = dma.done [#allocation9], 64
        $region116: #{tpu_custom_call.1} parent=99 // pred_fallthru
          _
        // Predicated region
        $region117: #{tpu_custom_call.1} parent=99 // pred_check
          %p730 = pneg %p272
        $region118: #{tpu_custom_call.1} parent=99 // pred_check_branch
          %732 = sbr.rel (%p730) target = $region120
        $region119: #{tpu_custom_call.1} parent=99 // pred_region
          %733 = dma.done [#allocation9], 256
        $region120: #{tpu_custom_call.1} parent=99 // pred_fallthru
          _
        // Predicated region
        $region121: #{tpu_custom_call.1} parent=99 // pred_check
          %p734 = pneg %p293
        $region122: #{tpu_custom_call.1} parent=99 // pred_check_branch
          %736 = sbr.rel (%p734) target = $region124
        $region123: #{tpu_custom_call.1} parent=99 // pred_region
          %737 = dma.done [#allocation12], 64
        $region124: #{tpu_custom_call.1} parent=99 // pred_fallthru
          _
        // Predicated region
        $region125: #{tpu_custom_call.1} parent=99 // pred_check
          %p738 = pneg %p314
        $region126: #{tpu_custom_call.1} parent=99 // pred_check_branch
          %740 = sbr.rel (%p738) target = $region128
        $region127: #{tpu_custom_call.1} parent=99 // pred_region
          %741 = dma.done [#allocation12], 1024
        $region128: #{tpu_custom_call.1} parent=99 // pred_fallthru
          _
        // Predicated region
        $region129: #{tpu_custom_call.1} parent=99 // pred_check
          %p742 = pneg %p335
        $region130: #{tpu_custom_call.1} parent=99 // pred_check_branch
          %744 = sbr.rel (%p742) target = $region132
        $region131: #{tpu_custom_call.1} parent=99 // pred_region
          %745 = dma.done [#allocation15], 16
        $region132: #{tpu_custom_call.1} parent=99 // pred_fallthru
          _
        // Predicated region
        $region133: #{tpu_custom_call.1} parent=99 // pred_check
          %p746 = pneg %p377
        $region134: #{tpu_custom_call.1} parent=99 // pred_check_branch
          %748 = sbr.rel (%p746) target = $region136
        $region135: #{tpu_custom_call.1} parent=99 // pred_region
          %749 = dma.done [#allocation15], 128
        $region136: #{tpu_custom_call.1} parent=99 // pred_fallthru
          _
        // Predicated region
        $region137: #{tpu_custom_call.1} parent=99 // pred_check
          %p750 = pneg %p440
        $region138: #{tpu_custom_call.1} parent=99 // pred_check_branch
          %752 = sbr.rel (%p750) target = $region140
        $region139: #{tpu_custom_call.1} parent=99 // pred_region
          %753 = dma.done [#allocation18], 1024
        $region140: #{tpu_custom_call.1} parent=99 // pred_fallthru
          _
        // Predicated region
        $region141: #{tpu_custom_call.1} parent=99 // pred_check
          %p754 = pneg %p461
        $region142: #{tpu_custom_call.1} parent=99 // pred_check_branch
          %756 = sbr.rel (%p754) target = $region144
        $region143: #{tpu_custom_call.1} parent=99 // pred_region
          %757 = dma.done [#allocation18], 2048
        $region144: #{tpu_custom_call.1} parent=99 // pred_fallthru
          _
        %p758 = scmp.lt.s32.totalorder %s42, 1
        %s759 = scalar_select %p758, %s42, 1
        %s760 = smul.addr %s759, 8
        %s761 = scalar_lea.vmem %s0, %s760
        %p762 = pneg %p63
        %p763 = pneg %p60
        %p764 = scmp.lt.s32.totalorder %s42, 1
        %s765 = scalar_select %p764, %s42, 1
        %s766 = smul.addr %s765, 8
        %s767 = scalar_lea.vmem %s1, %s766
        %p768 = pneg %p89
        %p769 = pneg %p86
        %p770 = scmp.lt.s32.totalorder %s42, 1
        %s771 = scalar_select %p770, %s42, 1
        %s772 = smul.addr %s771, 8
        %s773 = scalar_lea.vmem %s2, %s772
        %p774 = pneg %p115
        %p775 = pneg %p112
        %p776 = scmp.lt.s32.totalorder %s42, 1
        %s777 = scalar_select %p776, %s42, 1
        %s778 = smul.addr %s777, 8
        %s779 = scalar_lea.vmem %s3, %s778
        %p780 = pneg %p141
        %p781 = pneg %p138
        %s782 = sand.u32 %s154, 1
        %s783 = scalar_lea.sflag [#allocation3], %s782
        %s784 = sand.u32 %s154, 1
        %s785 = scalar_lea.vmem [#allocation2], %s784
        %p786 = pneg %p167
        %p787 = pneg %p164
        %p788 = pneg %p188
        %p789 = pneg %p185
        %p790 = pneg %p209
        %p791 = pneg %p206
        %p792 = pneg %p230
        %p793 = pneg %p227
        %p794 = pneg %p251
        %p795 = pneg %p248
        %p796 = pneg %p272
        %p797 = pneg %p269
        %p798 = pneg %p293
        %p799 = pneg %p290
        %p800 = pneg %p314
        %p801 = pneg %p311
        %p802 = pneg %p335
        %p803 = pneg %p332
        %p804 = pneg %p356
        %p805 = pneg %p353
        %p806 = pneg %p377
        %p807 = pneg %p374
        %p808 = pneg %p398
        %p809 = pneg %p395
        %p810 = pneg %p419
        %p811 = pneg %p416
        %p812 = pneg %p440
        %p813 = pneg %p437
        %p814 = pneg %p461
        %p815 = pneg %p458
        %p816 = pneg %p482
        %p817 = pneg %p479
        %p818 = pneg %p508
        %p819 = pneg %p505
        %s820 = sand.u32 %s495, 1
        %s821 = scalar_lea.sflag [#allocation4], %s820
        %s822 = sand.u32 %s495, 1
        %s823 = smul.addr %s822, 8
        %s824 = scalar_lea.vmem [#allocation20], %s823
        %p825 = scmp.lt.s32.totalorder %s42, 1
        %s826 = scalar_select %p825, %s42, 1
        %s827 = smul.addr %s826, 8
        %s828 = scalar_lea.vmem %s0, %s827
        %p829 = scmp.lt.s32.totalorder %s42, 1
        %s830 = scalar_select %p829, %s42, 1
        %s831 = smul.addr %s830, 8
        %s832 = scalar_lea.vmem %s1, %s831
        %p833 = scmp.lt.s32.totalorder %s42, 1
        %s834 = scalar_select %p833, %s42, 1
        %s835 = smul.addr %s834, 8
        %s836 = scalar_lea.vmem %s2, %s835
        %p837 = scmp.lt.s32.totalorder %s42, 1
        %s838 = scalar_select %p837, %s42, 1
        %s839 = smul.addr %s838, 8
        %s840 = scalar_lea.vmem %s3, %s839
        %v842 = vld [vmem:[%s828] sm:$0xff]
        %v843 = vpack.c.bf16 %v842, %v842
        %v844 = vld [vmem:[%s832] sm:$0xff]
        %v845 = vpack.c.bf16 %v844, %v844
        %v846 = vld [vmem:[%s836] sm:$0xff]
        %v847 = vpack.c.bf16 %v846, %v846
        %v848 = vld [vmem:[%s840] sm:$0xff]
        %v849 = vld [vmem:[%s713] sm:$0x1]
        %v850 = vpack.c.bf16 %v849, %v849
        %v851 = vld [vmem:[%s5] sm:$0x77]
        %v852 = vld [vmem:[%s5 + $0x8] sm:$0x77]
        %v853 = vld [vmem:[#allocation5] sm:$0x77]
        %v854 = vld [vmem:[#allocation5 + $0x8] sm:$0x77]
        %v857 = vunpack.c.l.b16 %v853
        %v858 = vunpack.c.h.b16 %v853
        %v859 = vunpack.c.l.b16 %v854
        %v860 = vunpack.c.h.b16 %v854
        %v861 = vpack.c.b16 %v857, %v857
        %v862 = vpack.c.b16 %v858, %v858
        %v863 = vpack.c.b16 %v859, %v859
        %v864 = vpack.c.b16 %v860, %v860
        %vm865 = vcmask 48128
        %v867 = vsel %vm865, %v845, 0
        %vm869 = vcmask 1042432
        %v871 = vsel %vm869, %v861, 0
        %v874 = vsel %vm869, %v862, 0
        %v877 = vsel %vm869, %v863, 0
        %v880 = vsel %vm869, %v864, 0
        %882 = vmatprep.subr.bf16.mxu0 %v874
        %883 = vmatpush1.bf16.msra.mxu0 %v871
        %884 = vmatprep.subr.bf16.mxu0 0
        %885 = vmatpush1.bf16.msra.mxu0 0
        %886 = vmatprep.subr.bf16.mxu0 0
        %887 = vmatpush1.bf16.msra.mxu0 0
        %888 = vmatprep.subr.bf16.mxu0 0
        %889 = vmatpush1.bf16.msra.mxu0 0
        %890 = vmatprep.subr.bf16.mxu0 0
        %891 = vmatpush1.bf16.msra.mxu0 0
        %892 = vmatprep.subr.bf16.mxu0 0
        %893 = vmatpush1.bf16.msra.mxu0 0
        %894 = vmatprep.subr.bf16.mxu0 0
        %895 = vmatpush1.bf16.msra.mxu0 0
        %896 = vmatprep.subr.bf16.mxu0 0
        %897 = vmatpush1.bf16.msra.mxu0 0
        %898 = vmatprep.subr.bf16.mxu0 0
        %899 = vmatpush1.bf16.msra.mxu0 0
        %900 = vmatprep.subr.bf16.mxu0 0
        %901 = vmatpush1.bf16.msra.mxu0 0
        %902 = vmatprep.subr.bf16.mxu0 0
        %903 = vmatpush1.bf16.msra.mxu0 0
        %904 = vmatprep.subr.bf16.mxu0 0
        %905 = vmatpush1.bf16.msra.mxu0 0
        %906 = vmatprep.subr.bf16.mxu0 0
        %907 = vmatpush1.bf16.msra.mxu0 0
        %908 = vmatprep.subr.bf16.mxu0 0
        %909 = vmatpush1.bf16.msra.mxu0 0
        %910 = vmatprep.subr.bf16.mxu0 0
        %911 = vmatpush1.bf16.msra.mxu0 0
        %912 = vmatprep.subr.bf16.mxu0 0
        %913 = vmatpush1.bf16.msra.mxu0 0
        %914 = vmatprep.mubr.bf16.mxu0 0
        %915 = vmatmul.mubr.bf16.gmra.mrb[0].mxu0 %v867
        %v916 = vpop.f32.mrb[0].mxu0
        %v917 = vadd.f32 0.0, %v916
        %v918 = vpop.f32.mrb[0].mxu0
        %v919 = vadd.f32 0.0, %v918
        %v920 = vpop.f32.mrb[0].mxu0
        %v921 = vpop.f32.mrb[0].mxu0
        %922 = vdwg.mxu0
        %923 = vmatprep.subr.bf16.mxu0 %v880
        %924 = vmatpush1.bf16.msra.mxu0 %v877
        %925 = vmatprep.subr.bf16.mxu0 0
        %926 = vmatpush1.bf16.msra.mxu0 0
        %927 = vmatprep.subr.bf16.mxu0 0
        %928 = vmatpush1.bf16.msra.mxu0 0
        %929 = vmatprep.subr.bf16.mxu0 0
        %930 = vmatpush1.bf16.msra.mxu0 0
        %931 = vmatprep.subr.bf16.mxu0 0
        %932 = vmatpush1.bf16.msra.mxu0 0
        %933 = vmatprep.subr.bf16.mxu0 0
        %934 = vmatpush1.bf16.msra.mxu0 0
        %935 = vmatprep.subr.bf16.mxu0 0
        %936 = vmatpush1.bf16.msra.mxu0 0
        %937 = vmatprep.subr.bf16.mxu0 0
        %938 = vmatpush1.bf16.msra.mxu0 0
        %939 = vmatprep.subr.bf16.mxu0 0
        %940 = vmatpush1.bf16.msra.mxu0 0
        %941 = vmatprep.subr.bf16.mxu0 0
        %942 = vmatpush1.bf16.msra.mxu0 0
        %943 = vmatprep.subr.bf16.mxu0 0
        %944 = vmatpush1.bf16.msra.mxu0 0
        %945 = vmatprep.subr.bf16.mxu0 0
        %946 = vmatpush1.bf16.msra.mxu0 0
        %947 = vmatprep.subr.bf16.mxu0 0
        %948 = vmatpush1.bf16.msra.mxu0 0
        %949 = vmatprep.subr.bf16.mxu0 0
        %950 = vmatpush1.bf16.msra.mxu0 0
        %951 = vmatprep.subr.bf16.mxu0 0
        %952 = vmatpush1.bf16.msra.mxu0 0
        %953 = vmatprep.subr.bf16.mxu0 0
        %954 = vmatpush1.bf16.msra.mxu0 0
        %955 = vmatprep.mubr.bf16.mxu0 0
        %956 = vmatmul.mubr.bf16.gmra.mrb[0].mxu0 %v867
        %v957 = vpop.f32.mrb[0].mxu0
        %v958 = vadd.f32 0.0, %v957
        %v959 = vpop.f32.mrb[0].mxu0
        %v960 = vadd.f32 0.0, %v959
        %v961 = vpop.f32.mrb[0].mxu0
        %v962 = vpop.f32.mrb[0].mxu0
        %963 = vdwg.mxu0
        %v966 = vunpack.c.l.b16 %v851
        %v967 = vunpack.c.h.b16 %v851
        %v968 = vunpack.c.l.b16 %v852
        %v969 = vunpack.c.h.b16 %v852
        %v970 = vpack.c.b16 %v966, %v966
        %v971 = vpack.c.b16 %v967, %v967
        %v972 = vpack.c.b16 %v968, %v968
        %v973 = vpack.c.b16 %v969, %v969
        %v975 = vsel %vm865, %v843, 0
        %v978 = vsel %vm869, %v970, 0
        %v981 = vsel %vm869, %v971, 0
        %v984 = vsel %vm869, %v972, 0
        %v987 = vsel %vm869, %v973, 0
        %989 = vmatprep.subr.bf16.mxu0 %v981
        %990 = vmatpush1.bf16.msra.mxu0 %v978
        %991 = vmatprep.subr.bf16.mxu0 0
        %992 = vmatpush1.bf16.msra.mxu0 0
        %993 = vmatprep.subr.bf16.mxu0 0
        %994 = vmatpush1.bf16.msra.mxu0 0
        %995 = vmatprep.subr.bf16.mxu0 0
        %996 = vmatpush1.bf16.msra.mxu0 0
        %997 = vmatprep.subr.bf16.mxu0 0
        %998 = vmatpush1.bf16.msra.mxu0 0
        %999 = vmatprep.subr.bf16.mxu0 0
        %1000 = vmatpush1.bf16.msra.mxu0 0
        %1001 = vmatprep.subr.bf16.mxu0 0
        %1002 = vmatpush1.bf16.msra.mxu0 0
        %1003 = vmatprep.subr.bf16.mxu0 0
        %1004 = vmatpush1.bf16.msra.mxu0 0
        %1005 = vmatprep.subr.bf16.mxu0 0
        %1006 = vmatpush1.bf16.msra.mxu0 0
        %1007 = vmatprep.subr.bf16.mxu0 0
        %1008 = vmatpush1.bf16.msra.mxu0 0
        %1009 = vmatprep.subr.bf16.mxu0 0
        %1010 = vmatpush1.bf16.msra.mxu0 0
        %1011 = vmatprep.subr.bf16.mxu0 0
        %1012 = vmatpush1.bf16.msra.mxu0 0
        %1013 = vmatprep.subr.bf16.mxu0 0
        %1014 = vmatpush1.bf16.msra.mxu0 0
        %1015 = vmatprep.subr.bf16.mxu0 0
        %1016 = vmatpush1.bf16.msra.mxu0 0
        %1017 = vmatprep.subr.bf16.mxu0 0
        %1018 = vmatpush1.bf16.msra.mxu0 0
        %1019 = vmatprep.subr.bf16.mxu0 0
        %1020 = vmatpush1.bf16.msra.mxu0 0
        %1021 = vmatprep.mubr.bf16.mxu0 0
        %1022 = vmatmul.mubr.bf16.gmra.mrb[0].mxu0 %v975
        %v1023 = vpop.f32.mrb[0].mxu0
        %v1024 = vadd.f32 %v917, %v1023
        %v1025 = vpop.f32.mrb[0].mxu0
        %v1026 = vadd.f32 %v919, %v1025
        %v1027 = vpop.f32.mrb[0].mxu0
        %v1028 = vpop.f32.mrb[0].mxu0
        %1029 = vdwg.mxu0
        %1030 = vmatprep.subr.bf16.mxu0 %v987
        %1031 = vmatpush1.bf16.msra.mxu0 %v984
        %1032 = vmatprep.subr.bf16.mxu0 0
        %1033 = vmatpush1.bf16.msra.mxu0 0
        %1034 = vmatprep.subr.bf16.mxu0 0
        %1035 = vmatpush1.bf16.msra.mxu0 0
        %1036 = vmatprep.subr.bf16.mxu0 0
        %1037 = vmatpush1.bf16.msra.mxu0 0
        %1038 = vmatprep.subr.bf16.mxu0 0
        %1039 = vmatpush1.bf16.msra.mxu0 0
        %1040 = vmatprep.subr.bf16.mxu0 0
        %1041 = vmatpush1.bf16.msra.mxu0 0
        %1042 = vmatprep.subr.bf16.mxu0 0
        %1043 = vmatpush1.bf16.msra.mxu0 0
        %1044 = vmatprep.subr.bf16.mxu0 0
        %1045 = vmatpush1.bf16.msra.mxu0 0
        %1046 = vmatprep.subr.bf16.mxu0 0
        %1047 = vmatpush1.bf16.msra.mxu0 0
        %1048 = vmatprep.subr.bf16.mxu0 0
        %1049 = vmatpush1.bf16.msra.mxu0 0
        %1050 = vmatprep.subr.bf16.mxu0 0
        %1051 = vmatpush1.bf16.msra.mxu0 0
        %1052 = vmatprep.subr.bf16.mxu0 0
        %1053 = vmatpush1.bf16.msra.mxu0 0
        %1054 = vmatprep.subr.bf16.mxu0 0
        %1055 = vmatpush1.bf16.msra.mxu0 0
        %1056 = vmatprep.subr.bf16.mxu0 0
        %1057 = vmatpush1.bf16.msra.mxu0 0
        %1058 = vmatprep.subr.bf16.mxu0 0
        %1059 = vmatpush1.bf16.msra.mxu0 0
        %1060 = vmatprep.subr.bf16.mxu0 0
        %1061 = vmatpush1.bf16.msra.mxu0 0
        %1062 = vmatprep.mubr.bf16.mxu0 0
        %1063 = vmatmul.mubr.bf16.gmra.mrb[0].mxu0 %v975
        %v1064 = vpop.f32.mrb[0].mxu0
        %v1065 = vadd.f32 %v958, %v1064
        %v1066 = vpop.f32.mrb[0].mxu0
        %v1067 = vadd.f32 %v960, %v1066
        %v1068 = vpop.f32.mrb[0].mxu0
        %v1069 = vpop.f32.mrb[0].mxu0
        %1070 = vdwg.mxu0
        %v1071 = vld [vmem:[#allocation7] sm:$0xff]
        %v1073 = vcombine.high %v1071, %v1071
        %v1075 = vunpack.c.l.s4 1983009808
        %v1076 = vunpack.c.0.s8 %v1075
        %v1077 = vlaneseq
        %v1078 = vshrl.u32 %v1077, 7
        %v1079 = vsub.s32 %v1076, %v1078
        %v1080 = vrot.slane %v1071, %v1079
        %v1082 = vunpack.c.l.s4 1983009808
        %v1083 = vunpack.c.0.s8 %v1082
        %v1084 = vlaneseq
        %v1085 = vshrl.u32 %v1084, 7
        %v1086 = vsub.s32 %v1083, %v1085
        %v1087 = vrot.slane %v1073, %v1086
        %v1088 = vcombine.high %v1080, %v1080
        %v1089 = vcombine.high %v1087, %v1087
        %vm1090 = vcmask 23552
        %v1092 = vsel %vm1090, %v847, 0
        %vm1094 = vcmask 1040384
        %vm1095 = vcmask 1041408
        %v1096 = vsel %vm1094, 4294967295, 65535
        %v1097 = vsel %vm1095, %v1096, 0
        %v1099 = vand.u32 %v1080, %v1097
        %v1102 = vand.u32 %v1088, %v1097
        %v1105 = vand.u32 %v1087, %v1097
        %v1108 = vand.u32 %v1089, %v1097
        %1110 = vmatprep.subr.bf16.mxu0 %v1102
        %1111 = vmatpush1.bf16.msra.mxu0 %v1099
        %1112 = vmatprep.subr.bf16.mxu0 0
        %1113 = vmatpush1.bf16.msra.mxu0 0
        %1114 = vmatprep.subr.bf16.mxu0 0
        %1115 = vmatpush1.bf16.msra.mxu0 0
        %1116 = vmatprep.subr.bf16.mxu0 0
        %1117 = vmatpush1.bf16.msra.mxu0 0
        %1118 = vmatprep.subr.bf16.mxu0 0
        %1119 = vmatpush1.bf16.msra.mxu0 0
        %1120 = vmatprep.subr.bf16.mxu0 0
        %1121 = vmatpush1.bf16.msra.mxu0 0
        %1122 = vmatprep.subr.bf16.mxu0 0
        %1123 = vmatpush1.bf16.msra.mxu0 0
        %1124 = vmatprep.subr.bf16.mxu0 0
        %1125 = vmatpush1.bf16.msra.mxu0 0
        %1126 = vmatprep.subr.bf16.mxu0 0
        %1127 = vmatpush1.bf16.msra.mxu0 0
        %1128 = vmatprep.subr.bf16.mxu0 0
        %1129 = vmatpush1.bf16.msra.mxu0 0
        %1130 = vmatprep.subr.bf16.mxu0 0
        %1131 = vmatpush1.bf16.msra.mxu0 0
        %1132 = vmatprep.subr.bf16.mxu0 0
        %1133 = vmatpush1.bf16.msra.mxu0 0
        %1134 = vmatprep.subr.bf16.mxu0 0
        %1135 = vmatpush1.bf16.msra.mxu0 0
        %1136 = vmatprep.subr.bf16.mxu0 0
        %1137 = vmatpush1.bf16.msra.mxu0 0
        %1138 = vmatprep.subr.bf16.mxu0 0
        %1139 = vmatpush1.bf16.msra.mxu0 0
        %1140 = vmatprep.subr.bf16.mxu0 0
        %1141 = vmatpush1.bf16.msra.mxu0 0
        %1142 = vmatprep.mubr.bf16.mxu0 0
        %1143 = vmatmul.mubr.bf16.gmra.mrb[0].mxu0 %v1092
        %v1144 = vpop.f32.mrb[0].mxu0
        %v1145 = vadd.f32 0.0, %v1144
        %v1146 = vpop.f32.mrb[0].mxu0
        %v1147 = vadd.f32 0.0, %v1146
        %v1148 = vpop.f32.mrb[0].mxu0
        %v1149 = vpop.f32.mrb[0].mxu0
        %1150 = vdwg.mxu0
        %1151 = vmatprep.subr.bf16.mxu0 %v1108
        %1152 = vmatpush1.bf16.msra.mxu0 %v1105
        %1153 = vmatprep.subr.bf16.mxu0 0
        %1154 = vmatpush1.bf16.msra.mxu0 0
        %1155 = vmatprep.subr.bf16.mxu0 0
        %1156 = vmatpush1.bf16.msra.mxu0 0
        %1157 = vmatprep.subr.bf16.mxu0 0
        %1158 = vmatpush1.bf16.msra.mxu0 0
        %1159 = vmatprep.subr.bf16.mxu0 0
        %1160 = vmatpush1.bf16.msra.mxu0 0
        %1161 = vmatprep.subr.bf16.mxu0 0
        %1162 = vmatpush1.bf16.msra.mxu0 0
        %1163 = vmatprep.subr.bf16.mxu0 0
        %1164 = vmatpush1.bf16.msra.mxu0 0
        %1165 = vmatprep.subr.bf16.mxu0 0
        %1166 = vmatpush1.bf16.msra.mxu0 0
        %1167 = vmatprep.subr.bf16.mxu0 0
        %1168 = vmatpush1.bf16.msra.mxu0 0
        %1169 = vmatprep.subr.bf16.mxu0 0
        %1170 = vmatpush1.bf16.msra.mxu0 0
        %1171 = vmatprep.subr.bf16.mxu0 0
        %1172 = vmatpush1.bf16.msra.mxu0 0
        %1173 = vmatprep.subr.bf16.mxu0 0
        %1174 = vmatpush1.bf16.msra.mxu0 0
        %1175 = vmatprep.subr.bf16.mxu0 0
        %1176 = vmatpush1.bf16.msra.mxu0 0
        %1177 = vmatprep.subr.bf16.mxu0 0
        %1178 = vmatpush1.bf16.msra.mxu0 0
        %1179 = vmatprep.subr.bf16.mxu0 0
        %1180 = vmatpush1.bf16.msra.mxu0 0
        %1181 = vmatprep.subr.bf16.mxu0 0
        %1182 = vmatpush1.bf16.msra.mxu0 0
        %1183 = vmatprep.mubr.bf16.mxu0 0
        %1184 = vmatmul.mubr.bf16.gmra.mrb[0].mxu0 %v1092
        %v1185 = vpop.f32.mrb[0].mxu0
        %v1186 = vadd.f32 0.0, %v1185
        %v1187 = vpop.f32.mrb[0].mxu0
        %v1188 = vadd.f32 0.0, %v1187
        %v1189 = vpop.f32.mrb[0].mxu0
        %v1190 = vpop.f32.mrb[0].mxu0
        %1191 = vdwg.mxu0
        %v1192 = vadd.f32 %v1024, %v1145
        %v1193 = vadd.f32 %v1026, %v1147
        %v1194 = vadd.f32 %v1065, %v1186
        %v1195 = vadd.f32 %v1067, %v1188
        %v1196 = vld [vmem:[#allocation8] sm:$0xf]
        %1198 = vset.pattern.permute.xlu0 0
        %1199 = vperm.xlu0 %1198, %v848
        %v1200 = vpop.permute.xlu0 %1199
        %v1203 = vlaneseq
        %v1204 = vshrl.u32 %v1203, 7
        %v1205 = vsub.s32 0, %v1204
        %v1206 = vrot.slane %v1196, %v1205
        %v1207 = vlaneseq
        %v1208 = vshrl.u32 %v1207, 7
        %v1209 = vsub.s32 1, %v1208
        %v1210 = vrot.slane %v1196, %v1209
        %v1211 = vlaneseq
        %v1212 = vshrl.u32 %v1211, 7
        %v1213 = vsub.s32 2, %v1212
        %v1214 = vrot.slane %v1196, %v1213
        %v1215 = vlaneseq
        %v1216 = vshrl.u32 %v1215, 7
        %v1217 = vsub.s32 3, %v1216
        %v1218 = vrot.slane %v1196, %v1217
        %v1223 = vmul.f32 %v1200, %v1206
        %v1224 = vmul.f32 %v1200, %v1210
        %v1225 = vmul.f32 %v1200, %v1214
        %v1226 = vmul.f32 %v1200, %v1218
        %v1227 = vadd.f32 %v1192, %v1223
        %v1228 = vadd.f32 %v1193, %v1224
        %v1229 = vadd.f32 %v1194, %v1225
        %v1230 = vadd.f32 %v1195, %v1226
        %v1231 = vld [vmem:[#allocation10] sm:$0x77]
        %v1232 = vld [vmem:[#allocation10 + $0x8] sm:$0x77]
        %v1233 = vld [vmem:[#allocation11] sm:$0xf]
        %v1236 = vunpack.c.l.b16 %v1231
        %v1237 = vunpack.c.h.b16 %v1231
        %v1238 = vunpack.c.l.b16 %v1232
        %v1239 = vunpack.c.h.b16 %v1232
        %v1240 = vpack.c.b16 %v1236, %v1236
        %v1241 = vpack.c.b16 %v1237, %v1237
        %v1242 = vpack.c.b16 %v1238, %v1238
        %v1243 = vpack.c.b16 %v1239, %v1239
        %v1245 = vlaneseq
        %v1246 = vshrl.u32 %v1245, 7
        %v1247 = vsub.s32 0, %v1246
        %v1248 = vrot.slane %v1233, %v1247
        %v1249 = vlaneseq
        %v1250 = vshrl.u32 %v1249, 7
        %v1251 = vsub.s32 1, %v1250
        %v1252 = vrot.slane %v1233, %v1251
        %v1253 = vlaneseq
        %v1254 = vshrl.u32 %v1253, 7
        %v1255 = vsub.s32 2, %v1254
        %v1256 = vrot.slane %v1233, %v1255
        %v1257 = vlaneseq
        %v1258 = vshrl.u32 %v1257, 7
        %v1259 = vsub.s32 3, %v1258
        %v1260 = vrot.slane %v1233, %v1259
        %vm1265 = vcmask 39936
        %v1267 = vsel %vm1265, %v850, 0
        %v1269 = vsel %vm1095, 4294967295, 65535
        %v1270 = vsel %vm869, %v1269, 0
        %v1272 = vand.u32 %v1240, %v1270
        %v1275 = vand.u32 %v1241, %v1270
        %v1278 = vand.u32 %v1242, %v1270
        %v1281 = vand.u32 %v1243, %v1270
        %1283 = vmatprep.subr.bf16.mxu0 %v1275
        %1284 = vmatpush1.bf16.msra.mxu0 %v1272
        %1285 = vmatprep.subr.bf16.mxu0 0
        %1286 = vmatpush1.bf16.msra.mxu0 0
        %1287 = vmatprep.subr.bf16.mxu0 0
        %1288 = vmatpush1.bf16.msra.mxu0 0
        %1289 = vmatprep.subr.bf16.mxu0 0
        %1290 = vmatpush1.bf16.msra.mxu0 0
        %1291 = vmatprep.subr.bf16.mxu0 0
        %1292 = vmatpush1.bf16.msra.mxu0 0
        %1293 = vmatprep.subr.bf16.mxu0 0
        %1294 = vmatpush1.bf16.msra.mxu0 0
        %1295 = vmatprep.subr.bf16.mxu0 0
        %1296 = vmatpush1.bf16.msra.mxu0 0
        %1297 = vmatprep.subr.bf16.mxu0 0
        %1298 = vmatpush1.bf16.msra.mxu0 0
        %1299 = vmatprep.subr.bf16.mxu0 0
        %1300 = vmatpush1.bf16.msra.mxu0 0
        %1301 = vmatprep.subr.bf16.mxu0 0
        %1302 = vmatpush1.bf16.msra.mxu0 0
        %1303 = vmatprep.subr.bf16.mxu0 0
        %1304 = vmatpush1.bf16.msra.mxu0 0
        %1305 = vmatprep.subr.bf16.mxu0 0
        %1306 = vmatpush1.bf16.msra.mxu0 0
        %1307 = vmatprep.subr.bf16.mxu0 0
        %1308 = vmatpush1.bf16.msra.mxu0 0
        %1309 = vmatprep.subr.bf16.mxu0 0
        %1310 = vmatpush1.bf16.msra.mxu0 0
        %1311 = vmatprep.subr.bf16.mxu0 0
        %1312 = vmatpush1.bf16.msra.mxu0 0
        %1313 = vmatprep.subr.bf16.mxu0 0
        %1314 = vmatpush1.bf16.msra.mxu0 0
        %1315 = vmatprep.mubr.bf16.mxu0 0
        %1316 = vmatmul.mubr.bf16.gmra.mrb[0].mxu0 %v1267
        %v1317 = vpop.f32.mrb[0].mxu0
        %v1318 = vadd.f32 %v1248, %v1317
        %v1319 = vpop.f32.mrb[0].mxu0
        %v1320 = vadd.f32 %v1252, %v1319
        %v1321 = vpop.f32.mrb[0].mxu0
        %v1322 = vpop.f32.mrb[0].mxu0
        %1323 = vdwg.mxu0
        %1324 = vmatprep.subr.bf16.mxu0 %v1281
        %1325 = vmatpush1.bf16.msra.mxu0 %v1278
        %1326 = vmatprep.subr.bf16.mxu0 0
        %1327 = vmatpush1.bf16.msra.mxu0 0
        %1328 = vmatprep.subr.bf16.mxu0 0
        %1329 = vmatpush1.bf16.msra.mxu0 0
        %1330 = vmatprep.subr.bf16.mxu0 0
        %1331 = vmatpush1.bf16.msra.mxu0 0
        %1332 = vmatprep.subr.bf16.mxu0 0
        %1333 = vmatpush1.bf16.msra.mxu0 0
        %1334 = vmatprep.subr.bf16.mxu0 0
        %1335 = vmatpush1.bf16.msra.mxu0 0
        %1336 = vmatprep.subr.bf16.mxu0 0
        %1337 = vmatpush1.bf16.msra.mxu0 0
        %1338 = vmatprep.subr.bf16.mxu0 0
        %1339 = vmatpush1.bf16.msra.mxu0 0
        %1340 = vmatprep.subr.bf16.mxu0 0
        %1341 = vmatpush1.bf16.msra.mxu0 0
        %1342 = vmatprep.subr.bf16.mxu0 0
        %1343 = vmatpush1.bf16.msra.mxu0 0
        %1344 = vmatprep.subr.bf16.mxu0 0
        %1345 = vmatpush1.bf16.msra.mxu0 0
        %1346 = vmatprep.subr.bf16.mxu0 0
        %1347 = vmatpush1.bf16.msra.mxu0 0
        %1348 = vmatprep.subr.bf16.mxu0 0
        %1349 = vmatpush1.bf16.msra.mxu0 0
        %1350 = vmatprep.subr.bf16.mxu0 0
        %1351 = vmatpush1.bf16.msra.mxu0 0
        %1352 = vmatprep.subr.bf16.mxu0 0
        %1353 = vmatpush1.bf16.msra.mxu0 0
        %1354 = vmatprep.subr.bf16.mxu0 0
        %1355 = vmatpush1.bf16.msra.mxu0 0
        %1356 = vmatprep.mubr.bf16.mxu0 0
        %1357 = vmatmul.mubr.bf16.gmra.mrb[0].mxu0 %v1267
        %v1358 = vpop.f32.mrb[0].mxu0
        %v1359 = vadd.f32 %v1256, %v1358
        %v1360 = vpop.f32.mrb[0].mxu0
        %v1361 = vadd.f32 %v1260, %v1360
        %v1362 = vpop.f32.mrb[0].mxu0
        %v1363 = vpop.f32.mrb[0].mxu0
        %1364 = vdwg.mxu0
        %v1365 = vlaneseq
        %v1366 = vshrl.u32 %v1365, 7
        %v1367 = vsub.s32 0, %v1366
        %v1368 = vrot.slane %v1318, %v1367
        %v1369 = vlaneseq
        %v1370 = vshrl.u32 %v1369, 7
        %v1371 = vsub.s32 0, %v1370
        %v1372 = vrot.slane %v1320, %v1371
        %v1373 = vlaneseq
        %v1374 = vshrl.u32 %v1373, 7
        %v1375 = vsub.s32 0, %v1374
        %v1376 = vrot.slane %v1359, %v1375
        %v1377 = vlaneseq
        %v1378 = vshrl.u32 %v1377, 7
        %v1379 = vsub.s32 0, %v1378
        %v1380 = vrot.slane %v1361, %v1379
        %v1381 = vadd.f32 %v1227, %v1368
        %v1382 = vadd.f32 %v1228, %v1372
        %v1383 = vadd.f32 %v1229, %v1376
        %v1384 = vadd.f32 %v1230, %v1380
        %v1385 = vpack.c.bf16 %v1382, %v1382
        %v1386 = vpack.c.bf16 %v1383, %v1383
        %v1387 = vpack.c.bf16 %v1384, %v1384
        %1388 = vmatprep.subr.bf16.mxu0 0
        %1389 = vmatpush1.bf16.xpose.msra.mxu0 %v1386
        %1390 = vmatprep.subr.bf16.mxu0 0
        %1391 = vmatpush1.bf16.xpose.msra.mxu0 0
        %1392 = vmatprep.subr.bf16.mxu0 0
        %1393 = vmatpush1.bf16.xpose.msra.mxu0 0
        %1394 = vmatprep.subr.bf16.mxu0 0
        %1395 = vmatpush1.bf16.xpose.msra.mxu0 0
        %1396 = vmatprep.subr.bf16.mxu0 0
        %1397 = vmatpush1.bf16.xpose.msra.mxu0 0
        %1398 = vmatprep.subr.bf16.mxu0 0
        %1399 = vmatpush1.bf16.xpose.msra.mxu0 0
        %1400 = vmatprep.subr.bf16.mxu0 0
        %1401 = vmatpush1.bf16.xpose.msra.mxu0 0
        %1402 = vmatprep.subr.bf16.mxu0 0
        %1403 = vmatpush1.bf16.xpose.msra.mxu0 0
        %1404 = vmatprep.subr.bf16.mxu0 0
        %1405 = vmatpush1.bf16.xpose.msra.mxu0 0
        %1406 = vmatprep.subr.bf16.mxu0 0
        %1407 = vmatpush1.bf16.xpose.msra.mxu0 0
        %1408 = vmatprep.subr.bf16.mxu0 0
        %1409 = vmatpush1.bf16.xpose.msra.mxu0 0
        %1410 = vmatprep.subr.bf16.mxu0 0
        %1411 = vmatpush1.bf16.xpose.msra.mxu0 0
        %1412 = vmatprep.subr.bf16.mxu0 0
        %1413 = vmatpush1.bf16.xpose.msra.mxu0 0
        %1414 = vmatprep.subr.bf16.mxu0 0
        %1415 = vmatpush1.bf16.xpose.msra.mxu0 0
        %1416 = vmatprep.subr.bf16.mxu0 0
        %1417 = vmatpush1.bf16.xpose.msra.mxu0 0
        %1418 = vmatprep.subr.bf16.mxu0 0
        %1419 = vmatpush1.bf16.xpose.msra.mxu0 0
        %1420 = vmatprep.mubr.bf16.mxu0 0
        %1421 = vmatmul.mubr.bf16.gmra.mrb[0].mxu0 %v1385
        %v1422 = vpop.f32.mrb[0].mxu0
        %v1423 = vadd.f32 0.0, %v1422
        %v1424 = vpop.f32.mrb[0].mxu0
        %v1425 = vpop.f32.mrb[0].mxu0
        %v1426 = vpop.f32.mrb[0].mxu0
        %1427 = vdwg.mxu0
        %vm1428 = vcmask 64512
        %v1429 = vsel %vm1428, %v1423, -inf
        %1430 = vmax.xlane.f32.xlu0 %v1429
        %v1431 = vpop.xlane.xlu0 %1430
        %v1432 = vsub.f32 %v1423, %v1431
        %v1433 = vmul.f32 %v1432, 1.442695
        %v1434 = vpow.pop %v1433
        %v1435 = vsel %vm1428, %v1434, 0.0
        %1436 = vadd.xlane.f32.xlu0 %v1435
        %v1437 = vpop.xlane.xlu0 %1436
        %v1438 = vrcp.pop %v1437
        %v1439 = vmul.f32 %v1434, %v1438
        %v1440 = vpack.c.bf16 %v1439, %v1439
        %v1442 = vsel %vm1428, %v1440, 0
        %vm1444 = vcmask 1043456
        %v1446 = vsel %vm1444, %v1387, 0
        %1448 = vmatprep.subr.bf16.mxu0 0
        %1449 = vmatpush1.bf16.msra.mxu0 %v1446
        %1450 = vmatprep.subr.bf16.mxu0 0
        %1451 = vmatpush1.bf16.msra.mxu0 0
        %1452 = vmatprep.subr.bf16.mxu0 0
        %1453 = vmatpush1.bf16.msra.mxu0 0
        %1454 = vmatprep.subr.bf16.mxu0 0
        %1455 = vmatpush1.bf16.msra.mxu0 0
        %1456 = vmatprep.subr.bf16.mxu0 0
        %1457 = vmatpush1.bf16.msra.mxu0 0
        %1458 = vmatprep.subr.bf16.mxu0 0
        %1459 = vmatpush1.bf16.msra.mxu0 0
        %1460 = vmatprep.subr.bf16.mxu0 0
        %1461 = vmatpush1.bf16.msra.mxu0 0
        %1462 = vmatprep.subr.bf16.mxu0 0
        %1463 = vmatpush1.bf16.msra.mxu0 0
        %1464 = vmatprep.subr.bf16.mxu0 0
        %1465 = vmatpush1.bf16.msra.mxu0 0
        %1466 = vmatprep.subr.bf16.mxu0 0
        %1467 = vmatpush1.bf16.msra.mxu0 0
        %1468 = vmatprep.subr.bf16.mxu0 0
        %1469 = vmatpush1.bf16.msra.mxu0 0
        %1470 = vmatprep.subr.bf16.mxu0 0
        %1471 = vmatpush1.bf16.msra.mxu0 0
        %1472 = vmatprep.subr.bf16.mxu0 0
        %1473 = vmatpush1.bf16.msra.mxu0 0
        %1474 = vmatprep.subr.bf16.mxu0 0
        %1475 = vmatpush1.bf16.msra.mxu0 0
        %1476 = vmatprep.subr.bf16.mxu0 0
        %1477 = vmatpush1.bf16.msra.mxu0 0
        %1478 = vmatprep.subr.bf16.mxu0 0
        %1479 = vmatpush1.bf16.msra.mxu0 0
        %1480 = vmatprep.mubr.bf16.mxu0 0
        %1481 = vmatmul.mubr.bf16.gmra.mrb[0].mxu0 %v1442
        %v1482 = vpop.f32.mrb[0].mxu0
        %v1483 = vadd.f32 0.0, %v1482
        %v1484 = vpop.f32.mrb[0].mxu0
        %v1485 = vpop.f32.mrb[0].mxu0
        %v1486 = vpop.f32.mrb[0].mxu0
        %1487 = vdwg.mxu0
        %v1488 = vadd.f32 %v1381, %v1483
        %v1489 = vpack.c.bf16 %v1488, %v1488
        %v1490 = vld [vmem:[#allocation13] sm:$0xf]
        %v1491 = vld [vmem:[#allocation13 + $0x4] sm:$0xf]
        %v1492 = vld [vmem:[#allocation13 + $0x8] sm:$0xf]
        %v1493 = vld [vmem:[#allocation13 + $0xc] sm:$0xf]
        %v1494 = vld [vmem:[#allocation13 + $0x10] sm:$0xf]
        %v1495 = vld [vmem:[#allocation13 + $0x14] sm:$0xf]
        %v1496 = vld [vmem:[#allocation13 + $0x18] sm:$0xf]
        %v1497 = vld [vmem:[#allocation13 + $0x1c] sm:$0xf]
        %v1498 = vld [vmem:[#allocation13 + $0x20] sm:$0xf]
        %v1499 = vld [vmem:[#allocation13 + $0x24] sm:$0xf]
        %v1500 = vld [vmem:[#allocation13 + $0x28] sm:$0xf]
        %v1501 = vld [vmem:[#allocation13 + $0x2c] sm:$0xf]
        %v1502 = vld [vmem:[#allocation13 + $0x30] sm:$0xf]
        %v1503 = vld [vmem:[#allocation13 + $0x34] sm:$0xf]
        %v1504 = vld [vmem:[#allocation13 + $0x38] sm:$0xf]
        %v1505 = vld [vmem:[#allocation13 + $0x3c] sm:$0xf]
        %v1506 = vld [vmem:[#allocation14] sm:$0x1]
        %v1508 = vlaneseq
        %v1509 = vshrl.u32 %v1508, 7
        %v1510 = vsub.s32 0, %v1509
        %v1511 = vrot.slane %v1506, %v1510
        %v1529 = vunpack.c.l.b16 %v1490
        %v1530 = vunpack.c.l.b16 %v1491
        %v1531 = vunpack.c.l.b16 %v1492
        %v1532 = vunpack.c.l.b16 %v1493
        %v1533 = vunpack.c.l.b16 %v1494
        %v1534 = vunpack.c.l.b16 %v1495
        %v1535 = vunpack.c.l.b16 %v1496
        %v1536 = vunpack.c.l.b16 %v1497
        %v1537 = vunpack.c.l.b16 %v1498
        %v1538 = vunpack.c.l.b16 %v1499
        %v1539 = vunpack.c.l.b16 %v1500
        %v1540 = vunpack.c.l.b16 %v1501
        %v1541 = vunpack.c.l.b16 %v1502
        %v1542 = vunpack.c.l.b16 %v1503
        %v1543 = vunpack.c.l.b16 %v1504
        %v1544 = vunpack.c.l.b16 %v1505
        %v1545 = vpack.c.b16 %v1530, %v1529
        %v1546 = vpack.c.b16 %v1532, %v1531
        %v1547 = vpack.c.b16 %v1534, %v1533
        %v1548 = vpack.c.b16 %v1536, %v1535
        %v1549 = vpack.c.b16 %v1538, %v1537
        %v1550 = vpack.c.b16 %v1540, %v1539
        %v1551 = vpack.c.b16 %v1542, %v1541
        %v1552 = vpack.c.b16 %v1544, %v1543
        %1561 = vmatprep.subr.bf16.mxu0 0
        %1562 = vmatpush1.bf16.msra.mxu0 %v1545
        %1563 = vmatprep.subr.bf16.mxu0 0
        %1564 = vmatpush1.bf16.msra.mxu0 %v1546
        %1565 = vmatprep.subr.bf16.mxu0 0
        %1566 = vmatpush1.bf16.msra.mxu0 %v1547
        %1567 = vmatprep.subr.bf16.mxu0 0
        %1568 = vmatpush1.bf16.msra.mxu0 %v1548
        %1569 = vmatprep.subr.bf16.mxu0 0
        %1570 = vmatpush1.bf16.msra.mxu0 %v1549
        %1571 = vmatprep.subr.bf16.mxu0 0
        %1572 = vmatpush1.bf16.msra.mxu0 %v1550
        %1573 = vmatprep.subr.bf16.mxu0 0
        %1574 = vmatpush1.bf16.msra.mxu0 %v1551
        %1575 = vmatprep.subr.bf16.mxu0 0
        %1576 = vmatpush1.bf16.msra.mxu0 %v1552
        %1577 = vmatprep.subr.bf16.mxu0 0
        %1578 = vmatpush1.bf16.msra.mxu0 0
        %1579 = vmatprep.subr.bf16.mxu0 0
        %1580 = vmatpush1.bf16.msra.mxu0 0
        %1581 = vmatprep.subr.bf16.mxu0 0
        %1582 = vmatpush1.bf16.msra.mxu0 0
        %1583 = vmatprep.subr.bf16.mxu0 0
        %1584 = vmatpush1.bf16.msra.mxu0 0
        %1585 = vmatprep.subr.bf16.mxu0 0
        %1586 = vmatpush1.bf16.msra.mxu0 0
        %1587 = vmatprep.subr.bf16.mxu0 0
        %1588 = vmatpush1.bf16.msra.mxu0 0
        %1589 = vmatprep.subr.bf16.mxu0 0
        %1590 = vmatpush1.bf16.msra.mxu0 0
        %1591 = vmatprep.subr.bf16.mxu0 0
        %1592 = vmatpush1.bf16.msra.mxu0 0
        %1593 = vmatprep.mubr.bf16.mxu0 0
        %1594 = vmatmul.mubr.bf16.gmra.mrb[0].mxu0 %v1489
        %v1595 = vpop.f32.mrb[0].mxu0
        %v1596 = vadd.f32 %v1511, %v1595
        %v1597 = vpop.f32.mrb[0].mxu0
        %v1598 = vpop.f32.mrb[0].mxu0
        %v1599 = vpop.f32.mrb[0].mxu0
        %1600 = vdwg.mxu0
        %v1601 = vtanh.pop %v1596
        %v1602 = vpack.c.bf16 %v1601, %v1601
        %v1603 = vld [vmem:[%s13] sm:$0xff]
        %v1604 = vld [vmem:[%s13 + $0x8] sm:$0xff]
        %v1605 = vld [vmem:[%s13 + $0x10] sm:$0xff]
        %v1606 = vld [vmem:[%s13 + $0x18] sm:$0xff]
        %v1607 = vld [vmem:[%s13 + $0x20] sm:$0xff]
        %v1608 = vld [vmem:[%s13 + $0x28] sm:$0xff]
        %v1609 = vld [vmem:[%s13 + $0x30] sm:$0xff]
        %v1610 = vld [vmem:[%s13 + $0x38] sm:$0xff]
        %v1611 = vld [vmem:[%s13 + $0x40] sm:$0xff]
        %v1612 = vld [vmem:[%s13 + $0x48] sm:$0xff]
        %v1613 = vld [vmem:[%s13 + $0x50] sm:$0xff]
        %v1614 = vld [vmem:[%s13 + $0x58] sm:$0xff]
        %v1615 = vld [vmem:[%s13 + $0x60] sm:$0xff]
        %v1616 = vld [vmem:[%s13 + $0x68] sm:$0xff]
        %v1617 = vld [vmem:[%s13 + $0x70] sm:$0xff]
        %v1618 = vld [vmem:[%s13 + $0x78] sm:$0xff]
        %v1619 = vld [vmem:[#allocation16] sm:$0x77]
        %v1621 = vunpack.c.l.b16 %v1619
        %v1622 = vunpack.c.h.b16 %v1619
        %v1623 = vpack.c.b16 %v1621, %v1621
        %v1624 = vpack.c.b16 %v1622, %v1622
        %v1626 = vsel %vm869, %v1623, 0
        %v1629 = vsel %vm869, %v1624, 0
        %1631 = vmatprep.subr.bf16.mxu0 %v1629
        %1632 = vmatpush1.bf16.msra.mxu0 %v1626
        %1633 = vmatprep.subr.bf16.mxu0 0
        %1634 = vmatpush1.bf16.msra.mxu0 0
        %1635 = vmatprep.subr.bf16.mxu0 0
        %1636 = vmatpush1.bf16.msra.mxu0 0
        %1637 = vmatprep.subr.bf16.mxu0 0
        %1638 = vmatpush1.bf16.msra.mxu0 0
        %1639 = vmatprep.subr.bf16.mxu0 0
        %1640 = vmatpush1.bf16.msra.mxu0 0
        %1641 = vmatprep.subr.bf16.mxu0 0
        %1642 = vmatpush1.bf16.msra.mxu0 0
        %1643 = vmatprep.subr.bf16.mxu0 0
        %1644 = vmatpush1.bf16.msra.mxu0 0
        %1645 = vmatprep.subr.bf16.mxu0 0
        %1646 = vmatpush1.bf16.msra.mxu0 0
        %1647 = vmatprep.subr.bf16.mxu0 0
        %1648 = vmatpush1.bf16.msra.mxu0 0
        %1649 = vmatprep.subr.bf16.mxu0 0
        %1650 = vmatpush1.bf16.msra.mxu0 0
        %1651 = vmatprep.subr.bf16.mxu0 0
        %1652 = vmatpush1.bf16.msra.mxu0 0
        %1653 = vmatprep.subr.bf16.mxu0 0
        %1654 = vmatpush1.bf16.msra.mxu0 0
        %1655 = vmatprep.subr.bf16.mxu0 0
        %1656 = vmatpush1.bf16.msra.mxu0 0
        %1657 = vmatprep.subr.bf16.mxu0 0
        %1658 = vmatpush1.bf16.msra.mxu0 0
        %1659 = vmatprep.subr.bf16.mxu0 0
        %1660 = vmatpush1.bf16.msra.mxu0 0
        %1661 = vmatprep.subr.bf16.mxu0 0
        %1662 = vmatpush1.bf16.msra.mxu0 0
        %1663 = vmatprep.mubr.bf16.mxu0 0
        %1664 = vmatmul.mubr.bf16.gmra.mrb[0].mxu0 %v975
        %v1665 = vpop.f32.mrb[0].mxu0
        %v1666 = vadd.f32 0.0, %v1665
        %v1667 = vpop.f32.mrb[0].mxu0
        %v1668 = vadd.f32 0.0, %v1667
        %v1669 = vpop.f32.mrb[0].mxu0
        %v1670 = vpop.f32.mrb[0].mxu0
        %1671 = vdwg.mxu0
        %v1688 = vunpack.c.l.b16 %v1603
        %v1689 = vunpack.c.h.b16 %v1603
        %v1690 = vunpack.c.l.b16 %v1604
        %v1691 = vunpack.c.h.b16 %v1604
        %v1692 = vunpack.c.l.b16 %v1605
        %v1693 = vunpack.c.h.b16 %v1605
        %v1694 = vunpack.c.l.b16 %v1606
        %v1695 = vunpack.c.h.b16 %v1606
        %v1696 = vunpack.c.l.b16 %v1607
        %v1697 = vunpack.c.h.b16 %v1607
        %v1698 = vunpack.c.l.b16 %v1608
        %v1699 = vunpack.c.h.b16 %v1608
        %v1700 = vunpack.c.l.b16 %v1609
        %v1701 = vunpack.c.h.b16 %v1609
        %v1702 = vunpack.c.l.b16 %v1610
        %v1703 = vunpack.c.h.b16 %v1610
        %v1704 = vunpack.c.l.b16 %v1611
        %v1705 = vunpack.c.h.b16 %v1611
        %v1706 = vunpack.c.l.b16 %v1612
        %v1707 = vunpack.c.h.b16 %v1612
        %v1708 = vunpack.c.l.b16 %v1613
        %v1709 = vunpack.c.h.b16 %v1613
        %v1710 = vunpack.c.l.b16 %v1614
        %v1711 = vunpack.c.h.b16 %v1614
        %v1712 = vunpack.c.l.b16 %v1615
        %v1713 = vunpack.c.h.b16 %v1615
        %v1714 = vunpack.c.l.b16 %v1616
        %v1715 = vunpack.c.h.b16 %v1616
        %v1716 = vunpack.c.l.b16 %v1617
        %v1717 = vunpack.c.h.b16 %v1617
        %v1718 = vunpack.c.l.b16 %v1618
        %v1719 = vunpack.c.h.b16 %v1618
        %v1720 = vpack.c.b16 %v1690, %v1688
        %v1721 = vpack.c.b16 %v1691, %v1689
        %v1722 = vpack.c.b16 %v1694, %v1692
        %v1723 = vpack.c.b16 %v1695, %v1693
        %v1724 = vpack.c.b16 %v1698, %v1696
        %v1725 = vpack.c.b16 %v1699, %v1697
        %v1726 = vpack.c.b16 %v1702, %v1700
        %v1727 = vpack.c.b16 %v1703, %v1701
        %v1728 = vpack.c.b16 %v1706, %v1704
        %v1729 = vpack.c.b16 %v1707, %v1705
        %v1730 = vpack.c.b16 %v1710, %v1708
        %v1731 = vpack.c.b16 %v1711, %v1709
        %v1732 = vpack.c.b16 %v1714, %v1712
        %v1733 = vpack.c.b16 %v1715, %v1713
        %v1734 = vpack.c.b16 %v1718, %v1716
        %v1735 = vpack.c.b16 %v1719, %v1717
        %1752 = vmatprep.subr.bf16.mxu0 %v1721
        %1753 = vmatpush1.bf16.msra.mxu0 %v1720
        %1754 = vmatprep.subr.bf16.mxu0 %v1723
        %1755 = vmatpush1.bf16.msra.mxu0 %v1722
        %1756 = vmatprep.subr.bf16.mxu0 %v1725
        %1757 = vmatpush1.bf16.msra.mxu0 %v1724
        %1758 = vmatprep.subr.bf16.mxu0 %v1727
        %1759 = vmatpush1.bf16.msra.mxu0 %v1726
        %1760 = vmatprep.subr.bf16.mxu0 %v1729
        %1761 = vmatpush1.bf16.msra.mxu0 %v1728
        %1762 = vmatprep.subr.bf16.mxu0 %v1731
        %1763 = vmatpush1.bf16.msra.mxu0 %v1730
        %1764 = vmatprep.subr.bf16.mxu0 %v1733
        %1765 = vmatpush1.bf16.msra.mxu0 %v1732
        %1766 = vmatprep.subr.bf16.mxu0 %v1735
        %1767 = vmatpush1.bf16.msra.mxu0 %v1734
        %1768 = vmatprep.subr.bf16.mxu0 0
        %1769 = vmatpush1.bf16.msra.mxu0 0
        %1770 = vmatprep.subr.bf16.mxu0 0
        %1771 = vmatpush1.bf16.msra.mxu0 0
        %1772 = vmatprep.subr.bf16.mxu0 0
        %1773 = vmatpush1.bf16.msra.mxu0 0
        %1774 = vmatprep.subr.bf16.mxu0 0
        %1775 = vmatpush1.bf16.msra.mxu0 0
        %1776 = vmatprep.subr.bf16.mxu0 0
        %1777 = vmatpush1.bf16.msra.mxu0 0
        %1778 = vmatprep.subr.bf16.mxu0 0
        %1779 = vmatpush1.bf16.msra.mxu0 0
        %1780 = vmatprep.subr.bf16.mxu0 0
        %1781 = vmatpush1.bf16.msra.mxu0 0
        %1782 = vmatprep.subr.bf16.mxu0 0
        %1783 = vmatpush1.bf16.msra.mxu0 0
        %1784 = vmatprep.mubr.bf16.mxu0 0
        %1785 = vmatmul.mubr.bf16.gmra.mrb[0].mxu0 %v1602
        %v1786 = vpop.f32.mrb[0].mxu0
        %v1787 = vadd.f32 %v1666, %v1786
        %v1788 = vpop.f32.mrb[0].mxu0
        %v1789 = vadd.f32 %v1668, %v1788
        %v1790 = vpop.f32.mrb[0].mxu0
        %v1791 = vpop.f32.mrb[0].mxu0
        %1792 = vdwg.mxu0
        %v1793 = vld [vmem:[%s15] sm:$0x77]
        %v1794 = vld [vmem:[%s16] sm:$0x3]
        %v1796 = vunpack.c.l.b16 %v1793
        %v1797 = vunpack.c.h.b16 %v1793
        %v1798 = vpack.c.b16 %v1796, %v1796
        %v1799 = vpack.c.b16 %v1797, %v1797
        %v1801 = vlaneseq
        %v1802 = vshrl.u32 %v1801, 7
        %v1803 = vsub.s32 0, %v1802
        %v1804 = vrot.slane %v1794, %v1803
        %v1805 = vlaneseq
        %v1806 = vshrl.u32 %v1805, 7
        %v1807 = vsub.s32 1, %v1806
        %v1808 = vrot.slane %v1794, %v1807
        %v1812 = vand.u32 %v1798, %v1270
        %v1815 = vand.u32 %v1799, %v1270
        %1817 = vmatprep.subr.bf16.mxu0 %v1815
        %1818 = vmatpush1.bf16.msra.mxu0 %v1812
        %1819 = vmatprep.subr.bf16.mxu0 0
        %1820 = vmatpush1.bf16.msra.mxu0 0
        %1821 = vmatprep.subr.bf16.mxu0 0
        %1822 = vmatpush1.bf16.msra.mxu0 0
        %1823 = vmatprep.subr.bf16.mxu0 0
        %1824 = vmatpush1.bf16.msra.mxu0 0
        %1825 = vmatprep.subr.bf16.mxu0 0
        %1826 = vmatpush1.bf16.msra.mxu0 0
        %1827 = vmatprep.subr.bf16.mxu0 0
        %1828 = vmatpush1.bf16.msra.mxu0 0
        %1829 = vmatprep.subr.bf16.mxu0 0
        %1830 = vmatpush1.bf16.msra.mxu0 0
        %1831 = vmatprep.subr.bf16.mxu0 0
        %1832 = vmatpush1.bf16.msra.mxu0 0
        %1833 = vmatprep.subr.bf16.mxu0 0
        %1834 = vmatpush1.bf16.msra.mxu0 0
        %1835 = vmatprep.subr.bf16.mxu0 0
        %1836 = vmatpush1.bf16.msra.mxu0 0
        %1837 = vmatprep.subr.bf16.mxu0 0
        %1838 = vmatpush1.bf16.msra.mxu0 0
        %1839 = vmatprep.subr.bf16.mxu0 0
        %1840 = vmatpush1.bf16.msra.mxu0 0
        %1841 = vmatprep.subr.bf16.mxu0 0
        %1842 = vmatpush1.bf16.msra.mxu0 0
        %1843 = vmatprep.subr.bf16.mxu0 0
        %1844 = vmatpush1.bf16.msra.mxu0 0
        %1845 = vmatprep.subr.bf16.mxu0 0
        %1846 = vmatpush1.bf16.msra.mxu0 0
        %1847 = vmatprep.subr.bf16.mxu0 0
        %1848 = vmatpush1.bf16.msra.mxu0 0
        %1849 = vmatprep.mubr.bf16.mxu0 0
        %1850 = vmatmul.mubr.bf16.gmra.mrb[0].mxu0 %v1267
        %v1851 = vpop.f32.mrb[0].mxu0
        %v1852 = vadd.f32 %v1804, %v1851
        %v1853 = vpop.f32.mrb[0].mxu0
        %v1854 = vadd.f32 %v1808, %v1853
        %v1855 = vpop.f32.mrb[0].mxu0
        %v1856 = vpop.f32.mrb[0].mxu0
        %1857 = vdwg.mxu0
        %v1858 = vlaneseq
        %v1859 = vshrl.u32 %v1858, 7
        %v1860 = vsub.s32 0, %v1859
        %v1861 = vrot.slane %v1852, %v1860
        %v1862 = vlaneseq
        %v1863 = vshrl.u32 %v1862, 7
        %v1864 = vsub.s32 0, %v1863
        %v1865 = vrot.slane %v1854, %v1864
        %v1866 = vadd.f32 %v1787, %v1861
        %v1867 = vadd.f32 %v1789, %v1865
        %v1868 = vmax.f32 %v1866, 0.0
        %v1869 = vmax.f32 %v1867, 0.0
        %v1870 = vpack.c.bf16 %v1868, %v1868
        %v1871 = vpack.c.bf16 %v1869, %v1869
        %v1872 = vld [vmem:[#allocation17] sm:$0xf]
        %v1873 = vld [vmem:[#allocation17 + $0x4] sm:$0xf]
        %v1874 = vld [vmem:[#allocation17 + $0x8] sm:$0xf]
        %v1875 = vld [vmem:[#allocation17 + $0xc] sm:$0xf]
        %v1876 = vld [vmem:[#allocation17 + $0x10] sm:$0xf]
        %v1877 = vld [vmem:[#allocation17 + $0x14] sm:$0xf]
        %v1878 = vld [vmem:[#allocation17 + $0x18] sm:$0xf]
        %v1879 = vld [vmem:[#allocation17 + $0x1c] sm:$0xf]
        %v1880 = vld [vmem:[#allocation17 + $0x20] sm:$0xf]
        %v1881 = vld [vmem:[#allocation17 + $0x24] sm:$0xf]
        %v1882 = vld [vmem:[#allocation17 + $0x28] sm:$0xf]
        %v1883 = vld [vmem:[#allocation17 + $0x2c] sm:$0xf]
        %v1884 = vld [vmem:[#allocation17 + $0x30] sm:$0xf]
        %v1885 = vld [vmem:[#allocation17 + $0x34] sm:$0xf]
        %v1886 = vld [vmem:[#allocation17 + $0x38] sm:$0xf]
        %v1887 = vld [vmem:[#allocation17 + $0x3c] sm:$0xf]
        %v1888 = vld [vmem:[#allocation19] sm:$0xf]
        %v1889 = vld [vmem:[#allocation19 + $0x4] sm:$0xf]
        %v1890 = vld [vmem:[#allocation19 + $0x8] sm:$0xf]
        %v1891 = vld [vmem:[#allocation19 + $0xc] sm:$0xf]
        %v1892 = vld [vmem:[#allocation19 + $0x10] sm:$0xf]
        %v1893 = vld [vmem:[#allocation19 + $0x14] sm:$0xf]
        %v1894 = vld [vmem:[#allocation19 + $0x18] sm:$0xf]
        %v1895 = vld [vmem:[#allocation19 + $0x1c] sm:$0xf]
        %v1896 = vld [vmem:[#allocation19 + $0x20] sm:$0xf]
        %v1897 = vld [vmem:[#allocation19 + $0x24] sm:$0xf]
        %v1898 = vld [vmem:[#allocation19 + $0x28] sm:$0xf]
        %v1899 = vld [vmem:[#allocation19 + $0x2c] sm:$0xf]
        %v1900 = vld [vmem:[#allocation19 + $0x30] sm:$0xf]
        %v1901 = vld [vmem:[#allocation19 + $0x34] sm:$0xf]
        %v1902 = vld [vmem:[#allocation19 + $0x38] sm:$0xf]
        %v1903 = vld [vmem:[#allocation19 + $0x3c] sm:$0xf]
        %v1904 = vld [vmem:[#allocation19 + $0x40] sm:$0xf]
        %v1905 = vld [vmem:[#allocation19 + $0x44] sm:$0xf]
        %v1906 = vld [vmem:[#allocation19 + $0x48] sm:$0xf]
        %v1907 = vld [vmem:[#allocation19 + $0x4c] sm:$0xf]
        %v1908 = vld [vmem:[#allocation19 + $0x50] sm:$0xf]
        %v1909 = vld [vmem:[#allocation19 + $0x54] sm:$0xf]
        %v1910 = vld [vmem:[#allocation19 + $0x58] sm:$0xf]
        %v1911 = vld [vmem:[#allocation19 + $0x5c] sm:$0xf]
        %v1912 = vld [vmem:[#allocation19 + $0x60] sm:$0xf]
        %v1913 = vld [vmem:[#allocation19 + $0x64] sm:$0xf]
        %v1914 = vld [vmem:[#allocation19 + $0x68] sm:$0xf]
        %v1915 = vld [vmem:[#allocation19 + $0x6c] sm:$0xf]
        %v1916 = vld [vmem:[#allocation19 + $0x70] sm:$0xf]
        %v1917 = vld [vmem:[#allocation19 + $0x74] sm:$0xf]
        %v1918 = vld [vmem:[#allocation19 + $0x78] sm:$0xf]
        %v1919 = vld [vmem:[#allocation19 + $0x7c] sm:$0xf]
        %v1952 = vunpack.c.l.b16 %v1888
        %v1953 = vunpack.c.l.b16 %v1889
        %v1954 = vunpack.c.l.b16 %v1890
        %v1955 = vunpack.c.l.b16 %v1891
        %v1956 = vunpack.c.l.b16 %v1892
        %v1957 = vunpack.c.l.b16 %v1893
        %v1958 = vunpack.c.l.b16 %v1894
        %v1959 = vunpack.c.l.b16 %v1895
        %v1960 = vunpack.c.l.b16 %v1896
        %v1961 = vunpack.c.l.b16 %v1897
        %v1962 = vunpack.c.l.b16 %v1898
        %v1963 = vunpack.c.l.b16 %v1899
        %v1964 = vunpack.c.l.b16 %v1900
        %v1965 = vunpack.c.l.b16 %v1901
        %v1966 = vunpack.c.l.b16 %v1902
        %v1967 = vunpack.c.l.b16 %v1903
        %v1968 = vunpack.c.l.b16 %v1904
        %v1969 = vunpack.c.l.b16 %v1905
        %v1970 = vunpack.c.l.b16 %v1906
        %v1971 = vunpack.c.l.b16 %v1907
        %v1972 = vunpack.c.l.b16 %v1908
        %v1973 = vunpack.c.l.b16 %v1909
        %v1974 = vunpack.c.l.b16 %v1910
        %v1975 = vunpack.c.l.b16 %v1911
        %v1976 = vunpack.c.l.b16 %v1912
        %v1977 = vunpack.c.l.b16 %v1913
        %v1978 = vunpack.c.l.b16 %v1914
        %v1979 = vunpack.c.l.b16 %v1915
        %v1980 = vunpack.c.l.b16 %v1916
        %v1981 = vunpack.c.l.b16 %v1917
        %v1982 = vunpack.c.l.b16 %v1918
        %v1983 = vunpack.c.l.b16 %v1919
        %v1984 = vpack.c.b16 %v1953, %v1952
        %v1985 = vpack.c.b16 %v1955, %v1954
        %v1986 = vpack.c.b16 %v1957, %v1956
        %v1987 = vpack.c.b16 %v1959, %v1958
        %v1988 = vpack.c.b16 %v1961, %v1960
        %v1989 = vpack.c.b16 %v1963, %v1962
        %v1990 = vpack.c.b16 %v1965, %v1964
        %v1991 = vpack.c.b16 %v1967, %v1966
        %v1992 = vpack.c.b16 %v1969, %v1968
        %v1993 = vpack.c.b16 %v1971, %v1970
        %v1994 = vpack.c.b16 %v1973, %v1972
        %v1995 = vpack.c.b16 %v1975, %v1974
        %v1996 = vpack.c.b16 %v1977, %v1976
        %v1997 = vpack.c.b16 %v1979, %v1978
        %v1998 = vpack.c.b16 %v1981, %v1980
        %v1999 = vpack.c.b16 %v1983, %v1982
        %2016 = vmatprep.subr.bf16.mxu0 0
        %2017 = vmatpush1.bf16.msra.mxu0 %v1984
        %2018 = vmatprep.subr.bf16.mxu0 0
        %2019 = vmatpush1.bf16.msra.mxu0 %v1985
        %2020 = vmatprep.subr.bf16.mxu0 0
        %2021 = vmatpush1.bf16.msra.mxu0 %v1986
        %2022 = vmatprep.subr.bf16.mxu0 0
        %2023 = vmatpush1.bf16.msra.mxu0 %v1987
        %2024 = vmatprep.subr.bf16.mxu0 0
        %2025 = vmatpush1.bf16.msra.mxu0 %v1988
        %2026 = vmatprep.subr.bf16.mxu0 0
        %2027 = vmatpush1.bf16.msra.mxu0 %v1989
        %2028 = vmatprep.subr.bf16.mxu0 0
        %2029 = vmatpush1.bf16.msra.mxu0 %v1990
        %2030 = vmatprep.subr.bf16.mxu0 0
        %2031 = vmatpush1.bf16.msra.mxu0 %v1991
        %2032 = vmatprep.subr.bf16.mxu0 0
        %2033 = vmatpush1.bf16.msra.mxu0 %v1992
        %2034 = vmatprep.subr.bf16.mxu0 0
        %2035 = vmatpush1.bf16.msra.mxu0 %v1993
        %2036 = vmatprep.subr.bf16.mxu0 0
        %2037 = vmatpush1.bf16.msra.mxu0 %v1994
        %2038 = vmatprep.subr.bf16.mxu0 0
        %2039 = vmatpush1.bf16.msra.mxu0 %v1995
        %2040 = vmatprep.subr.bf16.mxu0 0
        %2041 = vmatpush1.bf16.msra.mxu0 %v1996
        %2042 = vmatprep.subr.bf16.mxu0 0
        %2043 = vmatpush1.bf16.msra.mxu0 %v1997
        %2044 = vmatprep.subr.bf16.mxu0 0
        %2045 = vmatpush1.bf16.msra.mxu0 %v1998
        %2046 = vmatprep.subr.bf16.mxu0 0
        %2047 = vmatpush1.bf16.msra.mxu0 %v1999
        %2048 = vmatprep.mubr.bf16.mxu0 %v1871
        %2049 = vmatmul.mubr.bf16.gmra.mrb[0].mxu0 %v1870
        %v2050 = vpop.f32.mrb[0].mxu0
        %v2051 = vadd.f32 0.0, %v2050
        %v2052 = vpop.f32.mrb[0].mxu0
        %v2053 = vpop.f32.mrb[0].mxu0
        %v2054 = vpop.f32.mrb[0].mxu0
        %2055 = vdwg.mxu0
        %v2072 = vunpack.c.l.b16 %v1872
        %v2073 = vunpack.c.l.b16 %v1873
        %v2074 = vunpack.c.l.b16 %v1874
        %v2075 = vunpack.c.l.b16 %v1875
        %v2076 = vunpack.c.l.b16 %v1876
        %v2077 = vunpack.c.l.b16 %v1877
        %v2078 = vunpack.c.l.b16 %v1878
        %v2079 = vunpack.c.l.b16 %v1879
        %v2080 = vunpack.c.l.b16 %v1880
        %v2081 = vunpack.c.l.b16 %v1881
        %v2082 = vunpack.c.l.b16 %v1882
        %v2083 = vunpack.c.l.b16 %v1883
        %v2084 = vunpack.c.l.b16 %v1884
        %v2085 = vunpack.c.l.b16 %v1885
        %v2086 = vunpack.c.l.b16 %v1886
        %v2087 = vunpack.c.l.b16 %v1887
        %v2088 = vpack.c.b16 %v2073, %v2072
        %v2089 = vpack.c.b16 %v2075, %v2074
        %v2090 = vpack.c.b16 %v2077, %v2076
        %v2091 = vpack.c.b16 %v2079, %v2078
        %v2092 = vpack.c.b16 %v2081, %v2080
        %v2093 = vpack.c.b16 %v2083, %v2082
        %v2094 = vpack.c.b16 %v2085, %v2084
        %v2095 = vpack.c.b16 %v2087, %v2086
        %2104 = vmatprep.subr.bf16.mxu0 0
        %2105 = vmatpush1.bf16.msra.mxu0 %v2088
        %2106 = vmatprep.subr.bf16.mxu0 0
        %2107 = vmatpush1.bf16.msra.mxu0 %v2089
        %2108 = vmatprep.subr.bf16.mxu0 0
        %2109 = vmatpush1.bf16.msra.mxu0 %v2090
        %2110 = vmatprep.subr.bf16.mxu0 0
        %2111 = vmatpush1.bf16.msra.mxu0 %v2091
        %2112 = vmatprep.subr.bf16.mxu0 0
        %2113 = vmatpush1.bf16.msra.mxu0 %v2092
        %2114 = vmatprep.subr.bf16.mxu0 0
        %2115 = vmatpush1.bf16.msra.mxu0 %v2093
        %2116 = vmatprep.subr.bf16.mxu0 0
        %2117 = vmatpush1.bf16.msra.mxu0 %v2094
        %2118 = vmatprep.subr.bf16.mxu0 0
        %2119 = vmatpush1.bf16.msra.mxu0 %v2095
        %2120 = vmatprep.subr.bf16.mxu0 0
        %2121 = vmatpush1.bf16.msra.mxu0 0
        %2122 = vmatprep.subr.bf16.mxu0 0
        %2123 = vmatpush1.bf16.msra.mxu0 0
        %2124 = vmatprep.subr.bf16.mxu0 0
        %2125 = vmatpush1.bf16.msra.mxu0 0
        %2126 = vmatprep.subr.bf16.mxu0 0
        %2127 = vmatpush1.bf16.msra.mxu0 0
        %2128 = vmatprep.subr.bf16.mxu0 0
        %2129 = vmatpush1.bf16.msra.mxu0 0
        %2130 = vmatprep.subr.bf16.mxu0 0
        %2131 = vmatpush1.bf16.msra.mxu0 0
        %2132 = vmatprep.subr.bf16.mxu0 0
        %2133 = vmatpush1.bf16.msra.mxu0 0
        %2134 = vmatprep.subr.bf16.mxu0 0
        %2135 = vmatpush1.bf16.msra.mxu0 0
        %2136 = vmatprep.mubr.bf16.mxu0 0
        %2137 = vmatmul.mubr.bf16.gmra.mrb[0].mxu0 %v1602
        %v2138 = vpop.f32.mrb[0].mxu0
        %v2139 = vadd.f32 %v2051, %v2138
        %v2140 = vpop.f32.mrb[0].mxu0
        %v2141 = vpop.f32.mrb[0].mxu0
        %v2142 = vpop.f32.mrb[0].mxu0
        %2143 = vdwg.mxu0
        %v2144 = vld [vmem:[%s19] sm:$0x1]
        %v2146 = vlaneseq
        %v2147 = vshrl.u32 %v2146, 7
        %v2148 = vsub.s32 0, %v2147
        %v2149 = vrot.slane %v2144, %v2148
        %v2151 = vadd.f32 %v2139, %v2149
        %2152 = vst [vmem:[%s824] sm:$0xff] %v2151
        %s2153 = sand.u32 %s495, 1
        %s2154 = scalar_lea.sflag [#allocation4], %s2153
        %s2155 = sand.u32 %s495, 1
        %s2156 = smul.addr %s2155, 8
        %s2157 = scalar_lea.vmem [#allocation20], %s2156
        // Predicated region
        $region145: #{tpu_custom_call.1} parent=99 // pred_check
          %p2158 = pneg %p505
        $region146: #{tpu_custom_call.1} parent=99 // pred_check_branch
          %2160 = sbr.rel (%p2158) target = $region148
        $region147: #{tpu_custom_call.1} parent=99 // pred_region
          %s2162 = ssub.s32 128, 128
          %2163 = vsyncadd %s2154, %s2162
          %s2164 = smul.addr %s42, 128
          %s2165 = scalar_lea.hbm %s20, %s2164
          %s2167 = sshll.u32 %s2157, 4
          %s2168 = int_to_ptr.vmem [resolvable:$true] %s2167
          %2170 = dma.vmem_to_hbm [thread:$0]  %s2168, 128, %s2165, %s2154
        $region148: #{tpu_custom_call.1} parent=99 // pred_fallthru
          _
      $region100: #{tpu_custom_call.1} parent=5 // pred_fallthru
        _
      %p2171 = scmp.le.s32.totalorder 2, %s37
      // Predicated region
      $region149: #{tpu_custom_call.1} parent=5 // pred_check
        %p2172 = pneg %p2171
      $region150: #{tpu_custom_call.1} parent=5 // pred_check_branch
        %2174 = sbr.rel (%p2172) target = $region152
      $region151: #{tpu_custom_call.1} parent=5 // pred_region
        %s2175 = ssub.s32 %s37, 2
        // Predicated region
        $region153: #{tpu_custom_call.1} parent=151 // pred_check
          %p2176 = pneg %p511
        $region154: #{tpu_custom_call.1} parent=151 // pred_check_branch
          %2178 = sbr.rel (%p2176) target = $region156
        $region155: #{tpu_custom_call.1} parent=151 // pred_region
          %s2179 = sand.u32 %s496, 1
          %s2180 = scalar_lea.sflag [#allocation4], %s2179
          %s2181 = sand.u32 %s496, 1
          %s2182 = smul.addr %s2181, 8
          %s2183 = scalar_lea.vmem [#allocation20], %s2182
          %2184 = dma.done %s2180, 128
        $region156: #{tpu_custom_call.1} parent=151 // pred_fallthru
          _
      $region152: #{tpu_custom_call.1} parent=5 // pred_fallthru
        _
    $region6: #{tpu_custom_call.1} parent=1 // loop_footer
      %s41 = sadd.s32 1, %s37
    $region7: #{tpu_custom_call.1} parent=1 // loop_footer_branch
      %36 = sbr.rel target = $region3
    $region8: #{tpu_custom_call.1} parent=1 // loop_exit
      _
    %2185 = vsyncpa [#allocation3], 1
    %s2186 = scalar_lea.sflag [#allocation3], 1
    %2187 = vsyncpa %s2186, 1
    %2188 = vsyncpa [#allocation6], 1
    %2189 = vsyncpa [#allocation9], 1
    %2190 = vsyncpa [#allocation12], 1
    %2191 = vsyncpa [#allocation15], 1
    %2192 = vsyncpa [#allocation18], 1
    %2193 = vsyncpa [#allocation4], 1
    %s2194 = scalar_lea.sflag [#allocation4], 1
    %2195 = vsyncpa %s2194, 1

// kernel: tpu_custom_call.1
$region0: #{tpu_custom_call.1}
  #allocation0 [shape = 'u32[]', space=smem, size = 0x4, offset = 0x4, fixed_abs, tag = 'smem constant byte address 0x4 - core index']
  #allocation1 [shape = 'u32[144,128]{1,0:T(1,128)}', space=vmem, size = 0x12000, scoped, tag = 'internal scratch']
  %s0 = inlined_call_operand.vmem [shape: f32[2,8,6], index: 0, kind: input, shape index: {}]
  %s1 = inlined_call_operand.vmem [shape: f32[2,8,6], index: 1, kind: input, shape index: {}]
  %s2 = inlined_call_operand.vmem [shape: f32[2,8,3], index: 2, kind: input, shape index: {}]
  %s3 = inlined_call_operand.vmem [shape: f32[2,8,1], index: 3, kind: input, shape index: {}]
  %s4 = inlined_call_operand.hbm [shape: f32[2,1,5], index: 4, kind: input, shape index: {}]
  %s5 = inlined_call_operand.vmem [shape: bf16[6,512], index: 5, kind: input, shape index: {}]
  %s6 = inlined_call_operand.hbm [shape: bf16[6,512], index: 6, kind: input, shape index: {}]
  %s7 = inlined_call_operand.hbm [shape: bf16[3,512], index: 7, kind: input, shape index: {}]
  %s8 = inlined_call_operand.hbm [shape: f32[1,512], index: 8, kind: input, shape index: {}]
  %s9 = inlined_call_operand.hbm [shape: bf16[5,512], index: 9, kind: input, shape index: {}]
  %s10 = inlined_call_operand.hbm [shape: f32[1,512], index: 10, kind: input, shape index: {}]
  %s11 = inlined_call_operand.hbm [shape: bf16[128,128], index: 11, kind: input, shape index: {}]
  %s12 = inlined_call_operand.hbm [shape: f32[1,128], index: 12, kind: input, shape index: {}]
  %s13 = inlined_call_operand.vmem [shape: bf16[128,256], index: 13, kind: input, shape index: {}]
  %s14 = inlined_call_operand.hbm [shape: bf16[6,256], index: 14, kind: input, shape index: {}]
  %s15 = inlined_call_operand.vmem [shape: bf16[5,256], index: 15, kind: input, shape index: {}]
  %s16 = inlined_call_operand.vmem [shape: f32[1,256], index: 16, kind: input, shape index: {}]
  %s17 = inlined_call_operand.hbm [shape: bf16[128,128], index: 17, kind: input, shape index: {}]
  %s18 = inlined_call_operand.hbm [shape: bf16[256,128], index: 18, kind: input, shape index: {}]
  %s19 = inlined_call_operand.vmem [shape: f32[1,128], index: 19, kind: input, shape index: {}]
  %s20 = inlined_call_operand.hbm [shape: f32[2,8,128], index: 20, kind: output, shape index: {}]
  %s21 = sld [smem:[#allocation0]]
  $region157: #{tpu_custom_call.1} parent=0
    _
  %s23 = ssub.s32 1, %s21
  %s24 = scalar_select 0, %s23, %s21
  $region1: #{tpu_custom_call.1} parent=0
    #allocation2 [shape = 'u8[1024]{0}', space=vmem, size = 0x400, scoped, tag = 'input window, operand 4']
    #allocation3 [shape = 's32[2]{0}', space=sflag, size = 0x8, scoped, tag = 'scoped memory for tpu_custom_call.1']
    #allocation4 [shape = 's32[2]{0}', space=sflag, size = 0x8, scoped, tag = 'scoped memory for tpu_custom_call.1']
    #allocation5 [shape = 'u8[8192]{0}', space=vmem, size = 0x2000, scoped, tag = 'input window, operand 6, single buffered']
    #allocation6 [shape = 's32[1]{0}', space=sflag, size = 0x4, scoped, tag = 'scoped memory for tpu_custom_call.1']
    #allocation7 [shape = 'u8[4096]{0}', space=vmem, size = 0x1000, scoped, tag = 'input window, operand 7, single buffered']
    #allocation8 [shape = 'u8[2048]{0}', space=vmem, size = 0x800, scoped, tag = 'input window, operand 8, single buffered']
    #allocation9 [shape = 's32[1]{0}', space=sflag, size = 0x4, scoped, tag = 'scoped memory for tpu_custom_call.1']
    #allocation10 [shape = 'u8[8192]{0}', space=vmem, size = 0x2000, scoped, tag = 'input window, operand 9, single buffered']
    #allocation11 [shape = 'u8[2048]{0}', space=vmem, size = 0x800, scoped, tag = 'input window, operand 10, single buffered']
    #allocation12 [shape = 's32[1]{0}', space=sflag, size = 0x4, scoped, tag = 'scoped memory for tpu_custom_call.1']
    #allocation13 [shape = 'u8[32768]{0}', space=vmem, size = 0x8000, scoped, tag = 'input window, operand 11, single buffered']
    #allocation14 [shape = 'u8[512]{0}', space=vmem, size = 0x400, scoped, tag = 'input window, operand 12, single buffered']
    #allocation15 [shape = 's32[1]{0}', space=sflag, size = 0x4, scoped, tag = 'scoped memory for tpu_custom_call.1']
    #allocation16 [shape = 'u8[4096]{0}', space=vmem, size = 0x1000, scoped, tag = 'input window, operand 14, single buffered']
    #allocation17 [shape = 'u8[32768]{0}', space=vmem, size = 0x8000, scoped, tag = 'input window, operand 17, single buffered']
    #allocation18 [shape = 's32[1]{0}', space=sflag, size = 0x4, scoped, tag = 'scoped memory for tpu_custom_call.1']
    #allocation19 [shape = 'u8[65536]{0}', space=vmem, size = 0x10000, scoped, tag = 'input window, operand 18, single buffered']
    #allocation20 [shape = 'u8[8192]{0}', space=vmem, size = 0x2000, scoped, tag = 'output window, operand 0']
    %25 = vsyncpa [#allocation3], 0
    %s26 = scalar_lea.sflag [#allocation3], 1
    %27 = vsyncpa %s26, 0
    %28 = vsyncpa [#allocation6], 0
    %29 = vsyncpa [#allocation9], 0
    %30 = vsyncpa [#allocation12], 0
    %31 = vsyncpa [#allocation15], 0
    %32 = vsyncpa [#allocation18], 0
    %33 = vsyncpa [#allocation4], 0
    %s34 = scalar_lea.sflag [#allocation4], 1
    %35 = vsyncpa %s34, 0
    loop: start=0, step=1, limit=4
    $region2: #{tpu_custom_call.1} parent=1 // loop_pre_header
      _
    $region3: #{tpu_custom_call.1} parent=1 // loop_header
      %s37 = sphi 0, %s41
      %p38 = scmp.ge.s32.totalorder %s37, 4
      %s47 = sphi 0, %s49
      %s50 = sphi 0, %s47
      %s51 = sphi 0, %s50
      %s67 = sphi 0, %s51
      %s73 = sphi 0, %s75
      %s76 = sphi 0, %s73
      %s77 = sphi 0, %s76
      %s93 = sphi 0, %s77
      %s99 = sphi 0, %s101
      %s102 = sphi 0, %s99
      %s103 = sphi 0, %s102
      %s119 = sphi 0, %s103
      %s125 = sphi 0, %s127
      %s128 = sphi 0, %s125
      %s129 = sphi 0, %s128
      %s145 = sphi 0, %s129
      %s151 = sphi 0, %s153
      %s154 = sphi 0, %s151
      %s155 = sphi 0, %s154
      %s171 = sphi 0, %s155
      %s175 = sphi 0, %s175
      %s177 = sphi 0, %s175
      %s178 = sphi 0, %s177
      %s192 = sphi 0, %s178
      %s196 = sphi 0, %s196
      %s198 = sphi 0, %s196
      %s199 = sphi 0, %s198
      %s213 = sphi 0, %s199
      %s217 = sphi 0, %s217
      %s219 = sphi 0, %s217
      %s220 = sphi 0, %s219
      %s234 = sphi 0, %s220
      %s238 = sphi 0, %s238
      %s240 = sphi 0, %s238
      %s241 = sphi 0, %s240
      %s255 = sphi 0, %s241
      %s259 = sphi 0, %s259
      %s261 = sphi 0, %s259
      %s262 = sphi 0, %s261
      %s276 = sphi 0, %s262
      %s280 = sphi 0, %s280
      %s282 = sphi 0, %s280
      %s283 = sphi 0, %s282
      %s297 = sphi 0, %s283
      %s301 = sphi 0, %s301
      %s303 = sphi 0, %s301
      %s304 = sphi 0, %s303
      %s318 = sphi 0, %s304
      %s322 = sphi 0, %s322
      %s324 = sphi 0, %s322
      %s325 = sphi 0, %s324
      %s339 = sphi 0, %s325
      %s343 = sphi 0, %s343
      %s345 = sphi 0, %s343
      %s346 = sphi 0, %s345
      %s360 = sphi 0, %s346
      %s364 = sphi 0, %s364
      %s366 = sphi 0, %s364
      %s367 = sphi 0, %s366
      %s381 = sphi 0, %s367
      %s385 = sphi 0, %s385
      %s387 = sphi 0, %s385
      %s388 = sphi 0, %s387
      %s402 = sphi 0, %s388
      %s406 = sphi 0, %s406
      %s408 = sphi 0, %s406
      %s409 = sphi 0, %s408
      %s423 = sphi 0, %s409
      %s427 = sphi 0, %s427
      %s429 = sphi 0, %s427
      %s430 = sphi 0, %s429
      %s444 = sphi 0, %s430
      %s448 = sphi 0, %s448
      %s450 = sphi 0, %s448
      %s451 = sphi 0, %s450
      %s465 = sphi 0, %s451
      %s469 = sphi 0, %s469
      %s471 = sphi 0, %s469
      %s472 = sphi 0, %s471
      %s486 = sphi 0, %s472
      %s492 = sphi 0, %s494
      %s495 = sphi 0, %s492
      %s496 = sphi 0, %s495
      %s512 = sphi 0, %s496
    $region4: #{tpu_custom_call.1} parent=1 // loop_header_branch
      %40 = sbr.rel (%p38) target = $region8
    $region5: #{tpu_custom_call.1} parent=1 // loop_body
      %s42 = ssub.s32 %s37, 1
      %s43 = ssub.s32 %s37, 2
      %s44 = sadd.s32 %s37, 1
      %s45 = ssub.s32 %s37, %s44
      %p46 = scmp.eq.s32.totalorder %s45, 0
      %s48 = sadd.s32 %s47, 1
      %s49 = scalar_select %p46, %s47, %s48
      %p52 = pneg %p46
      %p53 = scmp.eq.s32.totalorder %s37, 1
      %p54 = por %p52, %p53
      %p55 = scmp.ne.s32.totalorder %s47, %s50
      %p56 = scmp.eq.s32.totalorder %s37, 0
      %p57 = por %p55, %p56
      %p58 = scmp.ne.s32.totalorder %s47, %s50
      %p59 = scmp.eq.s32.totalorder %s42, 1
      %p60 = por %p58, %p59
      %p61 = scmp.ne.s32.totalorder %s50, %s51
      %p62 = scmp.eq.s32.totalorder %s42, 0
      %p63 = por %p61, %p62
      %p64 = scmp.ne.s32.totalorder %s50, %s51
      %p65 = scmp.eq.s32.totalorder %s43, 1
      %p66 = por %p64, %p65
      %p68 = scmp.ne.s32.totalorder %s51, %s67
      %p69 = scmp.eq.s32.totalorder %s43, 0
      %p70 = por %p68, %p69
      %s71 = ssub.s32 %s37, %s44
      %p72 = scmp.eq.s32.totalorder %s71, 0
      %s74 = sadd.s32 %s73, 1
      %s75 = scalar_select %p72, %s73, %s74
      %p78 = pneg %p72
      %p79 = scmp.eq.s32.totalorder %s37, 1
      %p80 = por %p78, %p79
      %p81 = scmp.ne.s32.totalorder %s73, %s76
      %p82 = scmp.eq.s32.totalorder %s37, 0
      %p83 = por %p81, %p82
      %p84 = scmp.ne.s32.totalorder %s73, %s76
      %p85 = scmp.eq.s32.totalorder %s42, 1
      %p86 = por %p84, %p85
      %p87 = scmp.ne.s32.totalorder %s76, %s77
      %p88 = scmp.eq.s32.totalorder %s42, 0
      %p89 = por %p87, %p88
      %p90 = scmp.ne.s32.totalorder %s76, %s77
      %p91 = scmp.eq.s32.totalorder %s43, 1
      %p92 = por %p90, %p91
      %p94 = scmp.ne.s32.totalorder %s77, %s93
      %p95 = scmp.eq.s32.totalorder %s43, 0
      %p96 = por %p94, %p95
      %s97 = ssub.s32 %s37, %s44
      %p98 = scmp.eq.s32.totalorder %s97, 0
      %s100 = sadd.s32 %s99, 1
      %s101 = scalar_select %p98, %s99, %s100
      %p104 = pneg %p98
      %p105 = scmp.eq.s32.totalorder %s37, 1
      %p106 = por %p104, %p105
      %p107 = scmp.ne.s32.totalorder %s99, %s102
      %p108 = scmp.eq.s32.totalorder %s37, 0
      %p109 = por %p107, %p108
      %p110 = scmp.ne.s32.totalorder %s99, %s102
      %p111 = scmp.eq.s32.totalorder %s42, 1
      %p112 = por %p110, %p111
      %p113 = scmp.ne.s32.totalorder %s102, %s103
      %p114 = scmp.eq.s32.totalorder %s42, 0
      %p115 = por %p113, %p114
      %p116 = scmp.ne.s32.totalorder %s102, %s103
      %p117 = scmp.eq.s32.totalorder %s43, 1
      %p118 = por %p116, %p117
      %p120 = scmp.ne.s32.totalorder %s103, %s119
      %p121 = scmp.eq.s32.totalorder %s43, 0
      %p122 = por %p120, %p121
      %s123 = ssub.s32 %s37, %s44
      %p124 = scmp.eq.s32.totalorder %s123, 0
      %s126 = sadd.s32 %s125, 1
      %s127 = scalar_select %p124, %s125, %s126
      %p130 = pneg %p124
      %p131 = scmp.eq.s32.totalorder %s37, 1
      %p132 = por %p130, %p131
      %p133 = scmp.ne.s32.totalorder %s125, %s128
      %p134 = scmp.eq.s32.totalorder %s37, 0
      %p135 = por %p133, %p134
      %p136 = scmp.ne.s32.totalorder %s125, %s128
      %p137 = scmp.eq.s32.totalorder %s42, 1
      %p138 = por %p136, %p137
      %p139 = scmp.ne.s32.totalorder %s128, %s129
      %p140 = scmp.eq.s32.totalorder %s42, 0
      %p141 = por %p139, %p140
      %p142 = scmp.ne.s32.totalorder %s128, %s129
      %p143 = scmp.eq.s32.totalorder %s43, 1
      %p144 = por %p142, %p143
      %p146 = scmp.ne.s32.totalorder %s129, %s145
      %p147 = scmp.eq.s32.totalorder %s43, 0
      %p148 = por %p146, %p147
      %s149 = ssub.s32 %s37, %s44
      %p150 = scmp.eq.s32.totalorder %s149, 0
      %s152 = sadd.s32 %s151, 1
      %s153 = scalar_select %p150, %s151, %s152
      %p156 = pneg %p150
      %p157 = scmp.eq.s32.totalorder %s37, 1
      %p158 = por %p156, %p157
      %p159 = scmp.ne.s32.totalorder %s151, %s154
      %p160 = scmp.eq.s32.totalorder %s37, 0
      %p161 = por %p159, %p160
      %p162 = scmp.ne.s32.totalorder %s151, %s154
      %p163 = scmp.eq.s32.totalorder %s42, 1
      %p164 = por %p162, %p163
      %p165 = scmp.ne.s32.totalorder %s154, %s155
      %p166 = scmp.eq.s32.totalorder %s42, 0
      %p167 = por %p165, %p166
      %p168 = scmp.ne.s32.totalorder %s154, %s155
      %p169 = scmp.eq.s32.totalorder %s43, 1
      %p170 = por %p168, %p169
      %p172 = scmp.ne.s32.totalorder %s155, %s171
      %p173 = scmp.eq.s32.totalorder %s43, 0
      %p174 = por %p172, %p173
      %s176 = sadd.s32 %s175, 1
      %p179 = scmp.eq.s32.totalorder %s37, 1
      %p180 = scmp.ne.s32.totalorder %s175, %s177
      %p181 = scmp.eq.s32.totalorder %s37, 0
      %p182 = por %p180, %p181
      %p183 = scmp.ne.s32.totalorder %s175, %s177
      %p184 = scmp.eq.s32.totalorder %s42, 1
      %p185 = por %p183, %p184
      %p186 = scmp.ne.s32.totalorder %s177, %s178
      %p187 = scmp.eq.s32.totalorder %s42, 0
      %p188 = por %p186, %p187
      %p189 = scmp.ne.s32.totalorder %s177, %s178
      %p190 = scmp.eq.s32.totalorder %s43, 1
      %p191 = por %p189, %p190
      %p193 = scmp.ne.s32.totalorder %s178, %s192
      %p194 = scmp.eq.s32.totalorder %s43, 0
      %p195 = por %p193, %p194
      %s197 = sadd.s32 %s196, 1
      %p200 = scmp.eq.s32.totalorder %s37, 1
      %p201 = scmp.ne.s32.totalorder %s196, %s198
      %p202 = scmp.eq.s32.totalorder %s37, 0
      %p203 = por %p201, %p202
      %p204 = scmp.ne.s32.totalorder %s196, %s198
      %p205 = scmp.eq.s32.totalorder %s42, 1
      %p206 = por %p204, %p205
      %p207 = scmp.ne.s32.totalorder %s198, %s199
      %p208 = scmp.eq.s32.totalorder %s42, 0
      %p209 = por %p207, %p208
      %p210 = scmp.ne.s32.totalorder %s198, %s199
      %p211 = scmp.eq.s32.totalorder %s43, 1
      %p212 = por %p210, %p211
      %p214 = scmp.ne.s32.totalorder %s199, %s213
      %p215 = scmp.eq.s32.totalorder %s43, 0
      %p216 = por %p214, %p215
      %s218 = sadd.s32 %s217, 1
      %p221 = scmp.eq.s32.totalorder %s37, 1
      %p222 = scmp.ne.s32.totalorder %s217, %s219
      %p223 = scmp.eq.s32.totalorder %s37, 0
      %p224 = por %p222, %p223
      %p225 = scmp.ne.s32.totalorder %s217, %s219
      %p226 = scmp.eq.s32.totalorder %s42, 1
      %p227 = por %p225, %p226
      %p228 = scmp.ne.s32.totalorder %s219, %s220
      %p229 = scmp.eq.s32.totalorder %s42, 0
      %p230 = por %p228, %p229
      %p231 = scmp.ne.s32.totalorder %s219, %s220
      %p232 = scmp.eq.s32.totalorder %s43, 1
      %p233 = por %p231, %p232
      %p235 = scmp.ne.s32.totalorder %s220, %s234
      %p236 = scmp.eq.s32.totalorder %s43, 0
      %p237 = por %p235, %p236
      %s239 = sadd.s32 %s238, 1
      %p242 = scmp.eq.s32.totalorder %s37, 1
      %p243 = scmp.ne.s32.totalorder %s238, %s240
      %p244 = scmp.eq.s32.totalorder %s37, 0
      %p245 = por %p243, %p244
      %p246 = scmp.ne.s32.totalorder %s238, %s240
      %p247 = scmp.eq.s32.totalorder %s42, 1
      %p248 = por %p246, %p247
      %p249 = scmp.ne.s32.totalorder %s240, %s241
      %p250 = scmp.eq.s32.totalorder %s42, 0
      %p251 = por %p249, %p250
      %p252 = scmp.ne.s32.totalorder %s240, %s241
      %p253 = scmp.eq.s32.totalorder %s43, 1
      %p254 = por %p252, %p253
      %p256 = scmp.ne.s32.totalorder %s241, %s255
      %p257 = scmp.eq.s32.totalorder %s43, 0
      %p258 = por %p256, %p257
      %s260 = sadd.s32 %s259, 1
      %p263 = scmp.eq.s32.totalorder %s37, 1
      %p264 = scmp.ne.s32.totalorder %s259, %s261
      %p265 = scmp.eq.s32.totalorder %s37, 0
      %p266 = por %p264, %p265
      %p267 = scmp.ne.s32.totalorder %s259, %s261
      %p268 = scmp.eq.s32.totalorder %s42, 1
      %p269 = por %p267, %p268
      %p270 = scmp.ne.s32.totalorder %s261, %s262
      %p271 = scmp.eq.s32.totalorder %s42, 0
      %p272 = por %p270, %p271
      %p273 = scmp.ne.s32.totalorder %s261, %s262
      %p274 = scmp.eq.s32.totalorder %s43, 1
      %p275 = por %p273, %p274
      %p277 = scmp.ne.s32.totalorder %s262, %s276
      %p278 = scmp.eq.s32.totalorder %s43, 0
      %p279 = por %p277, %p278
      %s281 = sadd.s32 %s280, 1
      %p284 = scmp.eq.s32.totalorder %s37, 1
      %p285 = scmp.ne.s32.totalorder %s280, %s282
      %p286 = scmp.eq.s32.totalorder %s37, 0
      %p287 = por %p285, %p286
      %p288 = scmp.ne.s32.totalorder %s280, %s282
      %p289 = scmp.eq.s32.totalorder %s42, 1
      %p290 = por %p288, %p289
      %p291 = scmp.ne.s32.totalorder %s282, %s283
      %p292 = scmp.eq.s32.totalorder %s42, 0
      %p293 = por %p291, %p292
      %p294 = scmp.ne.s32.totalorder %s282, %s283
      %p295 = scmp.eq.s32.totalorder %s43, 1
      %p296 = por %p294, %p295
      %p298 = scmp.ne.s32.totalorder %s283, %s297
      %p299 = scmp.eq.s32.totalorder %s43, 0
      %p300 = por %p298, %p299
      %s302 = sadd.s32 %s301, 1
      %p305 = scmp.eq.s32.totalorder %s37, 1
      %p306 = scmp.ne.s32.totalorder %s301, %s303
      %p307 = scmp.eq.s32.totalorder %s37, 0
      %p308 = por %p306, %p307
      %p309 = scmp.ne.s32.totalorder %s301, %s303
      %p310 = scmp.eq.s32.totalorder %s42, 1
      %p311 = por %p309, %p310
      %p312 = scmp.ne.s32.totalorder %s303, %s304
      %p313 = scmp.eq.s32.totalorder %s42, 0
      %p314 = por %p312, %p313
      %p315 = scmp.ne.s32.totalorder %s303, %s304
      %p316 = scmp.eq.s32.totalorder %s43, 1
      %p317 = por %p315, %p316
      %p319 = scmp.ne.s32.totalorder %s304, %s318
      %p320 = scmp.eq.s32.totalorder %s43, 0
      %p321 = por %p319, %p320
      %s323 = sadd.s32 %s322, 1
      %p326 = scmp.eq.s32.totalorder %s37, 1
      %p327 = scmp.ne.s32.totalorder %s322, %s324
      %p328 = scmp.eq.s32.totalorder %s37, 0
      %p329 = por %p327, %p328
      %p330 = scmp.ne.s32.totalorder %s322, %s324
      %p331 = scmp.eq.s32.totalorder %s42, 1
      %p332 = por %p330, %p331
      %p333 = scmp.ne.s32.totalorder %s324, %s325
      %p334 = scmp.eq.s32.totalorder %s42, 0
      %p335 = por %p333, %p334
      %p336 = scmp.ne.s32.totalorder %s324, %s325
      %p337 = scmp.eq.s32.totalorder %s43, 1
      %p338 = por %p336, %p337
      %p340 = scmp.ne.s32.totalorder %s325, %s339
      %p341 = scmp.eq.s32.totalorder %s43, 0
      %p342 = por %p340, %p341
      %s344 = sadd.s32 %s343, 1
      %p347 = scmp.eq.s32.totalorder %s37, 1
      %p348 = scmp.ne.s32.totalorder %s343, %s345
      %p349 = scmp.eq.s32.totalorder %s37, 0
      %p350 = por %p348, %p349
      %p351 = scmp.ne.s32.totalorder %s343, %s345
      %p352 = scmp.eq.s32.totalorder %s42, 1
      %p353 = por %p351, %p352
      %p354 = scmp.ne.s32.totalorder %s345, %s346
      %p355 = scmp.eq.s32.totalorder %s42, 0
      %p356 = por %p354, %p355
      %p357 = scmp.ne.s32.totalorder %s345, %s346
      %p358 = scmp.eq.s32.totalorder %s43, 1
      %p359 = por %p357, %p358
      %p361 = scmp.ne.s32.totalorder %s346, %s360
      %p362 = scmp.eq.s32.totalorder %s43, 0
      %p363 = por %p361, %p362
      %s365 = sadd.s32 %s364, 1
      %p368 = scmp.eq.s32.totalorder %s37, 1
      %p369 = scmp.ne.s32.totalorder %s364, %s366
      %p370 = scmp.eq.s32.totalorder %s37, 0
      %p371 = por %p369, %p370
      %p372 = scmp.ne.s32.totalorder %s364, %s366
      %p373 = scmp.eq.s32.totalorder %s42, 1
      %p374 = por %p372, %p373
      %p375 = scmp.ne.s32.totalorder %s366, %s367
      %p376 = scmp.eq.s32.totalorder %s42, 0
      %p377 = por %p375, %p376
      %p378 = scmp.ne.s32.totalorder %s366, %s367
      %p379 = scmp.eq.s32.totalorder %s43, 1
      %p380 = por %p378, %p379
      %p382 = scmp.ne.s32.totalorder %s367, %s381
      %p383 = scmp.eq.s32.totalorder %s43, 0
      %p384 = por %p382, %p383
      %s386 = sadd.s32 %s385, 1
      %p389 = scmp.eq.s32.totalorder %s37, 1
      %p390 = scmp.ne.s32.totalorder %s385, %s387
      %p391 = scmp.eq.s32.totalorder %s37, 0
      %p392 = por %p390, %p391
      %p393 = scmp.ne.s32.totalorder %s385, %s387
      %p394 = scmp.eq.s32.totalorder %s42, 1
      %p395 = por %p393, %p394
      %p396 = scmp.ne.s32.totalorder %s387, %s388
      %p397 = scmp.eq.s32.totalorder %s42, 0
      %p398 = por %p396, %p397
      %p399 = scmp.ne.s32.totalorder %s387, %s388
      %p400 = scmp.eq.s32.totalorder %s43, 1
      %p401 = por %p399, %p400
      %p403 = scmp.ne.s32.totalorder %s388, %s402
      %p404 = scmp.eq.s32.totalorder %s43, 0
      %p405 = por %p403, %p404
      %s407 = sadd.s32 %s406, 1
      %p410 = scmp.eq.s32.totalorder %s37, 1
      %p411 = scmp.ne.s32.totalorder %s406, %s408
      %p412 = scmp.eq.s32.totalorder %s37, 0
      %p413 = por %p411, %p412
      %p414 = scmp.ne.s32.totalorder %s406, %s408
      %p415 = scmp.eq.s32.totalorder %s42, 1
      %p416 = por %p414, %p415
      %p417 = scmp.ne.s32.totalorder %s408, %s409
      %p418 = scmp.eq.s32.totalorder %s42, 0
      %p419 = por %p417, %p418
      %p420 = scmp.ne.s32.totalorder %s408, %s409
      %p421 = scmp.eq.s32.totalorder %s43, 1
      %p422 = por %p420, %p421
      %p424 = scmp.ne.s32.totalorder %s409, %s423
      %p425 = scmp.eq.s32.totalorder %s43, 0
      %p426 = por %p424, %p425
      %s428 = sadd.s32 %s427, 1
      %p431 = scmp.eq.s32.totalorder %s37, 1
      %p432 = scmp.ne.s32.totalorder %s427, %s429
      %p433 = scmp.eq.s32.totalorder %s37, 0
      %p434 = por %p432, %p433
      %p435 = scmp.ne.s32.totalorder %s427, %s429
      %p436 = scmp.eq.s32.totalorder %s42, 1
      %p437 = por %p435, %p436
      %p438 = scmp.ne.s32.totalorder %s429, %s430
      %p439 = scmp.eq.s32.totalorder %s42, 0
      %p440 = por %p438, %p439
      %p441 = scmp.ne.s32.totalorder %s429, %s430
      %p442 = scmp.eq.s32.totalorder %s43, 1
      %p443 = por %p441, %p442
      %p445 = scmp.ne.s32.totalorder %s430, %s444
      %p446 = scmp.eq.s32.totalorder %s43, 0
      %p447 = por %p445, %p446
      %s449 = sadd.s32 %s448, 1
      %p452 = scmp.eq.s32.totalorder %s37, 1
      %p453 = scmp.ne.s32.totalorder %s448, %s450
      %p454 = scmp.eq.s32.totalorder %s37, 0
      %p455 = por %p453, %p454
      %p456 = scmp.ne.s32.totalorder %s448, %s450
      %p457 = scmp.eq.s32.totalorder %s42, 1
      %p458 = por %p456, %p457
      %p459 = scmp.ne.s32.totalorder %s450, %s451
      %p460 = scmp.eq.s32.totalorder %s42, 0
      %p461 = por %p459, %p460
      %p462 = scmp.ne.s32.totalorder %s450, %s451
      %p463 = scmp.eq.s32.totalorder %s43, 1
      %p464 = por %p462, %p463
      %p466 = scmp.ne.s32.totalorder %s451, %s465
      %p467 = scmp.eq.s32.totalorder %s43, 0
      %p468 = por %p466, %p467
      %s470 = sadd.s32 %s469, 1
      %p473 = scmp.eq.s32.totalorder %s37, 1
      %p474 = scmp.ne.s32.totalorder %s469, %s471
      %p475 = scmp.eq.s32.totalorder %s37, 0
      %p476 = por %p474, %p475
      %p477 = scmp.ne.s32.totalorder %s469, %s471
      %p478 = scmp.eq.s32.totalorder %s42, 1
      %p479 = por %p477, %p478
      %p480 = scmp.ne.s32.totalorder %s471, %s472
      %p481 = scmp.eq.s32.totalorder %s42, 0
      %p482 = por %p480, %p481
      %p483 = scmp.ne.s32.totalorder %s471, %s472
      %p484 = scmp.eq.s32.totalorder %s43, 1
      %p485 = por %p483, %p484
      %p487 = scmp.ne.s32.totalorder %s472, %s486
      %p488 = scmp.eq.s32.totalorder %s43, 0
      %p489 = por %p487, %p488
      %s490 = ssub.s32 %s37, %s44
      %p491 = scmp.eq.s32.totalorder %s490, 0
      %s493 = sadd.s32 %s492, 1
      %s494 = scalar_select %p491, %s492, %s493
      %p497 = pneg %p491
      %p498 = scmp.eq.s32.totalorder %s37, 1
      %p499 = por %p497, %p498
      %p500 = scmp.ne.s32.totalorder %s492, %s495
      %p501 = scmp.eq.s32.totalorder %s37, 0
      %p502 = por %p500, %p501
      %p503 = scmp.ne.s32.totalorder %s492, %s495
      %p504 = scmp.eq.s32.totalorder %s42, 1
      %p505 = por %p503, %p504
      %p506 = scmp.ne.s32.totalorder %s495, %s496
      %p507 = scmp.eq.s32.totalorder %s42, 0
      %p508 = por %p506, %p507
      %p509 = scmp.ne.s32.totalorder %s495, %s496
      %p510 = scmp.eq.s32.totalorder %s43, 1
      %p511 = por %p509, %p510
      %p513 = scmp.ne.s32.totalorder %s496, %s512
      %p514 = scmp.eq.s32.totalorder %s43, 0
      %p515 = por %p513, %p514
      %p516 = scmp.le.s32.totalorder 1, %s37
      %p517 = scmp.lt.s32.totalorder %s37, 3
      %p518 = pnand %p516, %p517
      %p519 = pneg %p518
      // Predicated region
      $region9: #{tpu_custom_call.1} parent=5 // pred_check
        _
      $region10: #{tpu_custom_call.1} parent=5 // pred_check_branch
        %521 = sbr.rel (%p518) target = $region12
      $region11: #{tpu_custom_call.1} parent=5 // pred_region
        %s522 = ssub.s32 %s37, 1
        // Predicated region
        $region13: #{tpu_custom_call.1} parent=11 // pred_check
          %p523 = pneg %p188
        $region14: #{tpu_custom_call.1} parent=11 // pred_check_branch
          %525 = sbr.rel (%p523) target = $region16
        $region15: #{tpu_custom_call.1} parent=11 // pred_region
          _
        $region16: #{tpu_custom_call.1} parent=11 // pred_fallthru
          _
        // Predicated region
        $region17: #{tpu_custom_call.1} parent=11 // pred_check
          %p526 = pneg %p209
        $region18: #{tpu_custom_call.1} parent=11 // pred_check_branch
          %528 = sbr.rel (%p526) target = $region20
        $region19: #{tpu_custom_call.1} parent=11 // pred_region
          %s530 = ssub.s32 256, 256
          %531 = vsyncadd [#allocation6], %s530
          %s533 = sshll.u32 [#allocation5], 4
          %s534 = int_to_ptr.vmem [resolvable:$true] %s533
          %536 = dma.hbm_to_vmem [thread:$0]  %s6, 256, %s534, [#allocation6]
        $region20: #{tpu_custom_call.1} parent=11 // pred_fallthru
          _
        // Predicated region
        $region21: #{tpu_custom_call.1} parent=11 // pred_check
          %p537 = pneg %p230
        $region22: #{tpu_custom_call.1} parent=11 // pred_check_branch
          %539 = sbr.rel (%p537) target = $region24
        $region23: #{tpu_custom_call.1} parent=11 // pred_region
          %s541 = ssub.s32 128, 128
          %542 = vsyncadd [#allocation6], %s541
          %s544 = sshll.u32 [#allocation7], 4
          %s545 = int_to_ptr.vmem [resolvable:$true] %s544
          %547 = dma.hbm_to_vmem [thread:$0]  %s7, 128, %s545, [#allocation6]
        $region24: #{tpu_custom_call.1} parent=11 // pred_fallthru
          _
        // Predicated region
        $region25: #{tpu_custom_call.1} parent=11 // pred_check
          %p548 = pneg %p251
        $region26: #{tpu_custom_call.1} parent=11 // pred_check_branch
          %550 = sbr.rel (%p548) target = $region28
        $region27: #{tpu_custom_call.1} parent=11 // pred_region
          %s552 = ssub.s32 64, 64
          %553 = vsyncadd [#allocation9], %s552
          %s555 = sshll.u32 [#allocation8], 4
          %s556 = int_to_ptr.vmem [resolvable:$true] %s555
          %558 = dma.hbm_to_vmem [thread:$0]  %s8, 64, %s556, [#allocation9]
        $region28: #{tpu_custom_call.1} parent=11 // pred_fallthru
          _
        // Predicated region
        $region29: #{tpu_custom_call.1} parent=11 // pred_check
          %p559 = pneg %p272
        $region30: #{tpu_custom_call.1} parent=11 // pred_check_branch
          %561 = sbr.rel (%p559) target = $region32
        $region31: #{tpu_custom_call.1} parent=11 // pred_region
          %s563 = ssub.s32 256, 256
          %564 = vsyncadd [#allocation9], %s563
          %s566 = sshll.u32 [#allocation10], 4
          %s567 = int_to_ptr.vmem [resolvable:$true] %s566
          %569 = dma.hbm_to_vmem [thread:$0]  %s9, 256, %s567, [#allocation9]
        $region32: #{tpu_custom_call.1} parent=11 // pred_fallthru
          _
        // Predicated region
        $region33: #{tpu_custom_call.1} parent=11 // pred_check
          %p570 = pneg %p293
        $region34: #{tpu_custom_call.1} parent=11 // pred_check_branch
          %572 = sbr.rel (%p570) target = $region36
        $region35: #{tpu_custom_call.1} parent=11 // pred_region
          %s574 = ssub.s32 64, 64
          %575 = vsyncadd [#allocation12], %s574
          %s577 = sshll.u32 [#allocation11], 4
          %s578 = int_to_ptr.vmem [resolvable:$true] %s577
          %580 = dma.hbm_to_vmem [thread:$0]  %s10, 64, %s578, [#allocation12]
        $region36: #{tpu_custom_call.1} parent=11 // pred_fallthru
          _
        // Predicated region
        $region37: #{tpu_custom_call.1} parent=11 // pred_check
          %p581 = pneg %p314
        $region38: #{tpu_custom_call.1} parent=11 // pred_check_branch
          %583 = sbr.rel (%p581) target = $region40
        $region39: #{tpu_custom_call.1} parent=11 // pred_region
          %s585 = ssub.s32 1024, 1024
          %586 = vsyncadd [#allocation12], %s585
          %s587 = sshll.u32 [#allocation13], 4
          %s588 = int_to_ptr.vmem [resolvable:$true] %s587
          %593 = dma.hbm_to_vmem [thread:$0]  %s11, 1024, %s588, [#allocation12], 64, 64, 4
        $region40: #{tpu_custom_call.1} parent=11 // pred_fallthru
          _
        // Predicated region
        $region41: #{tpu_custom_call.1} parent=11 // pred_check
          %p594 = pneg %p335
        $region42: #{tpu_custom_call.1} parent=11 // pred_check_branch
          %596 = sbr.rel (%p594) target = $region44
        $region43: #{tpu_custom_call.1} parent=11 // pred_region
          %s598 = ssub.s32 16, 16
          %599 = vsyncadd [#allocation15], %s598
          %s601 = sshll.u32 [#allocation14], 4
          %s602 = int_to_ptr.vmem [resolvable:$true] %s601
          %604 = dma.hbm_to_vmem [thread:$0]  %s12, 16, %s602, [#allocation15]
        $region44: #{tpu_custom_call.1} parent=11 // pred_fallthru
          _
        // Predicated region
        $region45: #{tpu_custom_call.1} parent=11 // pred_check
          %p605 = pneg %p356
        $region46: #{tpu_custom_call.1} parent=11 // pred_check_branch
          %607 = sbr.rel (%p605) target = $region48
        $region47: #{tpu_custom_call.1} parent=11 // pred_region
          _
        $region48: #{tpu_custom_call.1} parent=11 // pred_fallthru
          _
        // Predicated region
        $region49: #{tpu_custom_call.1} parent=11 // pred_check
          %p608 = pneg %p377
        $region50: #{tpu_custom_call.1} parent=11 // pred_check_branch
          %610 = sbr.rel (%p608) target = $region52
        $region51: #{tpu_custom_call.1} parent=11 // pred_region
          %s612 = ssub.s32 128, 128
          %613 = vsyncadd [#allocation15], %s612
          %s615 = sshll.u32 [#allocation16], 4
          %s616 = int_to_ptr.vmem [resolvable:$true] %s615
          %618 = dma.hbm_to_vmem [thread:$0]  %s14, 128, %s616, [#allocation15]
        $region52: #{tpu_custom_call.1} parent=11 // pred_fallthru
          _
        // Predicated region
        $region53: #{tpu_custom_call.1} parent=11 // pred_check
          %p619 = pneg %p398
        $region54: #{tpu_custom_call.1} parent=11 // pred_check_branch
          %621 = sbr.rel (%p619) target = $region56
        $region55: #{tpu_custom_call.1} parent=11 // pred_region
          _
        $region56: #{tpu_custom_call.1} parent=11 // pred_fallthru
          _
        // Predicated region
        $region57: #{tpu_custom_call.1} parent=11 // pred_check
          %p622 = pneg %p419
        $region58: #{tpu_custom_call.1} parent=11 // pred_check_branch
          %624 = sbr.rel (%p622) target = $region60
        $region59: #{tpu_custom_call.1} parent=11 // pred_region
          _
        $region60: #{tpu_custom_call.1} parent=11 // pred_fallthru
          _
        // Predicated region
        $region61: #{tpu_custom_call.1} parent=11 // pred_check
          %p625 = pneg %p440
        $region62: #{tpu_custom_call.1} parent=11 // pred_check_branch
          %627 = sbr.rel (%p625) target = $region64
        $region63: #{tpu_custom_call.1} parent=11 // pred_region
          %s629 = ssub.s32 1024, 1024
          %630 = vsyncadd [#allocation18], %s629
          %s631 = sshll.u32 [#allocation17], 4
          %s632 = int_to_ptr.vmem [resolvable:$true] %s631
          %637 = dma.hbm_to_vmem [thread:$0]  %s17, 1024, %s632, [#allocation18], 64, 64, 4
        $region64: #{tpu_custom_call.1} parent=11 // pred_fallthru
          _
        // Predicated region
        $region65: #{tpu_custom_call.1} parent=11 // pred_check
          %p638 = pneg %p461
        $region66: #{tpu_custom_call.1} parent=11 // pred_check_branch
          %640 = sbr.rel (%p638) target = $region68
        $region67: #{tpu_custom_call.1} parent=11 // pred_region
          %s642 = ssub.s32 2048, 2048
          %643 = vsyncadd [#allocation18], %s642
          %s644 = sshll.u32 [#allocation19], 4
          %s645 = int_to_ptr.vmem [resolvable:$true] %s644
          %650 = dma.hbm_to_vmem [thread:$0]  %s18, 2048, %s645, [#allocation18], 64, 64, 4
        $region68: #{tpu_custom_call.1} parent=11 // pred_fallthru
          _
        // Predicated region
        $region69: #{tpu_custom_call.1} parent=11 // pred_check
          %p651 = pneg %p482
        $region70: #{tpu_custom_call.1} parent=11 // pred_check_branch
          %653 = sbr.rel (%p651) target = $region72
        $region71: #{tpu_custom_call.1} parent=11 // pred_region
          _
        $region72: #{tpu_custom_call.1} parent=11 // pred_fallthru
          _
      $region12: #{tpu_custom_call.1} parent=5 // pred_fallthru
        _
      %p654 = scmp.lt.s32.totalorder %s37, 2
      // Predicated region
      $region73: #{tpu_custom_call.1} parent=5 // pred_check
        %p655 = pneg %p654
      $region74: #{tpu_custom_call.1} parent=5 // pred_check_branch
        %657 = sbr.rel (%p655) target = $region76
      $region75: #{tpu_custom_call.1} parent=5 // pred_region
        // Predicated region
        $region77: #{tpu_custom_call.1} parent=75 // pred_check
          %p658 = pneg %p57
        $region78: #{tpu_custom_call.1} parent=75 // pred_check_branch
          %660 = sbr.rel (%p658) target = $region80
        $region79: #{tpu_custom_call.1} parent=75 // pred_region
          %p661 = scmp.lt.s32.totalorder %s37, 1
          %s662 = scalar_select %p661, %s37, 1
          %s663 = smul.addr %s662, 8
          %s664 = scalar_lea.vmem %s0, %s663
        $region80: #{tpu_custom_call.1} parent=75 // pred_fallthru
          _
        // Predicated region
        $region81: #{tpu_custom_call.1} parent=75 // pred_check
          %p665 = pneg %p83
        $region82: #{tpu_custom_call.1} parent=75 // pred_check_branch
          %667 = sbr.rel (%p665) target = $region84
        $region83: #{tpu_custom_call.1} parent=75 // pred_region
          %p668 = scmp.lt.s32.totalorder %s37, 1
          %s669 = scalar_select %p668, %s37, 1
          %s670 = smul.addr %s669, 8
          %s671 = scalar_lea.vmem %s1, %s670
        $region84: #{tpu_custom_call.1} parent=75 // pred_fallthru
          _
        // Predicated region
        $region85: #{tpu_custom_call.1} parent=75 // pred_check
          %p672 = pneg %p109
        $region86: #{tpu_custom_call.1} parent=75 // pred_check_branch
          %674 = sbr.rel (%p672) target = $region88
        $region87: #{tpu_custom_call.1} parent=75 // pred_region
          %p675 = scmp.lt.s32.totalorder %s37, 1
          %s676 = scalar_select %p675, %s37, 1
          %s677 = smul.addr %s676, 8
          %s678 = scalar_lea.vmem %s2, %s677
        $region88: #{tpu_custom_call.1} parent=75 // pred_fallthru
          _
        // Predicated region
        $region89: #{tpu_custom_call.1} parent=75 // pred_check
          %p679 = pneg %p135
        $region90: #{tpu_custom_call.1} parent=75 // pred_check_branch
          %681 = sbr.rel (%p679) target = $region92
        $region91: #{tpu_custom_call.1} parent=75 // pred_region
          %p682 = scmp.lt.s32.totalorder %s37, 1
          %s683 = scalar_select %p682, %s37, 1
          %s684 = smul.addr %s683, 8
          %s685 = scalar_lea.vmem %s3, %s684
        $region92: #{tpu_custom_call.1} parent=75 // pred_fallthru
          _
        // Predicated region
        $region93: #{tpu_custom_call.1} parent=75 // pred_check
          %p686 = pneg %p161
        $region94: #{tpu_custom_call.1} parent=75 // pred_check_branch
          %688 = sbr.rel (%p686) target = $region96
        $region95: #{tpu_custom_call.1} parent=75 // pred_region
          %s689 = sand.u32 %s151, 1
          %s690 = scalar_lea.sflag [#allocation3], %s689
          %s691 = sand.u32 %s151, 1
          %s692 = scalar_lea.vmem [#allocation2], %s691
          %s694 = ssub.s32 16, 16
          %695 = vsyncadd %s690, %s694
          %s696 = smul.addr %s37, 16
          %s697 = scalar_lea.hbm %s4, %s696
          %s699 = sshll.u32 %s692, 4
          %s700 = int_to_ptr.vmem [resolvable:$true] %s699
          %702 = dma.hbm_to_vmem [thread:$0]  %s697, 16, %s700, %s690
        $region96: #{tpu_custom_call.1} parent=75 // pred_fallthru
          _
      $region76: #{tpu_custom_call.1} parent=5 // pred_fallthru
        _
      %p703 = scmp.le.s32.totalorder 1, %s37
      %p704 = scmp.lt.s32.totalorder %s37, 3
      %p705 = pnand %p703, %p704
      %p706 = pneg %p705
      // Predicated region
      $region97: #{tpu_custom_call.1} parent=5 // pred_check
        _
      $region98: #{tpu_custom_call.1} parent=5 // pred_check_branch
        %708 = sbr.rel (%p705) target = $region100
      $region99: #{tpu_custom_call.1} parent=5 // pred_region
        %s709 = ssub.s32 %s37, 1
        %s710 = sand.u32 %s154, 1
        %s711 = scalar_lea.sflag [#allocation3], %s710
        %s712 = sand.u32 %s154, 1
        %s713 = scalar_lea.vmem [#allocation2], %s712
        // Predicated region
        $region101: #{tpu_custom_call.1} parent=99 // pred_check
          %p714 = pneg %p167
        $region102: #{tpu_custom_call.1} parent=99 // pred_check_branch
          %716 = sbr.rel (%p714) target = $region104
        $region103: #{tpu_custom_call.1} parent=99 // pred_region
          %717 = dma.done %s711, 16
        $region104: #{tpu_custom_call.1} parent=99 // pred_fallthru
          _
        // Predicated region
        $region105: #{tpu_custom_call.1} parent=99 // pred_check
          %p718 = pneg %p209
        $region106: #{tpu_custom_call.1} parent=99 // pred_check_branch
          %720 = sbr.rel (%p718) target = $region108
        $region107: #{tpu_custom_call.1} parent=99 // pred_region
          %721 = dma.done [#allocation6], 256
        $region108: #{tpu_custom_call.1} parent=99 // pred_fallthru
          _
        // Predicated region
        $region109: #{tpu_custom_call.1} parent=99 // pred_check
          %p722 = pneg %p230
        $region110: #{tpu_custom_call.1} parent=99 // pred_check_branch
          %724 = sbr.rel (%p722) target = $region112
        $region111: #{tpu_custom_call.1} parent=99 // pred_region
          %725 = dma.done [#allocation6], 128
        $region112: #{tpu_custom_call.1} parent=99 // pred_fallthru
          _
        // Predicated region
        $region113: #{tpu_custom_call.1} parent=99 // pred_check
          %p726 = pneg %p251
        $region114: #{tpu_custom_call.1} parent=99 // pred_check_branch
          %728 = sbr.rel (%p726) target = $region116
        $region115: #{tpu_custom_call.1} parent=99 // pred_region
          %729 = dma.done [#allocation9], 64
        $region116: #{tpu_custom_call.1} parent=99 // pred_fallthru
          _
        // Predicated region
        $region117: #{tpu_custom_call.1} parent=99 // pred_check
          %p730 = pneg %p272
        $region118: #{tpu_custom_call.1} parent=99 // pred_check_branch
          %732 = sbr.rel (%p730) target = $region120
        $region119: #{tpu_custom_call.1} parent=99 // pred_region
          %733 = dma.done [#allocation9], 256
        $region120: #{tpu_custom_call.1} parent=99 // pred_fallthru
          _
        // Predicated region
        $region121: #{tpu_custom_call.1} parent=99 // pred_check
          %p734 = pneg %p293
        $region122: #{tpu_custom_call.1} parent=99 // pred_check_branch
          %736 = sbr.rel (%p734) target = $region124
        $region123: #{tpu_custom_call.1} parent=99 // pred_region
          %737 = dma.done [#allocation12], 64
        $region124: #{tpu_custom_call.1} parent=99 // pred_fallthru
          _
        // Predicated region
        $region125: #{tpu_custom_call.1} parent=99 // pred_check
          %p738 = pneg %p314
        $region126: #{tpu_custom_call.1} parent=99 // pred_check_branch
          %740 = sbr.rel (%p738) target = $region128
        $region127: #{tpu_custom_call.1} parent=99 // pred_region
          %741 = dma.done [#allocation12], 1024
        $region128: #{tpu_custom_call.1} parent=99 // pred_fallthru
          _
        // Predicated region
        $region129: #{tpu_custom_call.1} parent=99 // pred_check
          %p742 = pneg %p335
        $region130: #{tpu_custom_call.1} parent=99 // pred_check_branch
          %744 = sbr.rel (%p742) target = $region132
        $region131: #{tpu_custom_call.1} parent=99 // pred_region
          %745 = dma.done [#allocation15], 16
        $region132: #{tpu_custom_call.1} parent=99 // pred_fallthru
          _
        // Predicated region
        $region133: #{tpu_custom_call.1} parent=99 // pred_check
          %p746 = pneg %p377
        $region134: #{tpu_custom_call.1} parent=99 // pred_check_branch
          %748 = sbr.rel (%p746) target = $region136
        $region135: #{tpu_custom_call.1} parent=99 // pred_region
          %749 = dma.done [#allocation15], 128
        $region136: #{tpu_custom_call.1} parent=99 // pred_fallthru
          _
        // Predicated region
        $region137: #{tpu_custom_call.1} parent=99 // pred_check
          %p750 = pneg %p440
        $region138: #{tpu_custom_call.1} parent=99 // pred_check_branch
          %752 = sbr.rel (%p750) target = $region140
        $region139: #{tpu_custom_call.1} parent=99 // pred_region
          %753 = dma.done [#allocation18], 1024
        $region140: #{tpu_custom_call.1} parent=99 // pred_fallthru
          _
        // Predicated region
        $region141: #{tpu_custom_call.1} parent=99 // pred_check
          %p754 = pneg %p461
        $region142: #{tpu_custom_call.1} parent=99 // pred_check_branch
          %756 = sbr.rel (%p754) target = $region144
        $region143: #{tpu_custom_call.1} parent=99 // pred_region
          %757 = dma.done [#allocation18], 2048
        $region144: #{tpu_custom_call.1} parent=99 // pred_fallthru
          _
        %p758 = scmp.lt.s32.totalorder %s42, 1
        %s759 = scalar_select %p758, %s42, 1
        %s760 = smul.addr %s759, 8
        %s761 = scalar_lea.vmem %s0, %s760
        %p762 = pneg %p63
        %p763 = pneg %p60
        %p764 = scmp.lt.s32.totalorder %s42, 1
        %s765 = scalar_select %p764, %s42, 1
        %s766 = smul.addr %s765, 8
        %s767 = scalar_lea.vmem %s1, %s766
        %p768 = pneg %p89
        %p769 = pneg %p86
        %p770 = scmp.lt.s32.totalorder %s42, 1
        %s771 = scalar_select %p770, %s42, 1
        %s772 = smul.addr %s771, 8
        %s773 = scalar_lea.vmem %s2, %s772
        %p774 = pneg %p115
        %p775 = pneg %p112
        %p776 = scmp.lt.s32.totalorder %s42, 1
        %s777 = scalar_select %p776, %s42, 1
        %s778 = smul.addr %s777, 8
        %s779 = scalar_lea.vmem %s3, %s778
        %p780 = pneg %p141
        %p781 = pneg %p138
        %s782 = sand.u32 %s154, 1
        %s783 = scalar_lea.sflag [#allocation3], %s782
        %s784 = sand.u32 %s154, 1
        %s785 = scalar_lea.vmem [#allocation2], %s784
        %p786 = pneg %p167
        %p787 = pneg %p164
        %p788 = pneg %p188
        %p789 = pneg %p185
        %p790 = pneg %p209
        %p791 = pneg %p206
        %p792 = pneg %p230
        %p793 = pneg %p227
        %p794 = pneg %p251
        %p795 = pneg %p248
        %p796 = pneg %p272
        %p797 = pneg %p269
        %p798 = pneg %p293
        %p799 = pneg %p290
        %p800 = pneg %p314
        %p801 = pneg %p311
        %p802 = pneg %p335
        %p803 = pneg %p332
        %p804 = pneg %p356
        %p805 = pneg %p353
        %p806 = pneg %p377
        %p807 = pneg %p374
        %p808 = pneg %p398
        %p809 = pneg %p395
        %p810 = pneg %p419
        %p811 = pneg %p416
        %p812 = pneg %p440
        %p813 = pneg %p437
        %p814 = pneg %p461
        %p815 = pneg %p458
        %p816 = pneg %p482
        %p817 = pneg %p479
        %p818 = pneg %p508
        %p819 = pneg %p505
        %s820 = sand.u32 %s495, 1
        %s821 = scalar_lea.sflag [#allocation4], %s820
        %s822 = sand.u32 %s495, 1
        %s823 = smul.addr %s822, 8
        %s824 = scalar_lea.vmem [#allocation20], %s823
        %p825 = scmp.lt.s32.totalorder %s42, 1
        %s826 = scalar_select %p825, %s42, 1
        %s827 = smul.addr %s826, 8
        %s828 = scalar_lea.vmem %s0, %s827
        %p829 = scmp.lt.s32.totalorder %s42, 1
        %s830 = scalar_select %p829, %s42, 1
        %s831 = smul.addr %s830, 8
        %s832 = scalar_lea.vmem %s1, %s831
        %p833 = scmp.lt.s32.totalorder %s42, 1
        %s834 = scalar_select %p833, %s42, 1
        %s835 = smul.addr %s834, 8
        %s836 = scalar_lea.vmem %s2, %s835
        %p837 = scmp.lt.s32.totalorder %s42, 1
        %s838 = scalar_select %p837, %s42, 1
        %s839 = smul.addr %s838, 8
        %s840 = scalar_lea.vmem %s3, %s839
        %v842 = vld [vmem:[%s828] sm:$0xff]
        %v843 = vpack.c.bf16 %v842, %v842
        %v844 = vld [vmem:[%s832] sm:$0xff]
        %v845 = vpack.c.bf16 %v844, %v844
        %v846 = vld [vmem:[%s836] sm:$0xff]
        %v847 = vpack.c.bf16 %v846, %v846
        %v848 = vld [vmem:[%s840] sm:$0xff]
        %v849 = vld [vmem:[%s713] sm:$0x1]
        %v850 = vpack.c.bf16 %v849, %v849
        %v851 = vld [vmem:[%s5] sm:$0x77]
        %v852 = vld [vmem:[%s5 + $0x8] sm:$0x77]
        %v853 = vld [vmem:[#allocation5] sm:$0x77]
        %v854 = vld [vmem:[#allocation5 + $0x8] sm:$0x77]
        %v857 = vunpack.c.l.b16 %v853
        %v858 = vunpack.c.h.b16 %v853
        %v859 = vunpack.c.l.b16 %v854
        %v860 = vunpack.c.h.b16 %v854
        %v861 = vpack.c.b16 %v857, %v857
        %v862 = vpack.c.b16 %v858, %v858
        %v863 = vpack.c.b16 %v859, %v859
        %v864 = vpack.c.b16 %v860, %v860
        %vm865 = vcmask 48128
        %v867 = vsel %vm865, %v845, 0
        %vm869 = vcmask 1042432
        %v871 = vsel %vm869, %v861, 0
        %v874 = vsel %vm869, %v862, 0
        %v877 = vsel %vm869, %v863, 0
        %v880 = vsel %vm869, %v864, 0
        %882 = vmatprep.subr.bf16.mxu0 %v874
        %883 = vmatpush1.bf16.msra.mxu0 %v871
        %884 = vmatprep.subr.bf16.mxu0 0
        %885 = vmatpush1.bf16.msra.mxu0 0
        %886 = vmatprep.subr.bf16.mxu0 0
        %887 = vmatpush1.bf16.msra.mxu0 0
        %888 = vmatprep.subr.bf16.mxu0 0
        %889 = vmatpush1.bf16.msra.mxu0 0
        %890 = vmatprep.subr.bf16.mxu0 0
        %891 = vmatpush1.bf16.msra.mxu0 0
        %892 = vmatprep.subr.bf16.mxu0 0
        %893 = vmatpush1.bf16.msra.mxu0 0
        %894 = vmatprep.subr.bf16.mxu0 0
        %895 = vmatpush1.bf16.msra.mxu0 0
        %896 = vmatprep.subr.bf16.mxu0 0
        %897 = vmatpush1.bf16.msra.mxu0 0
        %898 = vmatprep.subr.bf16.mxu0 0
        %899 = vmatpush1.bf16.msra.mxu0 0
        %900 = vmatprep.subr.bf16.mxu0 0
        %901 = vmatpush1.bf16.msra.mxu0 0
        %902 = vmatprep.subr.bf16.mxu0 0
        %903 = vmatpush1.bf16.msra.mxu0 0
        %904 = vmatprep.subr.bf16.mxu0 0
        %905 = vmatpush1.bf16.msra.mxu0 0
        %906 = vmatprep.subr.bf16.mxu0 0
        %907 = vmatpush1.bf16.msra.mxu0 0
        %908 = vmatprep.subr.bf16.mxu0 0
        %909 = vmatpush1.bf16.msra.mxu0 0
        %910 = vmatprep.subr.bf16.mxu0 0
        %911 = vmatpush1.bf16.msra.mxu0 0
        %912 = vmatprep.subr.bf16.mxu0 0
        %913 = vmatpush1.bf16.msra.mxu0 0
        %914 = vmatprep.mubr.bf16.mxu0 0
        %915 = vmatmul.mubr.bf16.gmra.mrb[0].mxu0 %v867
        %v916 = vpop.f32.mrb[0].mxu0
        %v917 = vadd.f32 0.0, %v916
        %v918 = vpop.f32.mrb[0].mxu0
        %v919 = vadd.f32 0.0, %v918
        %v920 = vpop.f32.mrb[0].mxu0
        %v921 = vpop.f32.mrb[0].mxu0
        %922 = vdwg.mxu0
        %923 = vmatprep.subr.bf16.mxu0 %v880
        %924 = vmatpush1.bf16.msra.mxu0 %v877
        %925 = vmatprep.subr.bf16.mxu0 0
        %926 = vmatpush1.bf16.msra.mxu0 0
        %927 = vmatprep.subr.bf16.mxu0 0
        %928 = vmatpush1.bf16.msra.mxu0 0
        %929 = vmatprep.subr.bf16.mxu0 0
        %930 = vmatpush1.bf16.msra.mxu0 0
        %931 = vmatprep.subr.bf16.mxu0 0
        %932 = vmatpush1.bf16.msra.mxu0 0
        %933 = vmatprep.subr.bf16.mxu0 0
        %934 = vmatpush1.bf16.msra.mxu0 0
        %935 = vmatprep.subr.bf16.mxu0 0
        %936 = vmatpush1.bf16.msra.mxu0 0
        %937 = vmatprep.subr.bf16.mxu0 0
        %938 = vmatpush1.bf16.msra.mxu0 0
        %939 = vmatprep.subr.bf16.mxu0 0
        %940 = vmatpush1.bf16.msra.mxu0 0
        %941 = vmatprep.subr.bf16.mxu0 0
        %942 = vmatpush1.bf16.msra.mxu0 0
        %943 = vmatprep.subr.bf16.mxu0 0
        %944 = vmatpush1.bf16.msra.mxu0 0
        %945 = vmatprep.subr.bf16.mxu0 0
        %946 = vmatpush1.bf16.msra.mxu0 0
        %947 = vmatprep.subr.bf16.mxu0 0
        %948 = vmatpush1.bf16.msra.mxu0 0
        %949 = vmatprep.subr.bf16.mxu0 0
        %950 = vmatpush1.bf16.msra.mxu0 0
        %951 = vmatprep.subr.bf16.mxu0 0
        %952 = vmatpush1.bf16.msra.mxu0 0
        %953 = vmatprep.subr.bf16.mxu0 0
        %954 = vmatpush1.bf16.msra.mxu0 0
        %955 = vmatprep.mubr.bf16.mxu0 0
        %956 = vmatmul.mubr.bf16.gmra.mrb[0].mxu0 %v867
        %v957 = vpop.f32.mrb[0].mxu0
        %v958 = vadd.f32 0.0, %v957
        %v959 = vpop.f32.mrb[0].mxu0
        %v960 = vadd.f32 0.0, %v959
        %v961 = vpop.f32.mrb[0].mxu0
        %v962 = vpop.f32.mrb[0].mxu0
        %963 = vdwg.mxu0
        %v966 = vunpack.c.l.b16 %v851
        %v967 = vunpack.c.h.b16 %v851
        %v968 = vunpack.c.l.b16 %v852
        %v969 = vunpack.c.h.b16 %v852
        %v970 = vpack.c.b16 %v966, %v966
        %v971 = vpack.c.b16 %v967, %v967
        %v972 = vpack.c.b16 %v968, %v968
        %v973 = vpack.c.b16 %v969, %v969
        %v975 = vsel %vm865, %v843, 0
        %v978 = vsel %vm869, %v970, 0
        %v981 = vsel %vm869, %v971, 0
        %v984 = vsel %vm869, %v972, 0
        %v987 = vsel %vm869, %v973, 0
        %989 = vmatprep.subr.bf16.mxu0 %v981
        %990 = vmatpush1.bf16.msra.mxu0 %v978
        %991 = vmatprep.subr.bf16.mxu0 0
        %992 = vmatpush1.bf16.msra.mxu0 0
        %993 = vmatprep.subr.bf16.mxu0 0
        %994 = vmatpush1.bf16.msra.mxu0 0
        %995 = vmatprep.subr.bf16.mxu0 0
        %996 = vmatpush1.bf16.msra.mxu0 0
        %997 = vmatprep.subr.bf16.mxu0 0
        %998 = vmatpush1.bf16.msra.mxu0 0
        %999 = vmatprep.subr.bf16.mxu0 0
        %1000 = vmatpush1.bf16.msra.mxu0 0
        %1001 = vmatprep.subr.bf16.mxu0 0
        %1002 = vmatpush1.bf16.msra.mxu0 0
        %1003 = vmatprep.subr.bf16.mxu0 0
        %1004 = vmatpush1.bf16.msra.mxu0 0
        %1005 = vmatprep.subr.bf16.mxu0 0
        %1006 = vmatpush1.bf16.msra.mxu0 0
        %1007 = vmatprep.subr.bf16.mxu0 0
        %1008 = vmatpush1.bf16.msra.mxu0 0
        %1009 = vmatprep.subr.bf16.mxu0 0
        %1010 = vmatpush1.bf16.msra.mxu0 0
        %1011 = vmatprep.subr.bf16.mxu0 0
        %1012 = vmatpush1.bf16.msra.mxu0 0
        %1013 = vmatprep.subr.bf16.mxu0 0
        %1014 = vmatpush1.bf16.msra.mxu0 0
        %1015 = vmatprep.subr.bf16.mxu0 0
        %1016 = vmatpush1.bf16.msra.mxu0 0
        %1017 = vmatprep.subr.bf16.mxu0 0
        %1018 = vmatpush1.bf16.msra.mxu0 0
        %1019 = vmatprep.subr.bf16.mxu0 0
        %1020 = vmatpush1.bf16.msra.mxu0 0
        %1021 = vmatprep.mubr.bf16.mxu0 0
        %1022 = vmatmul.mubr.bf16.gmra.mrb[0].mxu0 %v975
        %v1023 = vpop.f32.mrb[0].mxu0
        %v1024 = vadd.f32 %v917, %v1023
        %v1025 = vpop.f32.mrb[0].mxu0
        %v1026 = vadd.f32 %v919, %v1025
        %v1027 = vpop.f32.mrb[0].mxu0
        %v1028 = vpop.f32.mrb[0].mxu0
        %1029 = vdwg.mxu0
        %1030 = vmatprep.subr.bf16.mxu0 %v987
        %1031 = vmatpush1.bf16.msra.mxu0 %v984
        %1032 = vmatprep.subr.bf16.mxu0 0
        %1033 = vmatpush1.bf16.msra.mxu0 0
        %1034 = vmatprep.subr.bf16.mxu0 0
        %1035 = vmatpush1.bf16.msra.mxu0 0
        %1036 = vmatprep.subr.bf16.mxu0 0
        %1037 = vmatpush1.bf16.msra.mxu0 0
        %1038 = vmatprep.subr.bf16.mxu0 0
        %1039 = vmatpush1.bf16.msra.mxu0 0
        %1040 = vmatprep.subr.bf16.mxu0 0
        %1041 = vmatpush1.bf16.msra.mxu0 0
        %1042 = vmatprep.subr.bf16.mxu0 0
        %1043 = vmatpush1.bf16.msra.mxu0 0
        %1044 = vmatprep.subr.bf16.mxu0 0
        %1045 = vmatpush1.bf16.msra.mxu0 0
        %1046 = vmatprep.subr.bf16.mxu0 0
        %1047 = vmatpush1.bf16.msra.mxu0 0
        %1048 = vmatprep.subr.bf16.mxu0 0
        %1049 = vmatpush1.bf16.msra.mxu0 0
        %1050 = vmatprep.subr.bf16.mxu0 0
        %1051 = vmatpush1.bf16.msra.mxu0 0
        %1052 = vmatprep.subr.bf16.mxu0 0
        %1053 = vmatpush1.bf16.msra.mxu0 0
        %1054 = vmatprep.subr.bf16.mxu0 0
        %1055 = vmatpush1.bf16.msra.mxu0 0
        %1056 = vmatprep.subr.bf16.mxu0 0
        %1057 = vmatpush1.bf16.msra.mxu0 0
        %1058 = vmatprep.subr.bf16.mxu0 0
        %1059 = vmatpush1.bf16.msra.mxu0 0
        %1060 = vmatprep.subr.bf16.mxu0 0
        %1061 = vmatpush1.bf16.msra.mxu0 0
        %1062 = vmatprep.mubr.bf16.mxu0 0
        %1063 = vmatmul.mubr.bf16.gmra.mrb[0].mxu0 %v975
        %v1064 = vpop.f32.mrb[0].mxu0
        %v1065 = vadd.f32 %v958, %v1064
        %v1066 = vpop.f32.mrb[0].mxu0
        %v1067 = vadd.f32 %v960, %v1066
        %v1068 = vpop.f32.mrb[0].mxu0
        %v1069 = vpop.f32.mrb[0].mxu0
        %1070 = vdwg.mxu0
        %v1071 = vld [vmem:[#allocation7] sm:$0xff]
        %v1073 = vcombine.high %v1071, %v1071
        %v1075 = vunpack.c.l.s4 1983009808
        %v1076 = vunpack.c.0.s8 %v1075
        %v1077 = vlaneseq
        %v1078 = vshrl.u32 %v1077, 7
        %v1079 = vsub.s32 %v1076, %v1078
        %v1080 = vrot.slane %v1071, %v1079
        %v1082 = vunpack.c.l.s4 1983009808
        %v1083 = vunpack.c.0.s8 %v1082
        %v1084 = vlaneseq
        %v1085 = vshrl.u32 %v1084, 7
        %v1086 = vsub.s32 %v1083, %v1085
        %v1087 = vrot.slane %v1073, %v1086
        %v1088 = vcombine.high %v1080, %v1080
        %v1089 = vcombine.high %v1087, %v1087
        %vm1090 = vcmask 23552
        %v1092 = vsel %vm1090, %v847, 0
        %vm1094 = vcmask 1040384
        %vm1095 = vcmask 1041408
        %v1096 = vsel %vm1094, 4294967295, 65535
        %v1097 = vsel %vm1095, %v1096, 0
        %v1099 = vand.u32 %v1080, %v1097
        %v1102 = vand.u32 %v1088, %v1097
        %v1105 = vand.u32 %v1087, %v1097
        %v1108 = vand.u32 %v1089, %v1097
        %1110 = vmatprep.subr.bf16.mxu0 %v1102
        %1111 = vmatpush1.bf16.msra.mxu0 %v1099
        %1112 = vmatprep.subr.bf16.mxu0 0
        %1113 = vmatpush1.bf16.msra.mxu0 0
        %1114 = vmatprep.subr.bf16.mxu0 0
        %1115 = vmatpush1.bf16.msra.mxu0 0
        %1116 = vmatprep.subr.bf16.mxu0 0
        %1117 = vmatpush1.bf16.msra.mxu0 0
        %1118 = vmatprep.subr.bf16.mxu0 0
        %1119 = vmatpush1.bf16.msra.mxu0 0
        %1120 = vmatprep.subr.bf16.mxu0 0
        %1121 = vmatpush1.bf16.msra.mxu0 0
        %1122 = vmatprep.subr.bf16.mxu0 0
        %1123 = vmatpush1.bf16.msra.mxu0 0
        %1124 = vmatprep.subr.bf16.mxu0 0
        %1125 = vmatpush1.bf16.msra.mxu0 0
        %1126 = vmatprep.subr.bf16.mxu0 0
        %1127 = vmatpush1.bf16.msra.mxu0 0
        %1128 = vmatprep.subr.bf16.mxu0 0
        %1129 = vmatpush1.bf16.msra.mxu0 0
        %1130 = vmatprep.subr.bf16.mxu0 0
        %1131 = vmatpush1.bf16.msra.mxu0 0
        %1132 = vmatprep.subr.bf16.mxu0 0
        %1133 = vmatpush1.bf16.msra.mxu0 0
        %1134 = vmatprep.subr.bf16.mxu0 0
        %1135 = vmatpush1.bf16.msra.mxu0 0
        %1136 = vmatprep.subr.bf16.mxu0 0
        %1137 = vmatpush1.bf16.msra.mxu0 0
        %1138 = vmatprep.subr.bf16.mxu0 0
        %1139 = vmatpush1.bf16.msra.mxu0 0
        %1140 = vmatprep.subr.bf16.mxu0 0
        %1141 = vmatpush1.bf16.msra.mxu0 0
        %1142 = vmatprep.mubr.bf16.mxu0 0
        %1143 = vmatmul.mubr.bf16.gmra.mrb[0].mxu0 %v1092
        %v1144 = vpop.f32.mrb[0].mxu0
        %v1145 = vadd.f32 0.0, %v1144
        %v1146 = vpop.f32.mrb[0].mxu0
        %v1147 = vadd.f32 0.0, %v1146
        %v1148 = vpop.f32.mrb[0].mxu0
        %v1149 = vpop.f32.mrb[0].mxu0
        %1150 = vdwg.mxu0
        %1151 = vmatprep.subr.bf16.mxu0 %v1108
        %1152 = vmatpush1.bf16.msra.mxu0 %v1105
        %1153 = vmatprep.subr.bf16.mxu0 0
        %1154 = vmatpush1.bf16.msra.mxu0 0
        %1155 = vmatprep.subr.bf16.mxu0 0
        %1156 = vmatpush1.bf16.msra.mxu0 0
        %1157 = vmatprep.subr.bf16.mxu0 0
        %1158 = vmatpush1.bf16.msra.mxu0 0
        %1159 = vmatprep.subr.bf16.mxu0 0
        %1160 = vmatpush1.bf16.msra.mxu0 0
        %1161 = vmatprep.subr.bf16.mxu0 0
        %1162 = vmatpush1.bf16.msra.mxu0 0
        %1163 = vmatprep.subr.bf16.mxu0 0
        %1164 = vmatpush1.bf16.msra.mxu0 0
        %1165 = vmatprep.subr.bf16.mxu0 0
        %1166 = vmatpush1.bf16.msra.mxu0 0
        %1167 = vmatprep.subr.bf16.mxu0 0
        %1168 = vmatpush1.bf16.msra.mxu0 0
        %1169 = vmatprep.subr.bf16.mxu0 0
        %1170 = vmatpush1.bf16.msra.mxu0 0
        %1171 = vmatprep.subr.bf16.mxu0 0
        %1172 = vmatpush1.bf16.msra.mxu0 0
        %1173 = vmatprep.subr.bf16.mxu0 0
        %1174 = vmatpush1.bf16.msra.mxu0 0
        %1175 = vmatprep.subr.bf16.mxu0 0
        %1176 = vmatpush1.bf16.msra.mxu0 0
        %1177 = vmatprep.subr.bf16.mxu0 0
        %1178 = vmatpush1.bf16.msra.mxu0 0
        %1179 = vmatprep.subr.bf16.mxu0 0
        %1180 = vmatpush1.bf16.msra.mxu0 0
        %1181 = vmatprep.subr.bf16.mxu0 0
        %1182 = vmatpush1.bf16.msra.mxu0 0
        %1183 = vmatprep.mubr.bf16.mxu0 0
        %1184 = vmatmul.mubr.bf16.gmra.mrb[0].mxu0 %v1092
        %v1185 = vpop.f32.mrb[0].mxu0
        %v1186 = vadd.f32 0.0, %v1185
        %v1187 = vpop.f32.mrb[0].mxu0
        %v1188 = vadd.f32 0.0, %v1187
        %v1189 = vpop.f32.mrb[0].mxu0
        %v1190 = vpop.f32.mrb[0].mxu0
        %1191 = vdwg.mxu0
        %v1192 = vadd.f32 %v1024, %v1145
        %v1193 = vadd.f32 %v1026, %v1147
        %v1194 = vadd.f32 %v1065, %v1186
        %v1195 = vadd.f32 %v1067, %v1188
        %v1196 = vld [vmem:[#allocation8] sm:$0xf]
        %1198 = vset.pattern.permute.xlu0 0
        %1199 = vperm.xlu0 %1198, %v848
        %v1200 = vpop.permute.xlu0 %1199
        %v1203 = vlaneseq
        %v1204 = vshrl.u32 %v1203, 7
        %v1205 = vsub.s32 0, %v1204
        %v1206 = vrot.slane %v1196, %v1205
        %v1207 = vlaneseq
        %v1208 = vshrl.u32 %v1207, 7
        %v1209 = vsub.s32 1, %v1208
        %v1210 = vrot.slane %v1196, %v1209
        %v1211 = vlaneseq
        %v1212 = vshrl.u32 %v1211, 7
        %v1213 = vsub.s32 2, %v1212
        %v1214 = vrot.slane %v1196, %v1213
        %v1215 = vlaneseq
        %v1216 = vshrl.u32 %v1215, 7
        %v1217 = vsub.s32 3, %v1216
        %v1218 = vrot.slane %v1196, %v1217
        %v1223 = vmul.f32 %v1200, %v1206
        %v1224 = vmul.f32 %v1200, %v1210
        %v1225 = vmul.f32 %v1200, %v1214
        %v1226 = vmul.f32 %v1200, %v1218
        %v1227 = vadd.f32 %v1192, %v1223
        %v1228 = vadd.f32 %v1193, %v1224
        %v1229 = vadd.f32 %v1194, %v1225
        %v1230 = vadd.f32 %v1195, %v1226
        %v1231 = vld [vmem:[#allocation10] sm:$0x77]
        %v1232 = vld [vmem:[#allocation10 + $0x8] sm:$0x77]
        %v1233 = vld [vmem:[#allocation11] sm:$0xf]
        %v1236 = vunpack.c.l.b16 %v1231
        %v1237 = vunpack.c.h.b16 %v1231
        %v1238 = vunpack.c.l.b16 %v1232
        %v1239 = vunpack.c.h.b16 %v1232
        %v1240 = vpack.c.b16 %v1236, %v1236
        %v1241 = vpack.c.b16 %v1237, %v1237
        %v1242 = vpack.c.b16 %v1238, %v1238
        %v1243 = vpack.c.b16 %v1239, %v1239
        %v1245 = vlaneseq
        %v1246 = vshrl.u32 %v1245, 7
        %v1247 = vsub.s32 0, %v1246
        %v1248 = vrot.slane %v1233, %v1247
        %v1249 = vlaneseq
        %v1250 = vshrl.u32 %v1249, 7
        %v1251 = vsub.s32 1, %v1250
        %v1252 = vrot.slane %v1233, %v1251
        %v1253 = vlaneseq
        %v1254 = vshrl.u32 %v1253, 7
        %v1255 = vsub.s32 2, %v1254
        %v1256 = vrot.slane %v1233, %v1255
        %v1257 = vlaneseq
        %v1258 = vshrl.u32 %v1257, 7
        %v1259 = vsub.s32 3, %v1258
        %v1260 = vrot.slane %v1233, %v1259
        %vm1265 = vcmask 39936
        %v1267 = vsel %vm1265, %v850, 0
        %v1269 = vsel %vm1095, 4294967295, 65535
        %v1270 = vsel %vm869, %v1269, 0
        %v1272 = vand.u32 %v1240, %v1270
        %v1275 = vand.u32 %v1241, %v1270
        %v1278 = vand.u32 %v1242, %v1270
        %v1281 = vand.u32 %v1243, %v1270
        %1283 = vmatprep.subr.bf16.mxu0 %v1275
        %1284 = vmatpush1.bf16.msra.mxu0 %v1272
        %1285 = vmatprep.subr.bf16.mxu0 0
        %1286 = vmatpush1.bf16.msra.mxu0 0
        %1287 = vmatprep.subr.bf16.mxu0 0
        %1288 = vmatpush1.bf16.msra.mxu0 0
        %1289 = vmatprep.subr.bf16.mxu0 0
        %1290 = vmatpush1.bf16.msra.mxu0 0
        %1291 = vmatprep.subr.bf16.mxu0 0
        %1292 = vmatpush1.bf16.msra.mxu0 0
        %1293 = vmatprep.subr.bf16.mxu0 0
        %1294 = vmatpush1.bf16.msra.mxu0 0
        %1295 = vmatprep.subr.bf16.mxu0 0
        %1296 = vmatpush1.bf16.msra.mxu0 0
        %1297 = vmatprep.subr.bf16.mxu0 0
        %1298 = vmatpush1.bf16.msra.mxu0 0
        %1299 = vmatprep.subr.bf16.mxu0 0
        %1300 = vmatpush1.bf16.msra.mxu0 0
        %1301 = vmatprep.subr.bf16.mxu0 0
        %1302 = vmatpush1.bf16.msra.mxu0 0
        %1303 = vmatprep.subr.bf16.mxu0 0
        %1304 = vmatpush1.bf16.msra.mxu0 0
        %1305 = vmatprep.subr.bf16.mxu0 0
        %1306 = vmatpush1.bf16.msra.mxu0 0
        %1307 = vmatprep.subr.bf16.mxu0 0
        %1308 = vmatpush1.bf16.msra.mxu0 0
        %1309 = vmatprep.subr.bf16.mxu0 0
        %1310 = vmatpush1.bf16.msra.mxu0 0
        %1311 = vmatprep.subr.bf16.mxu0 0
        %1312 = vmatpush1.bf16.msra.mxu0 0
        %1313 = vmatprep.subr.bf16.mxu0 0
        %1314 = vmatpush1.bf16.msra.mxu0 0
        %1315 = vmatprep.mubr.bf16.mxu0 0
        %1316 = vmatmul.mubr.bf16.gmra.mrb[0].mxu0 %v1267
        %v1317 = vpop.f32.mrb[0].mxu0
        %v1318 = vadd.f32 %v1248, %v1317
        %v1319 = vpop.f32.mrb[0].mxu0
        %v1320 = vadd.f32 %v1252, %v1319
        %v1321 = vpop.f32.mrb[0].mxu0
        %v1322 = vpop.f32.mrb[0].mxu0
        %1323 = vdwg.mxu0
        %1324 = vmatprep.subr.bf16.mxu0 %v1281
        %1325 = vmatpush1.bf16.msra.mxu0 %v1278
        %1326 = vmatprep.subr.bf16.mxu0 0
        %1327 = vmatpush1.bf16.msra.mxu0 0
        %1328 = vmatprep.subr.bf16.mxu0 0
        %1329 = vmatpush1.bf16.msra.mxu0 0
        %1330 = vmatprep.subr.bf16.mxu0 0
        %1331 = vmatpush1.bf16.msra.mxu0 0
        %1332 = vmatprep.subr.bf16.mxu0 0
        %1333 = vmatpush1.bf16.msra.mxu0 0
        %1334 = vmatprep.subr.bf16.mxu0 0
        %1335 = vmatpush1.bf16.msra.mxu0 0
        %1336 = vmatprep.subr.bf16.mxu0 0
        %1337 = vmatpush1.bf16.msra.mxu0 0
        %1338 = vmatprep.subr.bf16.mxu0 0
        %1339 = vmatpush1.bf16.msra.mxu0 0
        %1340 = vmatprep.subr.bf16.mxu0 0
        %1341 = vmatpush1.bf16.msra.mxu0 0
        %1342 = vmatprep.subr.bf16.mxu0 0
        %1343 = vmatpush1.bf16.msra.mxu0 0
        %1344 = vmatprep.subr.bf16.mxu0 0
        %1345 = vmatpush1.bf16.msra.mxu0 0
        %1346 = vmatprep.subr.bf16.mxu0 0
        %1347 = vmatpush1.bf16.msra.mxu0 0
        %1348 = vmatprep.subr.bf16.mxu0 0
        %1349 = vmatpush1.bf16.msra.mxu0 0
        %1350 = vmatprep.subr.bf16.mxu0 0
        %1351 = vmatpush1.bf16.msra.mxu0 0
        %1352 = vmatprep.subr.bf16.mxu0 0
        %1353 = vmatpush1.bf16.msra.mxu0 0
        %1354 = vmatprep.subr.bf16.mxu0 0
        %1355 = vmatpush1.bf16.msra.mxu0 0
        %1356 = vmatprep.mubr.bf16.mxu0 0
        %1357 = vmatmul.mubr.bf16.gmra.mrb[0].mxu0 %v1267
        %v1358 = vpop.f32.mrb[0].mxu0
        %v1359 = vadd.f32 %v1256, %v1358
        %v1360 = vpop.f32.mrb[0].mxu0
        %v1361 = vadd.f32 %v1260, %v1360
        %v1362 = vpop.f32.mrb[0].mxu0
        %v1363 = vpop.f32.mrb[0].mxu0
        %1364 = vdwg.mxu0
        %v1365 = vlaneseq
        %v1366 = vshrl.u32 %v1365, 7
        %v1367 = vsub.s32 0, %v1366
        %v1368 = vrot.slane %v1318, %v1367
        %v1369 = vlaneseq
        %v1370 = vshrl.u32 %v1369, 7
        %v1371 = vsub.s32 0, %v1370
        %v1372 = vrot.slane %v1320, %v1371
        %v1373 = vlaneseq
        %v1374 = vshrl.u32 %v1373, 7
        %v1375 = vsub.s32 0, %v1374
        %v1376 = vrot.slane %v1359, %v1375
        %v1377 = vlaneseq
        %v1378 = vshrl.u32 %v1377, 7
        %v1379 = vsub.s32 0, %v1378
        %v1380 = vrot.slane %v1361, %v1379
        %v1381 = vadd.f32 %v1227, %v1368
        %v1382 = vadd.f32 %v1228, %v1372
        %v1383 = vadd.f32 %v1229, %v1376
        %v1384 = vadd.f32 %v1230, %v1380
        %v1385 = vpack.c.bf16 %v1382, %v1382
        %v1386 = vpack.c.bf16 %v1383, %v1383
        %v1387 = vpack.c.bf16 %v1384, %v1384
        %1388 = vmatprep.subr.bf16.mxu0 0
        %1389 = vmatpush1.bf16.xpose.msra.mxu0 %v1386
        %1390 = vmatprep.subr.bf16.mxu0 0
        %1391 = vmatpush1.bf16.xpose.msra.mxu0 0
        %1392 = vmatprep.subr.bf16.mxu0 0
        %1393 = vmatpush1.bf16.xpose.msra.mxu0 0
        %1394 = vmatprep.subr.bf16.mxu0 0
        %1395 = vmatpush1.bf16.xpose.msra.mxu0 0
        %1396 = vmatprep.subr.bf16.mxu0 0
        %1397 = vmatpush1.bf16.xpose.msra.mxu0 0
        %1398 = vmatprep.subr.bf16.mxu0 0
        %1399 = vmatpush1.bf16.xpose.msra.mxu0 0
        %1400 = vmatprep.subr.bf16.mxu0 0
        %1401 = vmatpush1.bf16.xpose.msra.mxu0 0
        %1402 = vmatprep.subr.bf16.mxu0 0
        %1403 = vmatpush1.bf16.xpose.msra.mxu0 0
        %1404 = vmatprep.subr.bf16.mxu0 0
        %1405 = vmatpush1.bf16.xpose.msra.mxu0 0
        %1406 = vmatprep.subr.bf16.mxu0 0
        %1407 = vmatpush1.bf16.xpose.msra.mxu0 0
        %1408 = vmatprep.subr.bf16.mxu0 0
        %1409 = vmatpush1.bf16.xpose.msra.mxu0 0
        %1410 = vmatprep.subr.bf16.mxu0 0
        %1411 = vmatpush1.bf16.xpose.msra.mxu0 0
        %1412 = vmatprep.subr.bf16.mxu0 0
        %1413 = vmatpush1.bf16.xpose.msra.mxu0 0
        %1414 = vmatprep.subr.bf16.mxu0 0
        %1415 = vmatpush1.bf16.xpose.msra.mxu0 0
        %1416 = vmatprep.subr.bf16.mxu0 0
        %1417 = vmatpush1.bf16.xpose.msra.mxu0 0
        %1418 = vmatprep.subr.bf16.mxu0 0
        %1419 = vmatpush1.bf16.xpose.msra.mxu0 0
        %1420 = vmatprep.mubr.bf16.mxu0 0
        %1421 = vmatmul.mubr.bf16.gmra.mrb[0].mxu0 %v1385
        %v1422 = vpop.f32.mrb[0].mxu0
        %v1423 = vadd.f32 0.0, %v1422
        %v1424 = vpop.f32.mrb[0].mxu0
        %v1425 = vpop.f32.mrb[0].mxu0
        %v1426 = vpop.f32.mrb[0].mxu0
        %1427 = vdwg.mxu0
        %vm1428 = vcmask 64512
        %v1429 = vsel %vm1428, %v1423, -inf
        %1430 = vmax.xlane.f32.xlu0 %v1429
        %v1431 = vpop.xlane.xlu0 %1430
        %v1432 = vsub.f32 %v1423, %v1431
        %v1433 = vmul.f32 %v1432, 1.442695
        %v1434 = vpow.pop %v1433
        %v1435 = vsel %vm1428, %v1434, 0.0
        %1436 = vadd.xlane.f32.xlu0 %v1435
        %v1437 = vpop.xlane.xlu0 %1436
        %v1438 = vrcp.pop %v1437
        %v1439 = vmul.f32 %v1434, %v1438
        %v1440 = vpack.c.bf16 %v1439, %v1439
        %v1442 = vsel %vm1428, %v1440, 0
        %vm1444 = vcmask 1043456
        %v1446 = vsel %vm1444, %v1387, 0
        %1448 = vmatprep.subr.bf16.mxu0 0
        %1449 = vmatpush1.bf16.msra.mxu0 %v1446
        %1450 = vmatprep.subr.bf16.mxu0 0
        %1451 = vmatpush1.bf16.msra.mxu0 0
        %1452 = vmatprep.subr.bf16.mxu0 0
        %1453 = vmatpush1.bf16.msra.mxu0 0
        %1454 = vmatprep.subr.bf16.mxu0 0
        %1455 = vmatpush1.bf16.msra.mxu0 0
        %1456 = vmatprep.subr.bf16.mxu0 0
        %1457 = vmatpush1.bf16.msra.mxu0 0
        %1458 = vmatprep.subr.bf16.mxu0 0
        %1459 = vmatpush1.bf16.msra.mxu0 0
        %1460 = vmatprep.subr.bf16.mxu0 0
        %1461 = vmatpush1.bf16.msra.mxu0 0
        %1462 = vmatprep.subr.bf16.mxu0 0
        %1463 = vmatpush1.bf16.msra.mxu0 0
        %1464 = vmatprep.subr.bf16.mxu0 0
        %1465 = vmatpush1.bf16.msra.mxu0 0
        %1466 = vmatprep.subr.bf16.mxu0 0
        %1467 = vmatpush1.bf16.msra.mxu0 0
        %1468 = vmatprep.subr.bf16.mxu0 0
        %1469 = vmatpush1.bf16.msra.mxu0 0
        %1470 = vmatprep.subr.bf16.mxu0 0
        %1471 = vmatpush1.bf16.msra.mxu0 0
        %1472 = vmatprep.subr.bf16.mxu0 0
        %1473 = vmatpush1.bf16.msra.mxu0 0
        %1474 = vmatprep.subr.bf16.mxu0 0
        %1475 = vmatpush1.bf16.msra.mxu0 0
        %1476 = vmatprep.subr.bf16.mxu0 0
        %1477 = vmatpush1.bf16.msra.mxu0 0
        %1478 = vmatprep.subr.bf16.mxu0 0
        %1479 = vmatpush1.bf16.msra.mxu0 0
        %1480 = vmatprep.mubr.bf16.mxu0 0
        %1481 = vmatmul.mubr.bf16.gmra.mrb[0].mxu0 %v1442
        %v1482 = vpop.f32.mrb[0].mxu0
        %v1483 = vadd.f32 0.0, %v1482
        %v1484 = vpop.f32.mrb[0].mxu0
        %v1485 = vpop.f32.mrb[0].mxu0
        %v1486 = vpop.f32.mrb[0].mxu0
        %1487 = vdwg.mxu0
        %v1488 = vadd.f32 %v1381, %v1483
        %v1489 = vpack.c.bf16 %v1488, %v1488
        %v1490 = vld [vmem:[#allocation13] sm:$0xf]
        %v1491 = vld [vmem:[#allocation13 + $0x4] sm:$0xf]
        %v1492 = vld [vmem:[#allocation13 + $0x8] sm:$0xf]
        %v1493 = vld [vmem:[#allocation13 + $0xc] sm:$0xf]
        %v1494 = vld [vmem:[#allocation13 + $0x10] sm:$0xf]
        %v1495 = vld [vmem:[#allocation13 + $0x14] sm:$0xf]
        %v1496 = vld [vmem:[#allocation13 + $0x18] sm:$0xf]
        %v1497 = vld [vmem:[#allocation13 + $0x1c] sm:$0xf]
        %v1498 = vld [vmem:[#allocation13 + $0x20] sm:$0xf]
        %v1499 = vld [vmem:[#allocation13 + $0x24] sm:$0xf]
        %v1500 = vld [vmem:[#allocation13 + $0x28] sm:$0xf]
        %v1501 = vld [vmem:[#allocation13 + $0x2c] sm:$0xf]
        %v1502 = vld [vmem:[#allocation13 + $0x30] sm:$0xf]
        %v1503 = vld [vmem:[#allocation13 + $0x34] sm:$0xf]
        %v1504 = vld [vmem:[#allocation13 + $0x38] sm:$0xf]
        %v1505 = vld [vmem:[#allocation13 + $0x3c] sm:$0xf]
        %v1506 = vld [vmem:[#allocation14] sm:$0x1]
        %v1508 = vlaneseq
        %v1509 = vshrl.u32 %v1508, 7
        %v1510 = vsub.s32 0, %v1509
        %v1511 = vrot.slane %v1506, %v1510
        %v1529 = vunpack.c.l.b16 %v1490
        %v1530 = vunpack.c.l.b16 %v1491
        %v1531 = vunpack.c.l.b16 %v1492
        %v1532 = vunpack.c.l.b16 %v1493
        %v1533 = vunpack.c.l.b16 %v1494
        %v1534 = vunpack.c.l.b16 %v1495
        %v1535 = vunpack.c.l.b16 %v1496
        %v1536 = vunpack.c.l.b16 %v1497
        %v1537 = vunpack.c.l.b16 %v1498
        %v1538 = vunpack.c.l.b16 %v1499
        %v1539 = vunpack.c.l.b16 %v1500
        %v1540 = vunpack.c.l.b16 %v1501
        %v1541 = vunpack.c.l.b16 %v1502
        %v1542 = vunpack.c.l.b16 %v1503
        %v1543 = vunpack.c.l.b16 %v1504
        %v1544 = vunpack.c.l.b16 %v1505
        %v1545 = vpack.c.b16 %v1530, %v1529
        %v1546 = vpack.c.b16 %v1532, %v1531
        %v1547 = vpack.c.b16 %v1534, %v1533
        %v1548 = vpack.c.b16 %v1536, %v1535
        %v1549 = vpack.c.b16 %v1538, %v1537
        %v1550 = vpack.c.b16 %v1540, %v1539
        %v1551 = vpack.c.b16 %v1542, %v1541
        %v1552 = vpack.c.b16 %v1544, %v1543
        %1561 = vmatprep.subr.bf16.mxu0 0
        %1562 = vmatpush1.bf16.msra.mxu0 %v1545
        %1563 = vmatprep.subr.bf16.mxu0 0
        %1564 = vmatpush1.bf16.msra.mxu0 %v1546
        %1565 = vmatprep.subr.bf16.mxu0 0
        %1566 = vmatpush1.bf16.msra.mxu0 %v1547
        %1567 = vmatprep.subr.bf16.mxu0 0
        %1568 = vmatpush1.bf16.msra.mxu0 %v1548
        %1569 = vmatprep.subr.bf16.mxu0 0
        %1570 = vmatpush1.bf16.msra.mxu0 %v1549
        %1571 = vmatprep.subr.bf16.mxu0 0
        %1572 = vmatpush1.bf16.msra.mxu0 %v1550
        %1573 = vmatprep.subr.bf16.mxu0 0
        %1574 = vmatpush1.bf16.msra.mxu0 %v1551
        %1575 = vmatprep.subr.bf16.mxu0 0
        %1576 = vmatpush1.bf16.msra.mxu0 %v1552
        %1577 = vmatprep.subr.bf16.mxu0 0
        %1578 = vmatpush1.bf16.msra.mxu0 0
        %1579 = vmatprep.subr.bf16.mxu0 0
        %1580 = vmatpush1.bf16.msra.mxu0 0
        %1581 = vmatprep.subr.bf16.mxu0 0
        %1582 = vmatpush1.bf16.msra.mxu0 0
        %1583 = vmatprep.subr.bf16.mxu0 0
        %1584 = vmatpush1.bf16.msra.mxu0 0
        %1585 = vmatprep.subr.bf16.mxu0 0
        %1586 = vmatpush1.bf16.msra.mxu0 0
        %1587 = vmatprep.subr.bf16.mxu0 0
        %1588 = vmatpush1.bf16.msra.mxu0 0
        %1589 = vmatprep.subr.bf16.mxu0 0
        %1590 = vmatpush1.bf16.msra.mxu0 0
        %1591 = vmatprep.subr.bf16.mxu0 0
        %1592 = vmatpush1.bf16.msra.mxu0 0
        %1593 = vmatprep.mubr.bf16.mxu0 0
        %1594 = vmatmul.mubr.bf16.gmra.mrb[0].mxu0 %v1489
        %v1595 = vpop.f32.mrb[0].mxu0
        %v1596 = vadd.f32 %v1511, %v1595
        %v1597 = vpop.f32.mrb[0].mxu0
        %v1598 = vpop.f32.mrb[0].mxu0
        %v1599 = vpop.f32.mrb[0].mxu0
        %1600 = vdwg.mxu0
        %v1601 = vtanh.pop %v1596
        %v1602 = vpack.c.bf16 %v1601, %v1601
        %v1603 = vld [vmem:[%s13] sm:$0xff]
        %v1604 = vld [vmem:[%s13 + $0x8] sm:$0xff]
        %v1605 = vld [vmem:[%s13 + $0x10] sm:$0xff]
        %v1606 = vld [vmem:[%s13 + $0x18] sm:$0xff]
        %v1607 = vld [vmem:[%s13 + $0x20] sm:$0xff]
        %v1608 = vld [vmem:[%s13 + $0x28] sm:$0xff]
        %v1609 = vld [vmem:[%s13 + $0x30] sm:$0xff]
        %v1610 = vld [vmem:[%s13 + $0x38] sm:$0xff]
        %v1611 = vld [vmem:[%s13 + $0x40] sm:$0xff]
        %v1612 = vld [vmem:[%s13 + $0x48] sm:$0xff]
        %v1613 = vld [vmem:[%s13 + $0x50] sm:$0xff]
        %v1614 = vld [vmem:[%s13 + $0x58] sm:$0xff]
        %v1615 = vld [vmem:[%s13 + $0x60] sm:$0xff]
        %v1616 = vld [vmem:[%s13 + $0x68] sm:$0xff]
        %v1617 = vld [vmem:[%s13 + $0x70] sm:$0xff]
        %v1618 = vld [vmem:[%s13 + $0x78] sm:$0xff]
        %v1619 = vld [vmem:[#allocation16] sm:$0x77]
        %v1621 = vunpack.c.l.b16 %v1619
        %v1622 = vunpack.c.h.b16 %v1619
        %v1623 = vpack.c.b16 %v1621, %v1621
        %v1624 = vpack.c.b16 %v1622, %v1622
        %v1626 = vsel %vm869, %v1623, 0
        %v1629 = vsel %vm869, %v1624, 0
        %1631 = vmatprep.subr.bf16.mxu0 %v1629
        %1632 = vmatpush1.bf16.msra.mxu0 %v1626
        %1633 = vmatprep.subr.bf16.mxu0 0
        %1634 = vmatpush1.bf16.msra.mxu0 0
        %1635 = vmatprep.subr.bf16.mxu0 0
        %1636 = vmatpush1.bf16.msra.mxu0 0
        %1637 = vmatprep.subr.bf16.mxu0 0
        %1638 = vmatpush1.bf16.msra.mxu0 0
        %1639 = vmatprep.subr.bf16.mxu0 0
        %1640 = vmatpush1.bf16.msra.mxu0 0
        %1641 = vmatprep.subr.bf16.mxu0 0
        %1642 = vmatpush1.bf16.msra.mxu0 0
        %1643 = vmatprep.subr.bf16.mxu0 0
        %1644 = vmatpush1.bf16.msra.mxu0 0
        %1645 = vmatprep.subr.bf16.mxu0 0
        %1646 = vmatpush1.bf16.msra.mxu0 0
        %1647 = vmatprep.subr.bf16.mxu0 0
        %1648 = vmatpush1.bf16.msra.mxu0 0
        %1649 = vmatprep.subr.bf16.mxu0 0
        %1650 = vmatpush1.bf16.msra.mxu0 0
        %1651 = vmatprep.subr.bf16.mxu0 0
        %1652 = vmatpush1.bf16.msra.mxu0 0
        %1653 = vmatprep.subr.bf16.mxu0 0
        %1654 = vmatpush1.bf16.msra.mxu0 0
        %1655 = vmatprep.subr.bf16.mxu0 0
        %1656 = vmatpush1.bf16.msra.mxu0 0
        %1657 = vmatprep.subr.bf16.mxu0 0
        %1658 = vmatpush1.bf16.msra.mxu0 0
        %1659 = vmatprep.subr.bf16.mxu0 0
        %1660 = vmatpush1.bf16.msra.mxu0 0
        %1661 = vmatprep.subr.bf16.mxu0 0
        %1662 = vmatpush1.bf16.msra.mxu0 0
        %1663 = vmatprep.mubr.bf16.mxu0 0
        %1664 = vmatmul.mubr.bf16.gmra.mrb[0].mxu0 %v975
        %v1665 = vpop.f32.mrb[0].mxu0
        %v1666 = vadd.f32 0.0, %v1665
        %v1667 = vpop.f32.mrb[0].mxu0
        %v1668 = vadd.f32 0.0, %v1667
        %v1669 = vpop.f32.mrb[0].mxu0
        %v1670 = vpop.f32.mrb[0].mxu0
        %1671 = vdwg.mxu0
        %v1688 = vunpack.c.l.b16 %v1603
        %v1689 = vunpack.c.h.b16 %v1603
        %v1690 = vunpack.c.l.b16 %v1604
        %v1691 = vunpack.c.h.b16 %v1604
        %v1692 = vunpack.c.l.b16 %v1605
        %v1693 = vunpack.c.h.b16 %v1605
        %v1694 = vunpack.c.l.b16 %v1606
        %v1695 = vunpack.c.h.b16 %v1606
        %v1696 = vunpack.c.l.b16 %v1607
        %v1697 = vunpack.c.h.b16 %v1607
        %v1698 = vunpack.c.l.b16 %v1608
        %v1699 = vunpack.c.h.b16 %v1608
        %v1700 = vunpack.c.l.b16 %v1609
        %v1701 = vunpack.c.h.b16 %v1609
        %v1702 = vunpack.c.l.b16 %v1610
        %v1703 = vunpack.c.h.b16 %v1610
        %v1704 = vunpack.c.l.b16 %v1611
        %v1705 = vunpack.c.h.b16 %v1611
        %v1706 = vunpack.c.l.b16 %v1612
        %v1707 = vunpack.c.h.b16 %v1612
        %v1708 = vunpack.c.l.b16 %v1613
        %v1709 = vunpack.c.h.b16 %v1613
        %v1710 = vunpack.c.l.b16 %v1614
        %v1711 = vunpack.c.h.b16 %v1614
        %v1712 = vunpack.c.l.b16 %v1615
        %v1713 = vunpack.c.h.b16 %v1615
        %v1714 = vunpack.c.l.b16 %v1616
        %v1715 = vunpack.c.h.b16 %v1616
        %v1716 = vunpack.c.l.b16 %v1617
        %v1717 = vunpack.c.h.b16 %v1617
        %v1718 = vunpack.c.l.b16 %v1618
        %v1719 = vunpack.c.h.b16 %v1618
        %v1720 = vpack.c.b16 %v1690, %v1688
        %v1721 = vpack.c.b16 %v1691, %v1689
        %v1722 = vpack.c.b16 %v1694, %v1692
        %v1723 = vpack.c.b16 %v1695, %v1693
        %v1724 = vpack.c.b16 %v1698, %v1696
        %v1725 = vpack.c.b16 %v1699, %v1697
        %v1726 = vpack.c.b16 %v1702, %v1700
        %v1727 = vpack.c.b16 %v1703, %v1701
        %v1728 = vpack.c.b16 %v1706, %v1704
        %v1729 = vpack.c.b16 %v1707, %v1705
        %v1730 = vpack.c.b16 %v1710, %v1708
        %v1731 = vpack.c.b16 %v1711, %v1709
        %v1732 = vpack.c.b16 %v1714, %v1712
        %v1733 = vpack.c.b16 %v1715, %v1713
        %v1734 = vpack.c.b16 %v1718, %v1716
        %v1735 = vpack.c.b16 %v1719, %v1717
        %1752 = vmatprep.subr.bf16.mxu0 %v1721
        %1753 = vmatpush1.bf16.msra.mxu0 %v1720
        %1754 = vmatprep.subr.bf16.mxu0 %v1723
        %1755 = vmatpush1.bf16.msra.mxu0 %v1722
        %1756 = vmatprep.subr.bf16.mxu0 %v1725
        %1757 = vmatpush1.bf16.msra.mxu0 %v1724
        %1758 = vmatprep.subr.bf16.mxu0 %v1727
        %1759 = vmatpush1.bf16.msra.mxu0 %v1726
        %1760 = vmatprep.subr.bf16.mxu0 %v1729
        %1761 = vmatpush1.bf16.msra.mxu0 %v1728
        %1762 = vmatprep.subr.bf16.mxu0 %v1731
        %1763 = vmatpush1.bf16.msra.mxu0 %v1730
        %1764 = vmatprep.subr.bf16.mxu0 %v1733
        %1765 = vmatpush1.bf16.msra.mxu0 %v1732
        %1766 = vmatprep.subr.bf16.mxu0 %v1735
        %1767 = vmatpush1.bf16.msra.mxu0 %v1734
        %1768 = vmatprep.subr.bf16.mxu0 0
        %1769 = vmatpush1.bf16.msra.mxu0 0
        %1770 = vmatprep.subr.bf16.mxu0 0
        %1771 = vmatpush1.bf16.msra.mxu0 0
        %1772 = vmatprep.subr.bf16.mxu0 0
        %1773 = vmatpush1.bf16.msra.mxu0 0
        %1774 = vmatprep.subr.bf16.mxu0 0
        %1775 = vmatpush1.bf16.msra.mxu0 0
        %1776 = vmatprep.subr.bf16.mxu0 0
        %1777 = vmatpush1.bf16.msra.mxu0 0
        %1778 = vmatprep.subr.bf16.mxu0 0
        %1779 = vmatpush1.bf16.msra.mxu0 0
        %1780 = vmatprep.subr.bf16.mxu0 0
        %1781 = vmatpush1.bf16.msra.mxu0 0
        %1782 = vmatprep.subr.bf16.mxu0 0
        %1783 = vmatpush1.bf16.msra.mxu0 0
        %1784 = vmatprep.mubr.bf16.mxu0 0
        %1785 = vmatmul.mubr.bf16.gmra.mrb[0].mxu0 %v1602
        %v1786 = vpop.f32.mrb[0].mxu0
        %v1787 = vadd.f32 %v1666, %v1786
        %v1788 = vpop.f32.mrb[0].mxu0
        %v1789 = vadd.f32 %v1668, %v1788
        %v1790 = vpop.f32.mrb[0].mxu0
        %v1791 = vpop.f32.mrb[0].mxu0
        %1792 = vdwg.mxu0
        %v1793 = vld [vmem:[%s15] sm:$0x77]
        %v1794 = vld [vmem:[%s16] sm:$0x3]
        %v1796 = vunpack.c.l.b16 %v1793
        %v1797 = vunpack.c.h.b16 %v1793
        %v1798 = vpack.c.b16 %v1796, %v1796
        %v1799 = vpack.c.b16 %v1797, %v1797
        %v1801 = vlaneseq
        %v1802 = vshrl.u32 %v1801, 7
        %v1803 = vsub.s32 0, %v1802
        %v1804 = vrot.slane %v1794, %v1803
        %v1805 = vlaneseq
        %v1806 = vshrl.u32 %v1805, 7
        %v1807 = vsub.s32 1, %v1806
        %v1808 = vrot.slane %v1794, %v1807
        %v1812 = vand.u32 %v1798, %v1270
        %v1815 = vand.u32 %v1799, %v1270
        %1817 = vmatprep.subr.bf16.mxu0 %v1815
        %1818 = vmatpush1.bf16.msra.mxu0 %v1812
        %1819 = vmatprep.subr.bf16.mxu0 0
        %1820 = vmatpush1.bf16.msra.mxu0 0
        %1821 = vmatprep.subr.bf16.mxu0 0
        %1822 = vmatpush1.bf16.msra.mxu0 0
        %1823 = vmatprep.subr.bf16.mxu0 0
        %1824 = vmatpush1.bf16.msra.mxu0 0
        %1825 = vmatprep.subr.bf16.mxu0 0
        %1826 = vmatpush1.bf16.msra.mxu0 0
        %1827 = vmatprep.subr.bf16.mxu0 0
        %1828 = vmatpush1.bf16.msra.mxu0 0
        %1829 = vmatprep.subr.bf16.mxu0 0
        %1830 = vmatpush1.bf16.msra.mxu0 0
        %1831 = vmatprep.subr.bf16.mxu0 0
        %1832 = vmatpush1.bf16.msra.mxu0 0
        %1833 = vmatprep.subr.bf16.mxu0 0
        %1834 = vmatpush1.bf16.msra.mxu0 0
        %1835 = vmatprep.subr.bf16.mxu0 0
        %1836 = vmatpush1.bf16.msra.mxu0 0
        %1837 = vmatprep.subr.bf16.mxu0 0
        %1838 = vmatpush1.bf16.msra.mxu0 0
        %1839 = vmatprep.subr.bf16.mxu0 0
        %1840 = vmatpush1.bf16.msra.mxu0 0
        %1841 = vmatprep.subr.bf16.mxu0 0
        %1842 = vmatpush1.bf16.msra.mxu0 0
        %1843 = vmatprep.subr.bf16.mxu0 0
        %1844 = vmatpush1.bf16.msra.mxu0 0
        %1845 = vmatprep.subr.bf16.mxu0 0
        %1846 = vmatpush1.bf16.msra.mxu0 0
        %1847 = vmatprep.subr.bf16.mxu0 0
        %1848 = vmatpush1.bf16.msra.mxu0 0
        %1849 = vmatprep.mubr.bf16.mxu0 0
        %1850 = vmatmul.mubr.bf16.gmra.mrb[0].mxu0 %v1267
        %v1851 = vpop.f32.mrb[0].mxu0
        %v1852 = vadd.f32 %v1804, %v1851
        %v1853 = vpop.f32.mrb[0].mxu0
        %v1854 = vadd.f32 %v1808, %v1853
        %v1855 = vpop.f32.mrb[0].mxu0
        %v1856 = vpop.f32.mrb[0].mxu0
        %1857 = vdwg.mxu0
        %v1858 = vlaneseq
        %v1859 = vshrl.u32 %v1858, 7
        %v1860 = vsub.s32 0, %v1859
        %v1861 = vrot.slane %v1852, %v1860
        %v1862 = vlaneseq
        %v1863 = vshrl.u32 %v1862, 7
        %v1864 = vsub.s32 0, %v1863
        %v1865 = vrot.slane %v1854, %v1864
        %v1866 = vadd.f32 %v1787, %v1861
        %v1867 = vadd.f32 %v1789, %v1865
        %v1868 = vmax.f32 %v1866, 0.0
        %v1869 = vmax.f32 %v1867, 0.0
        %v1870 = vpack.c.bf16 %v1868, %v1868
        %v1871 = vpack.c.bf16 %v1869, %v1869
        %v1872 = vld [vmem:[#allocation17] sm:$0xf]
        %v1873 = vld [vmem:[#allocation17 + $0x4] sm:$0xf]
        %v1874 = vld [vmem:[#allocation17 + $0x8] sm:$0xf]
        %v1875 = vld [vmem:[#allocation17 + $0xc] sm:$0xf]
        %v1876 = vld [vmem:[#allocation17 + $0x10] sm:$0xf]
        %v1877 = vld [vmem:[#allocation17 + $0x14] sm:$0xf]
        %v1878 = vld [vmem:[#allocation17 + $0x18] sm:$0xf]
        %v1879 = vld [vmem:[#allocation17 + $0x1c] sm:$0xf]
        %v1880 = vld [vmem:[#allocation17 + $0x20] sm:$0xf]
        %v1881 = vld [vmem:[#allocation17 + $0x24] sm:$0xf]
        %v1882 = vld [vmem:[#allocation17 + $0x28] sm:$0xf]
        %v1883 = vld [vmem:[#allocation17 + $0x2c] sm:$0xf]
        %v1884 = vld [vmem:[#allocation17 + $0x30] sm:$0xf]
        %v1885 = vld [vmem:[#allocation17 + $0x34] sm:$0xf]
        %v1886 = vld [vmem:[#allocation17 + $0x38] sm:$0xf]
        %v1887 = vld [vmem:[#allocation17 + $0x3c] sm:$0xf]
        %v1888 = vld [vmem:[#allocation19] sm:$0xf]
        %v1889 = vld [vmem:[#allocation19 + $0x4] sm:$0xf]
        %v1890 = vld [vmem:[#allocation19 + $0x8] sm:$0xf]
        %v1891 = vld [vmem:[#allocation19 + $0xc] sm:$0xf]
        %v1892 = vld [vmem:[#allocation19 + $0x10] sm:$0xf]
        %v1893 = vld [vmem:[#allocation19 + $0x14] sm:$0xf]
        %v1894 = vld [vmem:[#allocation19 + $0x18] sm:$0xf]
        %v1895 = vld [vmem:[#allocation19 + $0x1c] sm:$0xf]
        %v1896 = vld [vmem:[#allocation19 + $0x20] sm:$0xf]
        %v1897 = vld [vmem:[#allocation19 + $0x24] sm:$0xf]
        %v1898 = vld [vmem:[#allocation19 + $0x28] sm:$0xf]
        %v1899 = vld [vmem:[#allocation19 + $0x2c] sm:$0xf]
        %v1900 = vld [vmem:[#allocation19 + $0x30] sm:$0xf]
        %v1901 = vld [vmem:[#allocation19 + $0x34] sm:$0xf]
        %v1902 = vld [vmem:[#allocation19 + $0x38] sm:$0xf]
        %v1903 = vld [vmem:[#allocation19 + $0x3c] sm:$0xf]
        %v1904 = vld [vmem:[#allocation19 + $0x40] sm:$0xf]
        %v1905 = vld [vmem:[#allocation19 + $0x44] sm:$0xf]
        %v1906 = vld [vmem:[#allocation19 + $0x48] sm:$0xf]
        %v1907 = vld [vmem:[#allocation19 + $0x4c] sm:$0xf]
        %v1908 = vld [vmem:[#allocation19 + $0x50] sm:$0xf]
        %v1909 = vld [vmem:[#allocation19 + $0x54] sm:$0xf]
        %v1910 = vld [vmem:[#allocation19 + $0x58] sm:$0xf]
        %v1911 = vld [vmem:[#allocation19 + $0x5c] sm:$0xf]
        %v1912 = vld [vmem:[#allocation19 + $0x60] sm:$0xf]
        %v1913 = vld [vmem:[#allocation19 + $0x64] sm:$0xf]
        %v1914 = vld [vmem:[#allocation19 + $0x68] sm:$0xf]
        %v1915 = vld [vmem:[#allocation19 + $0x6c] sm:$0xf]
        %v1916 = vld [vmem:[#allocation19 + $0x70] sm:$0xf]
        %v1917 = vld [vmem:[#allocation19 + $0x74] sm:$0xf]
        %v1918 = vld [vmem:[#allocation19 + $0x78] sm:$0xf]
        %v1919 = vld [vmem:[#allocation19 + $0x7c] sm:$0xf]
        %v1952 = vunpack.c.l.b16 %v1888
        %v1953 = vunpack.c.l.b16 %v1889
        %v1954 = vunpack.c.l.b16 %v1890
        %v1955 = vunpack.c.l.b16 %v1891
        %v1956 = vunpack.c.l.b16 %v1892
        %v1957 = vunpack.c.l.b16 %v1893
        %v1958 = vunpack.c.l.b16 %v1894
        %v1959 = vunpack.c.l.b16 %v1895
        %v1960 = vunpack.c.l.b16 %v1896
        %v1961 = vunpack.c.l.b16 %v1897
        %v1962 = vunpack.c.l.b16 %v1898
        %v1963 = vunpack.c.l.b16 %v1899
        %v1964 = vunpack.c.l.b16 %v1900
        %v1965 = vunpack.c.l.b16 %v1901
        %v1966 = vunpack.c.l.b16 %v1902
        %v1967 = vunpack.c.l.b16 %v1903
        %v1968 = vunpack.c.l.b16 %v1904
        %v1969 = vunpack.c.l.b16 %v1905
        %v1970 = vunpack.c.l.b16 %v1906
        %v1971 = vunpack.c.l.b16 %v1907
        %v1972 = vunpack.c.l.b16 %v1908
        %v1973 = vunpack.c.l.b16 %v1909
        %v1974 = vunpack.c.l.b16 %v1910
        %v1975 = vunpack.c.l.b16 %v1911
        %v1976 = vunpack.c.l.b16 %v1912
        %v1977 = vunpack.c.l.b16 %v1913
        %v1978 = vunpack.c.l.b16 %v1914
        %v1979 = vunpack.c.l.b16 %v1915
        %v1980 = vunpack.c.l.b16 %v1916
        %v1981 = vunpack.c.l.b16 %v1917
        %v1982 = vunpack.c.l.b16 %v1918
        %v1983 = vunpack.c.l.b16 %v1919
        %v1984 = vpack.c.b16 %v1953, %v1952
        %v1985 = vpack.c.b16 %v1955, %v1954
        %v1986 = vpack.c.b16 %v1957, %v1956
        %v1987 = vpack.c.b16 %v1959, %v1958
        %v1988 = vpack.c.b16 %v1961, %v1960
        %v1989 = vpack.c.b16 %v1963, %v1962
        %v1990 = vpack.c.b16 %v1965, %v1964
        %v1991 = vpack.c.b16 %v1967, %v1966
        %v1992 = vpack.c.b16 %v1969, %v1968
        %v1993 = vpack.c.b16 %v1971, %v1970
        %v1994 = vpack.c.b16 %v1973, %v1972
        %v1995 = vpack.c.b16 %v1975, %v1974
        %v1996 = vpack.c.b16 %v1977, %v1976
        %v1997 = vpack.c.b16 %v1979, %v1978
        %v1998 = vpack.c.b16 %v1981, %v1980
        %v1999 = vpack.c.b16 %v1983, %v1982
        %2016 = vmatprep.subr.bf16.mxu0 0
        %2017 = vmatpush1.bf16.msra.mxu0 %v1984
        %2018 = vmatprep.subr.bf16.mxu0 0
        %2019 = vmatpush1.bf16.msra.mxu0 %v1985
        %2020 = vmatprep.subr.bf16.mxu0 0
        %2021 = vmatpush1.bf16.msra.mxu0 %v1986
        %2022 = vmatprep.subr.bf16.mxu0 0
        %2023 = vmatpush1.bf16.msra.mxu0 %v1987
        %2024 = vmatprep.subr.bf16.mxu0 0
        %2025 = vmatpush1.bf16.msra.mxu0 %v1988
        %2026 = vmatprep.subr.bf16.mxu0 0
        %2027 = vmatpush1.bf16.msra.mxu0 %v1989
        %2028 = vmatprep.subr.bf16.mxu0 0
        %2029 = vmatpush1.bf16.msra.mxu0 %v1990
        %2030 = vmatprep.subr.bf16.mxu0 0
        %2031 = vmatpush1.bf16.msra.mxu0 %v1991
        %2032 = vmatprep.subr.bf16.mxu0 0
        %2033 = vmatpush1.bf16.msra.mxu0 %v1992
        %2034 = vmatprep.subr.bf16.mxu0 0
        %2035 = vmatpush1.bf16.msra.mxu0 %v1993
        %2036 = vmatprep.subr.bf16.mxu0 0
        %2037 = vmatpush1.bf16.msra.mxu0 %v1994
        %2038 = vmatprep.subr.bf16.mxu0 0
        %2039 = vmatpush1.bf16.msra.mxu0 %v1995
        %2040 = vmatprep.subr.bf16.mxu0 0
        %2041 = vmatpush1.bf16.msra.mxu0 %v1996
        %2042 = vmatprep.subr.bf16.mxu0 0
        %2043 = vmatpush1.bf16.msra.mxu0 %v1997
        %2044 = vmatprep.subr.bf16.mxu0 0
        %2045 = vmatpush1.bf16.msra.mxu0 %v1998
        %2046 = vmatprep.subr.bf16.mxu0 0
        %2047 = vmatpush1.bf16.msra.mxu0 %v1999
        %2048 = vmatprep.mubr.bf16.mxu0 %v1871
        %2049 = vmatmul.mubr.bf16.gmra.mrb[0].mxu0 %v1870
        %v2050 = vpop.f32.mrb[0].mxu0
        %v2051 = vadd.f32 0.0, %v2050
        %v2052 = vpop.f32.mrb[0].mxu0
        %v2053 = vpop.f32.mrb[0].mxu0
        %v2054 = vpop.f32.mrb[0].mxu0
        %2055 = vdwg.mxu0
        %v2072 = vunpack.c.l.b16 %v1872
        %v2073 = vunpack.c.l.b16 %v1873
        %v2074 = vunpack.c.l.b16 %v1874
        %v2075 = vunpack.c.l.b16 %v1875
        %v2076 = vunpack.c.l.b16 %v1876
        %v2077 = vunpack.c.l.b16 %v1877
        %v2078 = vunpack.c.l.b16 %v1878
        %v2079 = vunpack.c.l.b16 %v1879
        %v2080 = vunpack.c.l.b16 %v1880
        %v2081 = vunpack.c.l.b16 %v1881
        %v2082 = vunpack.c.l.b16 %v1882
        %v2083 = vunpack.c.l.b16 %v1883
        %v2084 = vunpack.c.l.b16 %v1884
        %v2085 = vunpack.c.l.b16 %v1885
        %v2086 = vunpack.c.l.b16 %v1886
        %v2087 = vunpack.c.l.b16 %v1887
        %v2088 = vpack.c.b16 %v2073, %v2072
        %v2089 = vpack.c.b16 %v2075, %v2074
        %v2090 = vpack.c.b16 %v2077, %v2076
        %v2091 = vpack.c.b16 %v2079, %v2078
        %v2092 = vpack.c.b16 %v2081, %v2080
        %v2093 = vpack.c.b16 %v2083, %v2082
        %v2094 = vpack.c.b16 %v2085, %v2084
        %v2095 = vpack.c.b16 %v2087, %v2086
        %2104 = vmatprep.subr.bf16.mxu0 0
        %2105 = vmatpush1.bf16.msra.mxu0 %v2088
        %2106 = vmatprep.subr.bf16.mxu0 0
        %2107 = vmatpush1.bf16.msra.mxu0 %v2089
        %2108 = vmatprep.subr.bf16.mxu0 0
        %2109 = vmatpush1.bf16.msra.mxu0 %v2090
        %2110 = vmatprep.subr.bf16.mxu0 0
        %2111 = vmatpush1.bf16.msra.mxu0 %v2091
        %2112 = vmatprep.subr.bf16.mxu0 0
        %2113 = vmatpush1.bf16.msra.mxu0 %v2092
        %2114 = vmatprep.subr.bf16.mxu0 0
        %2115 = vmatpush1.bf16.msra.mxu0 %v2093
        %2116 = vmatprep.subr.bf16.mxu0 0
        %2117 = vmatpush1.bf16.msra.mxu0 %v2094
        %2118 = vmatprep.subr.bf16.mxu0 0
        %2119 = vmatpush1.bf16.msra.mxu0 %v2095
        %2120 = vmatprep.subr.bf16.mxu0 0
        %2121 = vmatpush1.bf16.msra.mxu0 0
        %2122 = vmatprep.subr.bf16.mxu0 0
        %2123 = vmatpush1.bf16.msra.mxu0 0
        %2124 = vmatprep.subr.bf16.mxu0 0
        %2125 = vmatpush1.bf16.msra.mxu0 0
        %2126 = vmatprep.subr.bf16.mxu0 0
        %2127 = vmatpush1.bf16.msra.mxu0 0
        %2128 = vmatprep.subr.bf16.mxu0 0
        %2129 = vmatpush1.bf16.msra.mxu0 0
        %2130 = vmatprep.subr.bf16.mxu0 0
        %2131 = vmatpush1.bf16.msra.mxu0 0
        %2132 = vmatprep.subr.bf16.mxu0 0
        %2133 = vmatpush1.bf16.msra.mxu0 0
        %2134 = vmatprep.subr.bf16.mxu0 0
        %2135 = vmatpush1.bf16.msra.mxu0 0
        %2136 = vmatprep.mubr.bf16.mxu0 0
        %2137 = vmatmul.mubr.bf16.gmra.mrb[0].mxu0 %v1602
        %v2138 = vpop.f32.mrb[0].mxu0
        %v2139 = vadd.f32 %v2051, %v2138
        %v2140 = vpop.f32.mrb[0].mxu0
        %v2141 = vpop.f32.mrb[0].mxu0
        %v2142 = vpop.f32.mrb[0].mxu0
        %2143 = vdwg.mxu0
        %v2144 = vld [vmem:[%s19] sm:$0x1]
        %v2146 = vlaneseq
        %v2147 = vshrl.u32 %v2146, 7
        %v2148 = vsub.s32 0, %v2147
        %v2149 = vrot.slane %v2144, %v2148
        %v2151 = vadd.f32 %v2139, %v2149
        %2152 = vst [vmem:[%s824] sm:$0xff] %v2151
        %s2153 = sand.u32 %s495, 1
        %s2154 = scalar_lea.sflag [#allocation4], %s2153
        %s2155 = sand.u32 %s495, 1
        %s2156 = smul.addr %s2155, 8
        %s2157 = scalar_lea.vmem [#allocation20], %s2156
        // Predicated region
        $region145: #{tpu_custom_call.1} parent=99 // pred_check
          %p2158 = pneg %p505
        $region146: #{tpu_custom_call.1} parent=99 // pred_check_branch
          %2160 = sbr.rel (%p2158) target = $region148
        $region147: #{tpu_custom_call.1} parent=99 // pred_region
          %s2162 = ssub.s32 128, 128
          %2163 = vsyncadd %s2154, %s2162
          %s2164 = smul.addr %s42, 128
          %s2165 = scalar_lea.hbm %s20, %s2164
          %s2167 = sshll.u32 %s2157, 4
          %s2168 = int_to_ptr.vmem [resolvable:$true] %s2167
          %2170 = dma.vmem_to_hbm [thread:$0]  %s2168, 128, %s2165, %s2154
        $region148: #{tpu_custom_call.1} parent=99 // pred_fallthru
          _
      $region100: #{tpu_custom_call.1} parent=5 // pred_fallthru
        _
      %p2171 = scmp.le.s32.totalorder 2, %s37
      // Predicated region
      $region149: #{tpu_custom_call.1} parent=5 // pred_check
        %p2172 = pneg %p2171
      $region150: #{tpu_custom_call.1} parent=5 // pred_check_branch
        %2174 = sbr.rel (%p2172) target = $region152
      $region151: #{tpu_custom_call.1} parent=5 // pred_region
        %s2175 = ssub.s32 %s37, 2
        // Predicated region
        $region153: #{tpu_custom_call.1} parent=151 // pred_check
          %p2176 = pneg %p511
        $region154: #{tpu_custom_call.1} parent=151 // pred_check_branch
          %2178 = sbr.rel (%p2176) target = $region156
        $region155: #{tpu_custom_call.1} parent=151 // pred_region
          %s2179 = sand.u32 %s496, 1
          %s2180 = scalar_lea.sflag [#allocation4], %s2179
          %s2181 = sand.u32 %s496, 1
          %s2182 = smul.addr %s2181, 8
          %s2183 = scalar_lea.vmem [#allocation20], %s2182
          %2184 = dma.done %s2180, 128
        $region156: #{tpu_custom_call.1} parent=151 // pred_fallthru
          _
      $region152: #{tpu_custom_call.1} parent=5 // pred_fallthru
        _
    $region6: #{tpu_custom_call.1} parent=1 // loop_footer
      %s41 = sadd.s32 1, %s37
    $region7: #{tpu_custom_call.1} parent=1 // loop_footer_branch
      %36 = sbr.rel target = $region3
    $region8: #{tpu_custom_call.1} parent=1 // loop_exit
      _
    %2185 = vsyncpa [#allocation3], 1
    %s2186 = scalar_lea.sflag [#allocation3], 1
    %2187 = vsyncpa %s2186, 1
    %2188 = vsyncpa [#allocation6], 1
    %2189 = vsyncpa [#allocation9], 1
    %2190 = vsyncpa [#allocation12], 1
    %2191 = vsyncpa [#allocation15], 1
    %2192 = vsyncpa [#allocation18], 1
    %2193 = vsyncpa [#allocation4], 1
    %s2194 = scalar_lea.sflag [#allocation4], 1
    %2195 = vsyncpa %s2194, 1

</llo_original>
